<compile_context>
chip_gen: v7x
topology: tpu7x:2x2x1
jax: 0.10.0
libtpu: 0.0.40
codegen_flags: <defaults>
</compile_context>

<pallas_src>
import math
from functools import partial

import numpy as np
import jax
import jax.numpy as jnp
from jax import lax
from jax.experimental import pallas as pl
from jax.experimental.pallas import tpu as pltpu

DTYPE = jnp.bfloat16


# ----------------------------------------------------------------------------
# Fused ViT residual-block kernel (one batch element per grid step)
# ----------------------------------------------------------------------------
def _layer_norm_f32(x, g, b, eps):
    mean = jnp.mean(x, axis=-1, keepdims=True)
    var = jnp.mean((x - mean) ** 2, axis=-1, keepdims=True)
    return (x - mean) * lax.rsqrt(var + eps) * g + b


def _nt_dot_f32(a, b):
    # a @ b.T (contract last dims of both), f32 accumulation, no materialized transpose.
    return lax.dot_general(a, b, (((1,), (1,)), ((), ())),
                           preferred_element_type=jnp.float32)


def _vit_block_kernel(x_ref,
                      ln1_g_ref, ln1_b_ref,
                      w_in_ref, b_in_ref,
                      w_out_ref, b_out_ref,
                      ls1_ref,
                      ln2_g_ref, ln2_b_ref,
                      w_fc1_ref, b_fc1_ref,
                      w_fc2_ref, b_fc2_ref,
                      ls2_ref,
                      attn_ref, mlp_ref, block_ref,
                      *, num_heads, eps):
    # Residual stream kept in f32 inside the kernel (better fidelity than bf16
    # write-backs between ops); matmul operands stay bf16 for the MXU.
    x = x_ref[0].astype(jnp.float32)                     # (N, C)
    C = x.shape[-1]
    dh = C // num_heads
    scale = 1.0 / math.sqrt(dh)

    # --- LN1 + fused QKV projection (one (N, C) x (C, 3C) matmul) ---
    x_ln = _layer_norm_f32(x, ln1_g_ref[...].astype(jnp.float32),
                           ln1_b_ref[...].astype(jnp.float32), eps)
    qkv = jnp.dot(x_ln.astype(DTYPE), w_in_ref[...],
                  preferred_element_type=jnp.float32)
    qkv = qkv + b_in_ref[...].astype(jnp.float32)        # (N, 3C)
    q = qkv[:, 0:C] * scale
    k = qkv[:, C:2 * C]
    v = qkv[:, 2 * C:3 * C]

    # --- multi-head attention; heads unrolled at trace time inside the single
    #     kernel (no grid-step overhead); head-merge fused into the out-proj by
    #     accumulating per-head slices of w_out. ---
    w_out = w_out_ref[...]
    attn_acc = jnp.zeros_like(x)                          # (N, C) f32
    for h in range(num_heads):
        sl = slice(h * dh, (h + 1) * dh)
        qh = q[:, sl].astype(DTYPE)
        kh = k[:, sl].astype(DTYPE)
        vh = v[:, sl].astype(DTYPE)
        s = _nt_dot_f32(qh, kh)                           # (N, N) f32
        s = s - jnp.max(s, axis=-1, keepdims=True)
        p = jnp.exp(s)
        p = p * pl.reciprocal(jnp.sum(p, axis=-1, keepdims=True), approx=True)
        o_h = jnp.dot(p.astype(DTYPE), vh, preferred_element_type=jnp.float32)
        attn_acc = attn_acc + jnp.dot(o_h.astype(DTYPE), w_out[sl, :],
                                      preferred_element_type=jnp.float32)
    attn = attn_acc + b_out_ref[...].astype(jnp.float32)  # out_proj bias
    attn_ref[0] = attn.astype(attn_ref.dtype)

    # --- residual 1 (ls_1 is Identity in ViT-B-16: gamma == 1) ---
    x1 = x + ls1_ref[...].astype(jnp.float32) * attn

    # --- LN2 + MLP ---
    x1_ln = _layer_norm_f32(x1, ln2_g_ref[...].astype(jnp.float32),
                            ln2_b_ref[...].astype(jnp.float32), eps)
    h1 = jnp.dot(x1_ln.astype(DTYPE), w_fc1_ref[...],
                 preferred_element_type=jnp.float32)
    h1 = h1 + b_fc1_ref[...].astype(jnp.float32)
    # TODO(synk): tanh-approx GELU (EUP-friendly); open_clip's nn.GELU is erf-based.
    h1 = jax.nn.gelu(h1, approximate=True)
    mlp = jnp.dot(h1.astype(DTYPE), w_fc2_ref[...],
                  preferred_element_type=jnp.float32)
    mlp = mlp + b_fc2_ref[...].astype(jnp.float32)
    mlp_ref[0] = mlp.astype(mlp_ref.dtype)

    # --- residual 2 ---
    x2 = x1 + ls2_ref[...].astype(jnp.float32) * mlp
    block_ref[0] = x2.astype(block_ref.dtype)


def vit_resblock_forward(x_nbc, params, *, num_heads, eps=1e-5):
    """Fused forward of one patched ResidualAttentionBlock.

    x_nbc: (N, B, C) tokens (open_clip layout: seq, batch, channels), N = 1 + h*w.
    Returns (attn_out, mlp_out, block_out), each (B, N, C).
    """
    N, B, C = x_nbc.shape
    x = jnp.transpose(x_nbc, (1, 0, 2))     # glue: batch-first for per-batch grid blocks
    mlp_dim = params["w_fc1"].shape[1]

    def full(shape):
        return pl.BlockSpec(shape, lambda i, _n=len(shape): (0,) * _n)

    per_batch = pl.BlockSpec((1, N, C), lambda i: (i, 0, 0))

    attn, mlp, block = pl.pallas_call(
        partial(_vit_block_kernel, num_heads=num_heads, eps=eps),
        out_shape=[jax.ShapeDtypeStruct((B, N, C), x.dtype)] * 3,
        grid=(B,),
        in_specs=[
            per_batch,                                    # x
            full((1, C)), full((1, C)),                   # ln_1 gamma/beta
            full((C, 3 * C)), full((1, 3 * C)),           # attn.in_proj (pre-transposed)
            full((C, C)), full((1, C)),                   # attn.out_proj (pre-transposed)
            full((1, C)),                                 # ls_1 gamma
            full((1, C)), full((1, C)),                   # ln_2 gamma/beta
            full((C, mlp_dim)), full((1, mlp_dim)),       # mlp.c_fc (pre-transposed)
            full((mlp_dim, C)), full((1, C)),             # mlp.c_proj (pre-transposed)
            full((1, C)),                                 # ls_2 gamma
        ],
        out_specs=[per_batch, per_batch, per_batch],
        compiler_params=pltpu.CompilerParams(dimension_semantics=("parallel",)),
    )(x,
      params["ln1_g"], params["ln1_b"],
      params["w_in"], params["b_in"],
      params["w_out"], params["b_out"],
      params["ls1"],
      params["ln2_g"], params["ln2_b"],
      params["w_fc1"], params["b_fc1"],
      params["w_fc2"], params["b_fc2"],
      params["ls2"])
    return attn, mlp, block


# ----------------------------------------------------------------------------
# Module glue (parameter container + capture dict) -- plain JAX
# ----------------------------------------------------------------------------
def _remove_cls_and_reshape(t_bnc):
    # mirrors rearrange('(h w) b c -> b h w c') after dropping the CLS token
    b, n, c = t_bnc.shape
    hw = int(np.sqrt(n - 1))
    return t_bnc[:, 1:, :].reshape(b, hw, hw, c)


class OpenCLIPViTBlock0:
    """The compute OpenCLIPViT.forward actually captures: the patched first
    ResidualAttentionBlock, returning {'attn': [...], 'mlp': [...], 'block': [...]}."""

    def __init__(self, key, embed_dim=128, num_heads=4, mlp_ratio=4):
        C = embed_dim
        M = mlp_ratio * C
        self.num_heads = num_heads
        k = jax.random.split(key, 6)

        def init_w(kk, c_in, c_out):
            # stored pre-transposed to (Cin, Cout) once, so no per-call transpose
            return (jax.random.normal(kk, (c_in, c_out), jnp.float32) * 0.02).astype(DTYPE)

        def init_b(kk, c_out):
            return (jax.random.normal(kk, (1, c_out), jnp.float32) * 0.02).astype(DTYPE)

        self.params = {
            "ln1_g": jnp.ones((1, C), DTYPE), "ln1_b": jnp.zeros((1, C), DTYPE),
            "w_in":  init_w(k[0], C, 3 * C), "b_in": init_b(k[1], 3 * C),
            "w_out": init_w(k[2], C, C),     "b_out": init_b(k[3], C),
            "ls1":   jnp.ones((1, C), DTYPE),   # LayerScale == Identity for ViT-B-16
            "ln2_g": jnp.ones((1, C), DTYPE), "ln2_b": jnp.zeros((1, C), DTYPE),
            "w_fc1": init_w(k[4], C, M), "b_fc1": jnp.zeros((1, M), DTYPE),
            "w_fc2": init_w(k[5], M, C), "b_fc2": jnp.zeros((1, C), DTYPE),
            "ls2":   jnp.ones((1, C), DTYPE),
        }

    def __call__(self, x_nbc):
        attn, mlp, block = vit_resblock_forward(x_nbc, self.params,
                                                num_heads=self.num_heads)
        return {
            "attn":  [_remove_cls_and_reshape(attn)],
            "mlp":   [_remove_cls_and_reshape(mlp)],
            "block": [_remove_cls_and_reshape(block)],
        }


if __name__ == "__main__":
    B = 2            # batch
    HW = 8           # patch grid side -> 64 patch tokens
    N = 1 + HW * HW  # CLS + patches = 65 tokens
    C = 128          # embedding dim (multiple of 128 -> lane-dense stores)
    HEADS = 4
    MLP_RATIO = 4

    key = jax.random.PRNGKey(0)
    k_x, k_params = jax.random.split(key)
    # open_clip resblock token layout: (seq, batch, channels)
    x = jax.random.normal(k_x, (N, B, C), jnp.float32).astype(DTYPE)

    block0 = OpenCLIPViTBlock0(k_params, embed_dim=C, num_heads=HEADS, mlp_ratio=MLP_RATIO)
    outs = block0(x)

    # sanity: shapes match the PyTorch capture (b h w c)
    assert outs["attn"][0].shape == (B, HW, HW, C)
    assert outs["mlp"][0].shape == (B, HW, HW, C)
    assert outs["block"][0].shape == (B, HW, HW, C)

    jax.block_until_ready(jax.tree_util.tree_leaves(outs))
    print("KERNEL_OK")
</pallas_src>

<mosaic_0001>
module attributes {stable_mosaic.version = 11 : i64} {
  func.func @_vit_block_kernel(%arg0: i32, %arg1: memref<1x65x128xbf16, #tpu.memory_space<vmem>>, %arg2: memref<1x128xbf16, #tpu.memory_space<vmem>>, %arg3: memref<1x128xbf16, #tpu.memory_space<vmem>>, %arg4: memref<128x384xbf16, #tpu.memory_space<vmem>>, %arg5: memref<1x384xbf16, #tpu.memory_space<vmem>>, %arg6: memref<128x128xbf16, #tpu.memory_space<vmem>>, %arg7: memref<1x128xbf16, #tpu.memory_space<vmem>>, %arg8: memref<1x128xbf16, #tpu.memory_space<vmem>>, %arg9: memref<1x128xbf16, #tpu.memory_space<vmem>>, %arg10: memref<1x128xbf16, #tpu.memory_space<vmem>>, %arg11: memref<128x512xbf16, #tpu.memory_space<vmem>>, %arg12: memref<1x512xbf16, #tpu.memory_space<vmem>>, %arg13: memref<512x128xbf16, #tpu.memory_space<vmem>>, %arg14: memref<1x128xbf16, #tpu.memory_space<vmem>>, %arg15: memref<1x128xbf16, #tpu.memory_space<vmem>>, %arg16: memref<1x65x128xbf16, #tpu.memory_space<vmem>>, %arg17: memref<1x65x128xbf16, #tpu.memory_space<vmem>>, %arg18: memref<1x65x128xbf16, #tpu.memory_space<vmem>>) attributes {dimension_semantics = [#tpu.dimension_semantics<parallel>], iteration_bounds = array<i64: 2>, scalar_prefetch = 0 : i64, scratch_operands = 0 : i64, tpu.core_type = #tpu.core_type<tc>, window_params = [{transform_indices = @transform_0, window_bounds = array<i64: 1, 65, 128>}, {pipeline_mode = #tpu.pipeline_mode<synchronous>, transform_indices = @transform_1, window_bounds = array<i64: 1, 128>}, {pipeline_mode = #tpu.pipeline_mode<synchronous>, transform_indices = @transform_2, window_bounds = array<i64: 1, 128>}, {pipeline_mode = #tpu.pipeline_mode<synchronous>, transform_indices = @transform_3, window_bounds = array<i64: 128, 384>}, {pipeline_mode = #tpu.pipeline_mode<synchronous>, transform_indices = @transform_4, window_bounds = array<i64: 1, 384>}, {pipeline_mode = #tpu.pipeline_mode<synchronous>, transform_indices = @transform_5, window_bounds = array<i64: 128, 128>}, {pipeline_mode = #tpu.pipeline_mode<synchronous>, transform_indices = @transform_6, window_bounds = array<i64: 1, 128>}, {pipeline_mode = #tpu.pipeline_mode<synchronous>, transform_indices = @transform_7, window_bounds = array<i64: 1, 128>}, {pipeline_mode = #tpu.pipeline_mode<synchronous>, transform_indices = @transform_8, window_bounds = array<i64: 1, 128>}, {pipeline_mode = #tpu.pipeline_mode<synchronous>, transform_indices = @transform_9, window_bounds = array<i64: 1, 128>}, {pipeline_mode = #tpu.pipeline_mode<synchronous>, transform_indices = @transform_10, window_bounds = array<i64: 128, 512>}, {pipeline_mode = #tpu.pipeline_mode<synchronous>, transform_indices = @transform_11, window_bounds = array<i64: 1, 512>}, {pipeline_mode = #tpu.pipeline_mode<synchronous>, transform_indices = @transform_12, window_bounds = array<i64: 512, 128>}, {pipeline_mode = #tpu.pipeline_mode<synchronous>, transform_indices = @transform_13, window_bounds = array<i64: 1, 128>}, {pipeline_mode = #tpu.pipeline_mode<synchronous>, transform_indices = @transform_14, window_bounds = array<i64: 1, 128>}, {transform_indices = @transform_15, window_bounds = array<i64: 1, 65, 128>}, {transform_indices = @transform_16, window_bounds = array<i64: 1, 65, 128>}, {transform_indices = @transform_17, window_bounds = array<i64: 1, 65, 128>}]} {
    %c0 = arith.constant 0 : index
    %c0_0 = arith.constant 0 : index
    %c0_1 = arith.constant 0 : index
    %0 = vector.load %arg1[%c0, %c0_0, %c0_1] : memref<1x65x128xbf16, #tpu.memory_space<vmem>>, vector<1x65x128xbf16>
    %1 = vector.shape_cast %0 : vector<1x65x128xbf16> to vector<65x128xbf16>
    %2 = arith.extf %1 : vector<65x128xbf16> to vector<65x128xf32>
    %c0_2 = arith.constant 0 : index
    %c0_3 = arith.constant 0 : index
    %3 = vector.load %arg2[%c0_2, %c0_3] : memref<1x128xbf16, #tpu.memory_space<vmem>>, vector<1x128xbf16>
    %4 = arith.extf %3 : vector<1x128xbf16> to vector<1x128xf32>
    %c0_4 = arith.constant 0 : index
    %c0_5 = arith.constant 0 : index
    %5 = vector.load %arg3[%c0_4, %c0_5] : memref<1x128xbf16, #tpu.memory_space<vmem>>, vector<1x128xbf16>
    %6 = arith.extf %5 : vector<1x128xbf16> to vector<1x128xf32>
    %cst = arith.constant dense<0.000000e+00> : vector<65xf32>
    %7 = vector.multi_reduction <add>, %2, %cst [1] : vector<65x128xf32> to vector<65xf32>
    %8 = vector.shape_cast %7 : vector<65xf32> to vector<65x1xf32>
    %cst_6 = arith.constant 1.280000e+02 : f32
    %9 = vector.broadcast %cst_6 : f32 to vector<65x1xf32>
    %10 = arith.divf %8, %9 : vector<65x1xf32>
    %11 = vector.broadcast %10 : vector<65x1xf32> to vector<65x128xf32>
    %12 = arith.subf %2, %11 : vector<65x128xf32>
    %13 = arith.mulf %12, %12 : vector<65x128xf32>
    %cst_7 = arith.constant dense<0.000000e+00> : vector<65xf32>
    %14 = vector.multi_reduction <add>, %13, %cst_7 [1] : vector<65x128xf32> to vector<65xf32>
    %15 = vector.shape_cast %14 : vector<65xf32> to vector<65x1xf32>
    %cst_8 = arith.constant 1.280000e+02 : f32
    %16 = vector.broadcast %cst_8 : f32 to vector<65x1xf32>
    %17 = arith.divf %15, %16 : vector<65x1xf32>
    %18 = vector.broadcast %10 : vector<65x1xf32> to vector<65x128xf32>
    %19 = arith.subf %2, %18 : vector<65x128xf32>
    %cst_9 = arith.constant 9.99999974E-6 : f32
    %20 = vector.broadcast %cst_9 : f32 to vector<65x1xf32>
    %21 = arith.addf %17, %20 : vector<65x1xf32>
    %22 = math.rsqrt %21 : vector<65x1xf32>
    %23 = vector.broadcast %22 : vector<65x1xf32> to vector<65x128xf32>
    %24 = arith.mulf %19, %23 : vector<65x128xf32>
    %25 = vector.broadcast %4 : vector<1x128xf32> to vector<65x128xf32>
    %26 = arith.mulf %24, %25 : vector<65x128xf32>
    %27 = vector.broadcast %6 : vector<1x128xf32> to vector<65x128xf32>
    %28 = arith.addf %26, %27 : vector<65x128xf32>
    %29 = arith.truncf %28 : vector<65x128xf32> to vector<65x128xbf16>
    %c0_10 = arith.constant 0 : index
    %c0_11 = arith.constant 0 : index
    %30 = vector.load %arg4[%c0_10, %c0_11] : memref<128x384xbf16, #tpu.memory_space<vmem>>, vector<128x384xbf16>
    %cst_12 = arith.constant dense<0.000000e+00> : vector<65x384xf32>
    %31 = tpu.matmul %29, %30, %cst_12 {dimension_numbers = #tpu.dot_dimension_numbers<[1], [0], [0], [1], [0, 0, 1, 1], [], []>} : vector<65x128xbf16>, vector<128x384xbf16>, vector<65x384xf32> -> vector<65x384xf32>
    %c0_13 = arith.constant 0 : index
    %c0_14 = arith.constant 0 : index
    %32 = vector.load %arg5[%c0_13, %c0_14] : memref<1x384xbf16, #tpu.memory_space<vmem>>, vector<1x384xbf16>
    %33 = arith.extf %32 : vector<1x384xbf16> to vector<1x384xf32>
    %34 = vector.broadcast %33 : vector<1x384xf32> to vector<65x384xf32>
    %35 = arith.addf %31, %34 : vector<65x384xf32>
    %36 = vector.extract_strided_slice %35 {offsets = [0, 0], sizes = [65, 128], strides = [1, 1]} : vector<65x384xf32> to vector<65x128xf32>
    %cst_15 = arith.constant 0.176776692 : f32
    %37 = vector.broadcast %cst_15 : f32 to vector<65x128xf32>
    %38 = arith.mulf %36, %37 : vector<65x128xf32>
    %39 = vector.extract_strided_slice %35 {offsets = [0, 128], sizes = [65, 128], strides = [1, 1]} : vector<65x384xf32> to vector<65x128xf32>
    %40 = vector.extract_strided_slice %35 {offsets = [0, 256], sizes = [65, 128], strides = [1, 1]} : vector<65x384xf32> to vector<65x128xf32>
    %c0_16 = arith.constant 0 : index
    %c0_17 = arith.constant 0 : index
    %41 = vector.load %arg6[%c0_16, %c0_17] : memref<128x128xbf16, #tpu.memory_space<vmem>>, vector<128x128xbf16>
    %cst_18 = arith.constant 0.000000e+00 : f32
    %42 = vector.broadcast %cst_18 : f32 to vector<65x128xf32>
    %43 = vector.extract_strided_slice %38 {offsets = [0, 0], sizes = [65, 32], strides = [1, 1]} : vector<65x128xf32> to vector<65x32xf32>
    %44 = arith.truncf %43 : vector<65x32xf32> to vector<65x32xbf16>
    %45 = vector.extract_strided_slice %39 {offsets = [0, 0], sizes = [65, 32], strides = [1, 1]} : vector<65x128xf32> to vector<65x32xf32>
    %46 = arith.truncf %45 : vector<65x32xf32> to vector<65x32xbf16>
    %47 = vector.extract_strided_slice %40 {offsets = [0, 0], sizes = [65, 32], strides = [1, 1]} : vector<65x128xf32> to vector<65x32xf32>
    %48 = arith.truncf %47 : vector<65x32xf32> to vector<65x32xbf16>
    %cst_19 = arith.constant dense<0.000000e+00> : vector<65x65xf32>
    %49 = tpu.matmul %44, %46, %cst_19 {dimension_numbers = #tpu.dot_dimension_numbers<[1], [1], [0], [0], [0, 0, 1, 0], [], []>} : vector<65x32xbf16>, vector<65x32xbf16>, vector<65x65xf32> -> vector<65x65xf32>
    %cst_20 = arith.constant dense<0xFF800000> : vector<65xf32>
    %50 = vector.multi_reduction <maximumf>, %49, %cst_20 [1] : vector<65x65xf32> to vector<65xf32>
    %51 = vector.shape_cast %50 : vector<65xf32> to vector<65x1xf32>
    %52 = vector.broadcast %51 : vector<65x1xf32> to vector<65x65xf32>
    %53 = arith.subf %49, %52 : vector<65x65xf32>
    %54 = math.exp %53 : vector<65x65xf32>
    %cst_21 = arith.constant dense<0.000000e+00> : vector<65xf32>
    %55 = vector.multi_reduction <add>, %54, %cst_21 [1] : vector<65x65xf32> to vector<65xf32>
    %56 = vector.shape_cast %55 : vector<65xf32> to vector<65x1xf32>
    %57 = tpu.reciprocal %56 {approx = true} : vector<65x1xf32> -> vector<65x1xf32>
    %58 = vector.broadcast %57 : vector<65x1xf32> to vector<65x65xf32>
    %59 = arith.mulf %54, %58 : vector<65x65xf32>
    %60 = arith.truncf %59 : vector<65x65xf32> to vector<65x65xbf16>
    %cst_22 = arith.constant dense<0.000000e+00> : vector<65x32xf32>
    %61 = tpu.matmul %60, %48, %cst_22 {dimension_numbers = #tpu.dot_dimension_numbers<[1], [0], [0], [1], [0, 0, 1, 1], [], []>} : vector<65x65xbf16>, vector<65x32xbf16>, vector<65x32xf32> -> vector<65x32xf32>
    %62 = arith.truncf %61 : vector<65x32xf32> to vector<65x32xbf16>
    %63 = vector.extract_strided_slice %41 {offsets = [0, 0], sizes = [32, 128], strides = [1, 1]} : vector<128x128xbf16> to vector<32x128xbf16>
    %cst_23 = arith.constant dense<0.000000e+00> : vector<65x128xf32>
    %64 = tpu.matmul %62, %63, %cst_23 {dimension_numbers = #tpu.dot_dimension_numbers<[1], [0], [0], [1], [0, 0, 1, 1], [], []>} : vector<65x32xbf16>, vector<32x128xbf16>, vector<65x128xf32> -> vector<65x128xf32>
    %65 = arith.addf %42, %64 : vector<65x128xf32>
    %66 = vector.extract_strided_slice %38 {offsets = [0, 32], sizes = [65, 32], strides = [1, 1]} : vector<65x128xf32> to vector<65x32xf32>
    %67 = arith.truncf %66 : vector<65x32xf32> to vector<65x32xbf16>
    %68 = vector.extract_strided_slice %39 {offsets = [0, 32], sizes = [65, 32], strides = [1, 1]} : vector<65x128xf32> to vector<65x32xf32>
    %69 = arith.truncf %68 : vector<65x32xf32> to vector<65x32xbf16>
    %70 = vector.extract_strided_slice %40 {offsets = [0, 32], sizes = [65, 32], strides = [1, 1]} : vector<65x128xf32> to vector<65x32xf32>
    %71 = arith.truncf %70 : vector<65x32xf32> to vector<65x32xbf16>
    %cst_24 = arith.constant dense<0.000000e+00> : vector<65x65xf32>
    %72 = tpu.matmul %67, %69, %cst_24 {dimension_numbers = #tpu.dot_dimension_numbers<[1], [1], [0], [0], [0, 0, 1, 0], [], []>} : vector<65x32xbf16>, vector<65x32xbf16>, vector<65x65xf32> -> vector<65x65xf32>
    %cst_25 = arith.constant dense<0xFF800000> : vector<65xf32>
    %73 = vector.multi_reduction <maximumf>, %72, %cst_25 [1] : vector<65x65xf32> to vector<65xf32>
    %74 = vector.shape_cast %73 : vector<65xf32> to vector<65x1xf32>
    %75 = vector.broadcast %74 : vector<65x1xf32> to vector<65x65xf32>
    %76 = arith.subf %72, %75 : vector<65x65xf32>
    %77 = math.exp %76 : vector<65x65xf32>
    %cst_26 = arith.constant dense<0.000000e+00> : vector<65xf32>
    %78 = vector.multi_reduction <add>, %77, %cst_26 [1] : vector<65x65xf32> to vector<65xf32>
    %79 = vector.shape_cast %78 : vector<65xf32> to vector<65x1xf32>
    %80 = tpu.reciprocal %79 {approx = true} : vector<65x1xf32> -> vector<65x1xf32>
    %81 = vector.broadcast %80 : vector<65x1xf32> to vector<65x65xf32>
    %82 = arith.mulf %77, %81 : vector<65x65xf32>
    %83 = arith.truncf %82 : vector<65x65xf32> to vector<65x65xbf16>
    %cst_27 = arith.constant dense<0.000000e+00> : vector<65x32xf32>
    %84 = tpu.matmul %83, %71, %cst_27 {dimension_numbers = #tpu.dot_dimension_numbers<[1], [0], [0], [1], [0, 0, 1, 1], [], []>} : vector<65x65xbf16>, vector<65x32xbf16>, vector<65x32xf32> -> vector<65x32xf32>
    %85 = arith.truncf %84 : vector<65x32xf32> to vector<65x32xbf16>
    %86 = vector.extract_strided_slice %41 {offsets = [32, 0], sizes = [32, 128], strides = [1, 1]} : vector<128x128xbf16> to vector<32x128xbf16>
    %cst_28 = arith.constant dense<0.000000e+00> : vector<65x128xf32>
    %87 = tpu.matmul %85, %86, %cst_28 {dimension_numbers = #tpu.dot_dimension_numbers<[1], [0], [0], [1], [0, 0, 1, 1], [], []>} : vector<65x32xbf16>, vector<32x128xbf16>, vector<65x128xf32> -> vector<65x128xf32>
    %88 = arith.addf %65, %87 : vector<65x128xf32>
    %89 = vector.extract_strided_slice %38 {offsets = [0, 64], sizes = [65, 32], strides = [1, 1]} : vector<65x128xf32> to vector<65x32xf32>
    %90 = arith.truncf %89 : vector<65x32xf32> to vector<65x32xbf16>
    %91 = vector.extract_strided_slice %39 {offsets = [0, 64], sizes = [65, 32], strides = [1, 1]} : vector<65x128xf32> to vector<65x32xf32>
    %92 = arith.truncf %91 : vector<65x32xf32> to vector<65x32xbf16>
    %93 = vector.extract_strided_slice %40 {offsets = [0, 64], sizes = [65, 32], strides = [1, 1]} : vector<65x128xf32> to vector<65x32xf32>
    %94 = arith.truncf %93 : vector<65x32xf32> to vector<65x32xbf16>
    %cst_29 = arith.constant dense<0.000000e+00> : vector<65x65xf32>
    %95 = tpu.matmul %90, %92, %cst_29 {dimension_numbers = #tpu.dot_dimension_numbers<[1], [1], [0], [0], [0, 0, 1, 0], [], []>} : vector<65x32xbf16>, vector<65x32xbf16>, vector<65x65xf32> -> vector<65x65xf32>
    %cst_30 = arith.constant dense<0xFF800000> : vector<65xf32>
    %96 = vector.multi_reduction <maximumf>, %95, %cst_30 [1] : vector<65x65xf32> to vector<65xf32>
    %97 = vector.shape_cast %96 : vector<65xf32> to vector<65x1xf32>
    %98 = vector.broadcast %97 : vector<65x1xf32> to vector<65x65xf32>
    %99 = arith.subf %95, %98 : vector<65x65xf32>
    %100 = math.exp %99 : vector<65x65xf32>
    %cst_31 = arith.constant dense<0.000000e+00> : vector<65xf32>
    %101 = vector.multi_reduction <add>, %100, %cst_31 [1] : vector<65x65xf32> to vector<65xf32>
    %102 = vector.shape_cast %101 : vector<65xf32> to vector<65x1xf32>
    %103 = tpu.reciprocal %102 {approx = true} : vector<65x1xf32> -> vector<65x1xf32>
    %104 = vector.broadcast %103 : vector<65x1xf32> to vector<65x65xf32>
    %105 = arith.mulf %100, %104 : vector<65x65xf32>
    %106 = arith.truncf %105 : vector<65x65xf32> to vector<65x65xbf16>
    %cst_32 = arith.constant dense<0.000000e+00> : vector<65x32xf32>
    %107 = tpu.matmul %106, %94, %cst_32 {dimension_numbers = #tpu.dot_dimension_numbers<[1], [0], [0], [1], [0, 0, 1, 1], [], []>} : vector<65x65xbf16>, vector<65x32xbf16>, vector<65x32xf32> -> vector<65x32xf32>
    %108 = arith.truncf %107 : vector<65x32xf32> to vector<65x32xbf16>
    %109 = vector.extract_strided_slice %41 {offsets = [64, 0], sizes = [32, 128], strides = [1, 1]} : vector<128x128xbf16> to vector<32x128xbf16>
    %cst_33 = arith.constant dense<0.000000e+00> : vector<65x128xf32>
    %110 = tpu.matmul %108, %109, %cst_33 {dimension_numbers = #tpu.dot_dimension_numbers<[1], [0], [0], [1], [0, 0, 1, 1], [], []>} : vector<65x32xbf16>, vector<32x128xbf16>, vector<65x128xf32> -> vector<65x128xf32>
    %111 = arith.addf %88, %110 : vector<65x128xf32>
    %112 = vector.extract_strided_slice %38 {offsets = [0, 96], sizes = [65, 32], strides = [1, 1]} : vector<65x128xf32> to vector<65x32xf32>
    %113 = arith.truncf %112 : vector<65x32xf32> to vector<65x32xbf16>
    %114 = vector.extract_strided_slice %39 {offsets = [0, 96], sizes = [65, 32], strides = [1, 1]} : vector<65x128xf32> to vector<65x32xf32>
    %115 = arith.truncf %114 : vector<65x32xf32> to vector<65x32xbf16>
    %116 = vector.extract_strided_slice %40 {offsets = [0, 96], sizes = [65, 32], strides = [1, 1]} : vector<65x128xf32> to vector<65x32xf32>
    %117 = arith.truncf %116 : vector<65x32xf32> to vector<65x32xbf16>
    %cst_34 = arith.constant dense<0.000000e+00> : vector<65x65xf32>
    %118 = tpu.matmul %113, %115, %cst_34 {dimension_numbers = #tpu.dot_dimension_numbers<[1], [1], [0], [0], [0, 0, 1, 0], [], []>} : vector<65x32xbf16>, vector<65x32xbf16>, vector<65x65xf32> -> vector<65x65xf32>
    %cst_35 = arith.constant dense<0xFF800000> : vector<65xf32>
    %119 = vector.multi_reduction <maximumf>, %118, %cst_35 [1] : vector<65x65xf32> to vector<65xf32>
    %120 = vector.shape_cast %119 : vector<65xf32> to vector<65x1xf32>
    %121 = vector.broadcast %120 : vector<65x1xf32> to vector<65x65xf32>
    %122 = arith.subf %118, %121 : vector<65x65xf32>
    %123 = math.exp %122 : vector<65x65xf32>
    %cst_36 = arith.constant dense<0.000000e+00> : vector<65xf32>
    %124 = vector.multi_reduction <add>, %123, %cst_36 [1] : vector<65x65xf32> to vector<65xf32>
    %125 = vector.shape_cast %124 : vector<65xf32> to vector<65x1xf32>
    %126 = tpu.reciprocal %125 {approx = true} : vector<65x1xf32> -> vector<65x1xf32>
    %127 = vector.broadcast %126 : vector<65x1xf32> to vector<65x65xf32>
    %128 = arith.mulf %123, %127 : vector<65x65xf32>
    %129 = arith.truncf %128 : vector<65x65xf32> to vector<65x65xbf16>
    %cst_37 = arith.constant dense<0.000000e+00> : vector<65x32xf32>
    %130 = tpu.matmul %129, %117, %cst_37 {dimension_numbers = #tpu.dot_dimension_numbers<[1], [0], [0], [1], [0, 0, 1, 1], [], []>} : vector<65x65xbf16>, vector<65x32xbf16>, vector<65x32xf32> -> vector<65x32xf32>
    %131 = arith.truncf %130 : vector<65x32xf32> to vector<65x32xbf16>
    %132 = vector.extract_strided_slice %41 {offsets = [96, 0], sizes = [32, 128], strides = [1, 1]} : vector<128x128xbf16> to vector<32x128xbf16>
    %cst_38 = arith.constant dense<0.000000e+00> : vector<65x128xf32>
    %133 = tpu.matmul %131, %132, %cst_38 {dimension_numbers = #tpu.dot_dimension_numbers<[1], [0], [0], [1], [0, 0, 1, 1], [], []>} : vector<65x32xbf16>, vector<32x128xbf16>, vector<65x128xf32> -> vector<65x128xf32>
    %134 = arith.addf %111, %133 : vector<65x128xf32>
    %c0_39 = arith.constant 0 : index
    %c0_40 = arith.constant 0 : index
    %135 = vector.load %arg7[%c0_39, %c0_40] : memref<1x128xbf16, #tpu.memory_space<vmem>>, vector<1x128xbf16>
    %136 = arith.extf %135 : vector<1x128xbf16> to vector<1x128xf32>
    %137 = vector.broadcast %136 : vector<1x128xf32> to vector<65x128xf32>
    %138 = arith.addf %134, %137 : vector<65x128xf32>
    %139 = arith.truncf %138 : vector<65x128xf32> to vector<65x128xbf16>
    %c0_41 = arith.constant 0 : index
    %c0_42 = arith.constant 0 : index
    %c0_43 = arith.constant 0 : index
    %140 = vector.load %arg16[%c0_41, %c0_42, %c0_43] : memref<1x65x128xbf16, #tpu.memory_space<vmem>>, vector<1x65x128xbf16>
    %141 = vector.shape_cast %140 : vector<1x65x128xbf16> to vector<65x128xbf16>
    %142 = vector.shape_cast %139 : vector<65x128xbf16> to vector<1x65x128xbf16>
    tpu.vector_store %arg16[%c0_41, %c0_42, %c0_43], %142 {strides = array<i32>} : memref<1x65x128xbf16, #tpu.memory_space<vmem>>, vector<1x65x128xbf16>,
    %c0_44 = arith.constant 0 : index
    %c0_45 = arith.constant 0 : index
    %143 = vector.load %arg8[%c0_44, %c0_45] : memref<1x128xbf16, #tpu.memory_space<vmem>>, vector<1x128xbf16>
    %144 = arith.extf %143 : vector<1x128xbf16> to vector<1x128xf32>
    %145 = vector.broadcast %144 : vector<1x128xf32> to vector<65x128xf32>
    %146 = arith.mulf %145, %138 : vector<65x128xf32>
    %147 = arith.addf %2, %146 : vector<65x128xf32>
    %c0_46 = arith.constant 0 : index
    %c0_47 = arith.constant 0 : index
    %148 = vector.load %arg9[%c0_46, %c0_47] : memref<1x128xbf16, #tpu.memory_space<vmem>>, vector<1x128xbf16>
    %149 = arith.extf %148 : vector<1x128xbf16> to vector<1x128xf32>
    %c0_48 = arith.constant 0 : index
    %c0_49 = arith.constant 0 : index
    %150 = vector.load %arg10[%c0_48, %c0_49] : memref<1x128xbf16, #tpu.memory_space<vmem>>, vector<1x128xbf16>
    %151 = arith.extf %150 : vector<1x128xbf16> to vector<1x128xf32>
    %cst_50 = arith.constant dense<0.000000e+00> : vector<65xf32>
    %152 = vector.multi_reduction <add>, %147, %cst_50 [1] : vector<65x128xf32> to vector<65xf32>
    %153 = vector.shape_cast %152 : vector<65xf32> to vector<65x1xf32>
    %cst_51 = arith.constant 1.280000e+02 : f32
    %154 = vector.broadcast %cst_51 : f32 to vector<65x1xf32>
    %155 = arith.divf %153, %154 : vector<65x1xf32>
    %156 = vector.broadcast %155 : vector<65x1xf32> to vector<65x128xf32>
    %157 = arith.subf %147, %156 : vector<65x128xf32>
    %158 = arith.mulf %157, %157 : vector<65x128xf32>
    %cst_52 = arith.constant dense<0.000000e+00> : vector<65xf32>
    %159 = vector.multi_reduction <add>, %158, %cst_52 [1] : vector<65x128xf32> to vector<65xf32>
    %160 = vector.shape_cast %159 : vector<65xf32> to vector<65x1xf32>
    %cst_53 = arith.constant 1.280000e+02 : f32
    %161 = vector.broadcast %cst_53 : f32 to vector<65x1xf32>
    %162 = arith.divf %160, %161 : vector<65x1xf32>
    %163 = vector.broadcast %155 : vector<65x1xf32> to vector<65x128xf32>
    %164 = arith.subf %147, %163 : vector<65x128xf32>
    %cst_54 = arith.constant 9.99999974E-6 : f32
    %165 = vector.broadcast %cst_54 : f32 to vector<65x1xf32>
    %166 = arith.addf %162, %165 : vector<65x1xf32>
    %167 = math.rsqrt %166 : vector<65x1xf32>
    %168 = vector.broadcast %167 : vector<65x1xf32> to vector<65x128xf32>
    %169 = arith.mulf %164, %168 : vector<65x128xf32>
    %170 = vector.broadcast %149 : vector<1x128xf32> to vector<65x128xf32>
    %171 = arith.mulf %169, %170 : vector<65x128xf32>
    %172 = vector.broadcast %151 : vector<1x128xf32> to vector<65x128xf32>
    %173 = arith.addf %171, %172 : vector<65x128xf32>
    %174 = arith.truncf %173 : vector<65x128xf32> to vector<65x128xbf16>
    %c0_55 = arith.constant 0 : index
    %c0_56 = arith.constant 0 : index
    %175 = vector.load %arg11[%c0_55, %c0_56] : memref<128x512xbf16, #tpu.memory_space<vmem>>, vector<128x512xbf16>
    %cst_57 = arith.constant dense<0.000000e+00> : vector<65x512xf32>
    %176 = tpu.matmul %174, %175, %cst_57 {dimension_numbers = #tpu.dot_dimension_numbers<[1], [0], [0], [1], [0, 0, 1, 1], [], []>} : vector<65x128xbf16>, vector<128x512xbf16>, vector<65x512xf32> -> vector<65x512xf32>
    %c0_58 = arith.constant 0 : index
    %c0_59 = arith.constant 0 : index
    %177 = vector.load %arg12[%c0_58, %c0_59] : memref<1x512xbf16, #tpu.memory_space<vmem>>, vector<1x512xbf16>
    %178 = arith.extf %177 : vector<1x512xbf16> to vector<1x512xf32>
    %179 = vector.broadcast %178 : vector<1x512xf32> to vector<65x512xf32>
    %180 = arith.addf %176, %179 : vector<65x512xf32>
    %181 = arith.mulf %180, %180 : vector<65x512xf32>
    %182 = arith.mulf %180, %181 : vector<65x512xf32>
    %cst_60 = arith.constant 4.471500e-02 : f32
    %183 = vector.broadcast %cst_60 : f32 to vector<65x512xf32>
    %184 = arith.mulf %183, %182 : vector<65x512xf32>
    %185 = arith.addf %180, %184 : vector<65x512xf32>
    %cst_61 = arith.constant 0.797884583 : f32
    %186 = vector.broadcast %cst_61 : f32 to vector<65x512xf32>
    %187 = arith.mulf %186, %185 : vector<65x512xf32>
    %188 = math.tanh %187 : vector<65x512xf32>
    %cst_62 = arith.constant 1.000000e+00 : f32
    %189 = vector.broadcast %cst_62 : f32 to vector<65x512xf32>
    %190 = arith.addf %189, %188 : vector<65x512xf32>
    %cst_63 = arith.constant 5.000000e-01 : f32
    %191 = vector.broadcast %cst_63 : f32 to vector<65x512xf32>
    %192 = arith.mulf %191, %190 : vector<65x512xf32>
    %193 = arith.mulf %180, %192 : vector<65x512xf32>
    %194 = arith.truncf %193 : vector<65x512xf32> to vector<65x512xbf16>
    %c0_64 = arith.constant 0 : index
    %c0_65 = arith.constant 0 : index
    %195 = vector.load %arg13[%c0_64, %c0_65] : memref<512x128xbf16, #tpu.memory_space<vmem>>, vector<512x128xbf16>
    %cst_66 = arith.constant dense<0.000000e+00> : vector<65x128xf32>
    %196 = tpu.matmul %194, %195, %cst_66 {dimension_numbers = #tpu.dot_dimension_numbers<[1], [0], [0], [1], [0, 0, 1, 1], [], []>} : vector<65x512xbf16>, vector<512x128xbf16>, vector<65x128xf32> -> vector<65x128xf32>
    %c0_67 = arith.constant 0 : index
    %c0_68 = arith.constant 0 : index
    %197 = vector.load %arg14[%c0_67, %c0_68] : memref<1x128xbf16, #tpu.memory_space<vmem>>, vector<1x128xbf16>
    %198 = arith.extf %197 : vector<1x128xbf16> to vector<1x128xf32>
    %199 = vector.broadcast %198 : vector<1x128xf32> to vector<65x128xf32>
    %200 = arith.addf %196, %199 : vector<65x128xf32>
    %201 = arith.truncf %200 : vector<65x128xf32> to vector<65x128xbf16>
    %c0_69 = arith.constant 0 : index
    %c0_70 = arith.constant 0 : index
    %c0_71 = arith.constant 0 : index
    %202 = vector.load %arg17[%c0_69, %c0_70, %c0_71] : memref<1x65x128xbf16, #tpu.memory_space<vmem>>, vector<1x65x128xbf16>
    %203 = vector.shape_cast %202 : vector<1x65x128xbf16> to vector<65x128xbf16>
    %204 = vector.shape_cast %201 : vector<65x128xbf16> to vector<1x65x128xbf16>
    tpu.vector_store %arg17[%c0_69, %c0_70, %c0_71], %204 {strides = array<i32>} : memref<1x65x128xbf16, #tpu.memory_space<vmem>>, vector<1x65x128xbf16>,
    %c0_72 = arith.constant 0 : index
    %c0_73 = arith.constant 0 : index
    %205 = vector.load %arg15[%c0_72, %c0_73] : memref<1x128xbf16, #tpu.memory_space<vmem>>, vector<1x128xbf16>
    %206 = arith.extf %205 : vector<1x128xbf16> to vector<1x128xf32>
    %207 = vector.broadcast %206 : vector<1x128xf32> to vector<65x128xf32>
    %208 = arith.mulf %207, %200 : vector<65x128xf32>
    %209 = arith.addf %147, %208 : vector<65x128xf32>
    %210 = arith.truncf %209 : vector<65x128xf32> to vector<65x128xbf16>
    %c0_74 = arith.constant 0 : index
    %c0_75 = arith.constant 0 : index
    %c0_76 = arith.constant 0 : index
    %211 = vector.load %arg18[%c0_74, %c0_75, %c0_76] : memref<1x65x128xbf16, #tpu.memory_space<vmem>>, vector<1x65x128xbf16>
    %212 = vector.shape_cast %211 : vector<1x65x128xbf16> to vector<65x128xbf16>
    %213 = vector.shape_cast %210 : vector<65x128xbf16> to vector<1x65x128xbf16>
    tpu.vector_store %arg18[%c0_74, %c0_75, %c0_76], %213 {strides = array<i32>} : memref<1x65x128xbf16, #tpu.memory_space<vmem>>, vector<1x65x128xbf16>,
    return
  }
  func.func @transform_0(%arg0: i32) -> (i32, i32, i32) {
    %c0_i32 = arith.constant 0 : i32
    %c0_i32_0 = arith.constant 0 : i32
    %c0_i32_1 = arith.constant 0 : i32
    return %arg0, %c0_i32, %c0_i32_0 : i32, i32, i32
  }
  func.func @transform_1(%arg0: i32) -> (i32, i32) {
    %c0_i32 = arith.constant 0 : i32
    %c0_i32_0 = arith.constant 0 : i32
    %c0_i32_1 = arith.constant 0 : i32
    return %c0_i32, %c0_i32_0 : i32, i32
  }
  func.func @transform_2(%arg0: i32) -> (i32, i32) {
    %c0_i32 = arith.constant 0 : i32
    %c0_i32_0 = arith.constant 0 : i32
    %c0_i32_1 = arith.constant 0 : i32
    return %c0_i32, %c0_i32_0 : i32, i32
  }
  func.func @transform_3(%arg0: i32) -> (i32, i32) {
    %c0_i32 = arith.constant 0 : i32
    %c0_i32_0 = arith.constant 0 : i32
    %c0_i32_1 = arith.constant 0 : i32
    return %c0_i32, %c0_i32_0 : i32, i32
  }
  func.func @transform_4(%arg0: i32) -> (i32, i32) {
    %c0_i32 = arith.constant 0 : i32
    %c0_i32_0 = arith.constant 0 : i32
    %c0_i32_1 = arith.constant 0 : i32
    return %c0_i32, %c0_i32_0 : i32, i32
  }
  func.func @transform_5(%arg0: i32) -> (i32, i32) {
    %c0_i32 = arith.constant 0 : i32
    %c0_i32_0 = arith.constant 0 : i32
    %c0_i32_1 = arith.constant 0 : i32
    return %c0_i32, %c0_i32_0 : i32, i32
  }
  func.func @transform_6(%arg0: i32) -> (i32, i32) {
    %c0_i32 = arith.constant 0 : i32
    %c0_i32_0 = arith.constant 0 : i32
    %c0_i32_1 = arith.constant 0 : i32
    return %c0_i32, %c0_i32_0 : i32, i32
  }
  func.func @transform_7(%arg0: i32) -> (i32, i32) {
    %c0_i32 = arith.constant 0 : i32
    %c0_i32_0 = arith.constant 0 : i32
    %c0_i32_1 = arith.constant 0 : i32
    return %c0_i32, %c0_i32_0 : i32, i32
  }
  func.func @transform_8(%arg0: i32) -> (i32, i32) {
    %c0_i32 = arith.constant 0 : i32
    %c0_i32_0 = arith.constant 0 : i32
    %c0_i32_1 = arith.constant 0 : i32
    return %c0_i32, %c0_i32_0 : i32, i32
  }
  func.func @transform_9(%arg0: i32) -> (i32, i32) {
    %c0_i32 = arith.constant 0 : i32
    %c0_i32_0 = arith.constant 0 : i32
    %c0_i32_1 = arith.constant 0 : i32
    return %c0_i32, %c0_i32_0 : i32, i32
  }
  func.func @transform_10(%arg0: i32) -> (i32, i32) {
    %c0_i32 = arith.constant 0 : i32
    %c0_i32_0 = arith.constant 0 : i32
    %c0_i32_1 = arith.constant 0 : i32
    return %c0_i32, %c0_i32_0 : i32, i32
  }
  func.func @transform_11(%arg0: i32) -> (i32, i32) {
    %c0_i32 = arith.constant 0 : i32
    %c0_i32_0 = arith.constant 0 : i32
    %c0_i32_1 = arith.constant 0 : i32
    return %c0_i32, %c0_i32_0 : i32, i32
  }
  func.func @transform_12(%arg0: i32) -> (i32, i32) {
    %c0_i32 = arith.constant 0 : i32
    %c0_i32_0 = arith.constant 0 : i32
    %c0_i32_1 = arith.constant 0 : i32
    return %c0_i32, %c0_i32_0 : i32, i32
  }
  func.func @transform_13(%arg0: i32) -> (i32, i32) {
    %c0_i32 = arith.constant 0 : i32
    %c0_i32_0 = arith.constant 0 : i32
    %c0_i32_1 = arith.constant 0 : i32
    return %c0_i32, %c0_i32_0 : i32, i32
  }
  func.func @transform_14(%arg0: i32) -> (i32, i32) {
    %c0_i32 = arith.constant 0 : i32
    %c0_i32_0 = arith.constant 0 : i32
    %c0_i32_1 = arith.constant 0 : i32
    return %c0_i32, %c0_i32_0 : i32, i32
  }
  func.func @transform_15(%arg0: i32) -> (i32, i32, i32) {
    %c0_i32 = arith.constant 0 : i32
    %c0_i32_0 = arith.constant 0 : i32
    %c0_i32_1 = arith.constant 0 : i32
    return %arg0, %c0_i32, %c0_i32_0 : i32, i32, i32
  }
  func.func @transform_16(%arg0: i32) -> (i32, i32, i32) {
    %c0_i32 = arith.constant 0 : i32
    %c0_i32_0 = arith.constant 0 : i32
    %c0_i32_1 = arith.constant 0 : i32
    return %arg0, %c0_i32, %c0_i32_0 : i32, i32, i32
  }
  func.func @transform_17(%arg0: i32) -> (i32, i32, i32) {
    %c0_i32 = arith.constant 0 : i32
    %c0_i32_0 = arith.constant 0 : i32
    %c0_i32_1 = arith.constant 0 : i32
    return %arg0, %c0_i32, %c0_i32_0 : i32, i32, i32
  }
}

</mosaic_0001>

<llo_original>
// kernel: tpu_custom_call.1
$region0: #{tpu_custom_call.1}
  #allocation0 [shape = 'u32[]', space=smem, size = 0x4, offset = 0x4, fixed_abs, tag = 'smem constant byte address 0x4 - core index']
  #allocation1 [shape = 'u32[144,128]{1,0:T(1,128)}', space=vmem, size = 0x12000, scoped, tag = 'internal scratch']
  %s0 = inlined_call_operand.vmem [shape: bf16[2,65,128], index: 0, kind: input, shape index: {}]
  %s1 = inlined_call_operand.vmem [shape: bf16[1,128], index: 1, kind: input, shape index: {}]
  %s2 = inlined_call_operand.vmem [shape: bf16[1,128], index: 2, kind: input, shape index: {}]
  %s3 = inlined_call_operand.hbm [shape: bf16[128,384], index: 3, kind: input, shape index: {}]
  %s4 = inlined_call_operand.vmem [shape: bf16[1,384], index: 4, kind: input, shape index: {}]
  %s5 = inlined_call_operand.vmem [shape: bf16[128,128], index: 5, kind: input, shape index: {}]
  %s6 = inlined_call_operand.vmem [shape: bf16[1,128], index: 6, kind: input, shape index: {}]
  %s7 = inlined_call_operand.vmem [shape: bf16[1,128], index: 7, kind: input, shape index: {}]
  %s8 = inlined_call_operand.vmem [shape: bf16[1,128], index: 8, kind: input, shape index: {}]
  %s9 = inlined_call_operand.vmem [shape: bf16[1,128], index: 9, kind: input, shape index: {}]
  %s10 = inlined_call_operand.hbm [shape: bf16[128,512], index: 10, kind: input, shape index: {}]
  %s11 = inlined_call_operand.vmem [shape: bf16[1,512], index: 11, kind: input, shape index: {}]
  %s12 = inlined_call_operand.hbm [shape: bf16[512,128], index: 12, kind: input, shape index: {}]
  %s13 = inlined_call_operand.vmem [shape: bf16[1,128], index: 13, kind: input, shape index: {}]
  %s14 = inlined_call_operand.vmem [shape: bf16[1,128], index: 14, kind: input, shape index: {}]
  %s15 = inlined_call_operand.vmem [shape: bf16[2,65,128], index: 15, kind: output, shape index: {0}]
  %s16 = inlined_call_operand.vmem [shape: bf16[2,65,128], index: 16, kind: output, shape index: {1}]
  %s17 = inlined_call_operand.vmem [shape: bf16[2,65,128], index: 17, kind: output, shape index: {2}]
  %18 = xla_tuple %s15, %s16, %s17
  %s19 = sld [smem:[#allocation0]]
  $region121: #{tpu_custom_call.1} parent=0
    _
  %s21 = ssub.s32 1, %s19
  %s22 = scalar_select 0, %s21, %s19
  $region1: #{tpu_custom_call.1} parent=0
    #allocation2 [shape = 'u8[98304]{0}', space=vmem, size = 0x18000, scoped, tag = 'input window, operand 3, single buffered']
    #allocation3 [shape = 's32[2]{0}', space=sflag, size = 0x8, scoped, tag = 'scoped memory for tpu_custom_call.1']
    #allocation4 [shape = 'u8[131072]{0}', space=vmem, size = 0x20000, scoped, tag = 'input window, operand 10, single buffered']
    #allocation5 [shape = 's32[1]{0}', space=sflag, size = 0x4, scoped, tag = 'scoped memory for tpu_custom_call.1']
    #allocation6 [shape = 'u8[131072]{0}', space=vmem, size = 0x20000, scoped, tag = 'input window, operand 12, single buffered']
    %23 = vsyncpa [#allocation3], 0
    %24 = vsyncpa [#allocation5], 0
    loop: start=0, step=1, limit=4
    $region2: #{tpu_custom_call.1} parent=1 // loop_pre_header
      _
    $region3: #{tpu_custom_call.1} parent=1 // loop_header
      %s26 = sphi 0, %s30
      %p27 = scmp.ge.s32.totalorder %s26, 4
      %s36 = sphi 0, %s38
      %s39 = sphi 0, %s36
      %s40 = sphi 0, %s39
      %s56 = sphi 0, %s40
      %s60 = sphi 0, %s60
      %s62 = sphi 0, %s60
      %s63 = sphi 0, %s62
      %s77 = sphi 0, %s63
      %s81 = sphi 0, %s81
      %s83 = sphi 0, %s81
      %s84 = sphi 0, %s83
      %s98 = sphi 0, %s84
      %s102 = sphi 0, %s102
      %s104 = sphi 0, %s102
      %s105 = sphi 0, %s104
      %s119 = sphi 0, %s105
      %s123 = sphi 0, %s123
      %s125 = sphi 0, %s123
      %s126 = sphi 0, %s125
      %s140 = sphi 0, %s126
      %s144 = sphi 0, %s144
      %s146 = sphi 0, %s144
      %s147 = sphi 0, %s146
      %s161 = sphi 0, %s147
      %s165 = sphi 0, %s165
      %s167 = sphi 0, %s165
      %s168 = sphi 0, %s167
      %s182 = sphi 0, %s168
      %s186 = sphi 0, %s186
      %s188 = sphi 0, %s186
      %s189 = sphi 0, %s188
      %s203 = sphi 0, %s189
      %s207 = sphi 0, %s207
      %s209 = sphi 0, %s207
      %s210 = sphi 0, %s209
      %s224 = sphi 0, %s210
      %s228 = sphi 0, %s228
      %s230 = sphi 0, %s228
      %s231 = sphi 0, %s230
      %s245 = sphi 0, %s231
      %s249 = sphi 0, %s249
      %s251 = sphi 0, %s249
      %s252 = sphi 0, %s251
      %s266 = sphi 0, %s252
      %s270 = sphi 0, %s270
      %s272 = sphi 0, %s270
      %s273 = sphi 0, %s272
      %s287 = sphi 0, %s273
      %s291 = sphi 0, %s291
      %s293 = sphi 0, %s291
      %s294 = sphi 0, %s293
      %s308 = sphi 0, %s294
      %s312 = sphi 0, %s312
      %s314 = sphi 0, %s312
      %s315 = sphi 0, %s314
      %s329 = sphi 0, %s315
      %s333 = sphi 0, %s333
      %s335 = sphi 0, %s333
      %s336 = sphi 0, %s335
      %s350 = sphi 0, %s336
      %s356 = sphi 0, %s358
      %s359 = sphi 0, %s356
      %s360 = sphi 0, %s359
      %s376 = sphi 0, %s360
      %s382 = sphi 0, %s384
      %s385 = sphi 0, %s382
      %s386 = sphi 0, %s385
      %s402 = sphi 0, %s386
      %s408 = sphi 0, %s410
      %s411 = sphi 0, %s408
      %s412 = sphi 0, %s411
      %s428 = sphi 0, %s412
    $region4: #{tpu_custom_call.1} parent=1 // loop_header_branch
      %29 = sbr.rel (%p27) target = $region8
    $region5: #{tpu_custom_call.1} parent=1 // loop_body
      %s31 = ssub.s32 %s26, 1
      %s32 = ssub.s32 %s26, 2
      %s33 = sadd.s32 %s26, 1
      %s34 = ssub.s32 %s26, %s33
      %p35 = scmp.eq.s32.totalorder %s34, 0
      %s37 = sadd.s32 %s36, 1
      %s38 = scalar_select %p35, %s36, %s37
      %p41 = pneg %p35
      %p42 = scmp.eq.s32.totalorder %s26, 1
      %p43 = por %p41, %p42
      %p44 = scmp.ne.s32.totalorder %s36, %s39
      %p45 = scmp.eq.s32.totalorder %s26, 0
      %p46 = por %p44, %p45
      %p47 = scmp.ne.s32.totalorder %s36, %s39
      %p48 = scmp.eq.s32.totalorder %s31, 1
      %p49 = por %p47, %p48
      %p50 = scmp.ne.s32.totalorder %s39, %s40
      %p51 = scmp.eq.s32.totalorder %s31, 0
      %p52 = por %p50, %p51
      %p53 = scmp.ne.s32.totalorder %s39, %s40
      %p54 = scmp.eq.s32.totalorder %s32, 1
      %p55 = por %p53, %p54
      %p57 = scmp.ne.s32.totalorder %s40, %s56
      %p58 = scmp.eq.s32.totalorder %s32, 0
      %p59 = por %p57, %p58
      %s61 = sadd.s32 %s60, 1
      %p64 = scmp.eq.s32.totalorder %s26, 1
      %p65 = scmp.ne.s32.totalorder %s60, %s62
      %p66 = scmp.eq.s32.totalorder %s26, 0
      %p67 = por %p65, %p66
      %p68 = scmp.ne.s32.totalorder %s60, %s62
      %p69 = scmp.eq.s32.totalorder %s31, 1
      %p70 = por %p68, %p69
      %p71 = scmp.ne.s32.totalorder %s62, %s63
      %p72 = scmp.eq.s32.totalorder %s31, 0
      %p73 = por %p71, %p72
      %p74 = scmp.ne.s32.totalorder %s62, %s63
      %p75 = scmp.eq.s32.totalorder %s32, 1
      %p76 = por %p74, %p75
      %p78 = scmp.ne.s32.totalorder %s63, %s77
      %p79 = scmp.eq.s32.totalorder %s32, 0
      %p80 = por %p78, %p79
      %s82 = sadd.s32 %s81, 1
      %p85 = scmp.eq.s32.totalorder %s26, 1
      %p86 = scmp.ne.s32.totalorder %s81, %s83
      %p87 = scmp.eq.s32.totalorder %s26, 0
      %p88 = por %p86, %p87
      %p89 = scmp.ne.s32.totalorder %s81, %s83
      %p90 = scmp.eq.s32.totalorder %s31, 1
      %p91 = por %p89, %p90
      %p92 = scmp.ne.s32.totalorder %s83, %s84
      %p93 = scmp.eq.s32.totalorder %s31, 0
      %p94 = por %p92, %p93
      %p95 = scmp.ne.s32.totalorder %s83, %s84
      %p96 = scmp.eq.s32.totalorder %s32, 1
      %p97 = por %p95, %p96
      %p99 = scmp.ne.s32.totalorder %s84, %s98
      %p100 = scmp.eq.s32.totalorder %s32, 0
      %p101 = por %p99, %p100
      %s103 = sadd.s32 %s102, 1
      %p106 = scmp.eq.s32.totalorder %s26, 1
      %p107 = scmp.ne.s32.totalorder %s102, %s104
      %p108 = scmp.eq.s32.totalorder %s26, 0
      %p109 = por %p107, %p108
      %p110 = scmp.ne.s32.totalorder %s102, %s104
      %p111 = scmp.eq.s32.totalorder %s31, 1
      %p112 = por %p110, %p111
      %p113 = scmp.ne.s32.totalorder %s104, %s105
      %p114 = scmp.eq.s32.totalorder %s31, 0
      %p115 = por %p113, %p114
      %p116 = scmp.ne.s32.totalorder %s104, %s105
      %p117 = scmp.eq.s32.totalorder %s32, 1
      %p118 = por %p116, %p117
      %p120 = scmp.ne.s32.totalorder %s105, %s119
      %p121 = scmp.eq.s32.totalorder %s32, 0
      %p122 = por %p120, %p121
      %s124 = sadd.s32 %s123, 1
      %p127 = scmp.eq.s32.totalorder %s26, 1
      %p128 = scmp.ne.s32.totalorder %s123, %s125
      %p129 = scmp.eq.s32.totalorder %s26, 0
      %p130 = por %p128, %p129
      %p131 = scmp.ne.s32.totalorder %s123, %s125
      %p132 = scmp.eq.s32.totalorder %s31, 1
      %p133 = por %p131, %p132
      %p134 = scmp.ne.s32.totalorder %s125, %s126
      %p135 = scmp.eq.s32.totalorder %s31, 0
      %p136 = por %p134, %p135
      %p137 = scmp.ne.s32.totalorder %s125, %s126
      %p138 = scmp.eq.s32.totalorder %s32, 1
      %p139 = por %p137, %p138
      %p141 = scmp.ne.s32.totalorder %s126, %s140
      %p142 = scmp.eq.s32.totalorder %s32, 0
      %p143 = por %p141, %p142
      %s145 = sadd.s32 %s144, 1
      %p148 = scmp.eq.s32.totalorder %s26, 1
      %p149 = scmp.ne.s32.totalorder %s144, %s146
      %p150 = scmp.eq.s32.totalorder %s26, 0
      %p151 = por %p149, %p150
      %p152 = scmp.ne.s32.totalorder %s144, %s146
      %p153 = scmp.eq.s32.totalorder %s31, 1
      %p154 = por %p152, %p153
      %p155 = scmp.ne.s32.totalorder %s146, %s147
      %p156 = scmp.eq.s32.totalorder %s31, 0
      %p157 = por %p155, %p156
      %p158 = scmp.ne.s32.totalorder %s146, %s147
      %p159 = scmp.eq.s32.totalorder %s32, 1
      %p160 = por %p158, %p159
      %p162 = scmp.ne.s32.totalorder %s147, %s161
      %p163 = scmp.eq.s32.totalorder %s32, 0
      %p164 = por %p162, %p163
      %s166 = sadd.s32 %s165, 1
      %p169 = scmp.eq.s32.totalorder %s26, 1
      %p170 = scmp.ne.s32.totalorder %s165, %s167
      %p171 = scmp.eq.s32.totalorder %s26, 0
      %p172 = por %p170, %p171
      %p173 = scmp.ne.s32.totalorder %s165, %s167
      %p174 = scmp.eq.s32.totalorder %s31, 1
      %p175 = por %p173, %p174
      %p176 = scmp.ne.s32.totalorder %s167, %s168
      %p177 = scmp.eq.s32.totalorder %s31, 0
      %p178 = por %p176, %p177
      %p179 = scmp.ne.s32.totalorder %s167, %s168
      %p180 = scmp.eq.s32.totalorder %s32, 1
      %p181 = por %p179, %p180
      %p183 = scmp.ne.s32.totalorder %s168, %s182
      %p184 = scmp.eq.s32.totalorder %s32, 0
      %p185 = por %p183, %p184
      %s187 = sadd.s32 %s186, 1
      %p190 = scmp.eq.s32.totalorder %s26, 1
      %p191 = scmp.ne.s32.totalorder %s186, %s188
      %p192 = scmp.eq.s32.totalorder %s26, 0
      %p193 = por %p191, %p192
      %p194 = scmp.ne.s32.totalorder %s186, %s188
      %p195 = scmp.eq.s32.totalorder %s31, 1
      %p196 = por %p194, %p195
      %p197 = scmp.ne.s32.totalorder %s188, %s189
      %p198 = scmp.eq.s32.totalorder %s31, 0
      %p199 = por %p197, %p198
      %p200 = scmp.ne.s32.totalorder %s188, %s189
      %p201 = scmp.eq.s32.totalorder %s32, 1
      %p202 = por %p200, %p201
      %p204 = scmp.ne.s32.totalorder %s189, %s203
      %p205 = scmp.eq.s32.totalorder %s32, 0
      %p206 = por %p204, %p205
      %s208 = sadd.s32 %s207, 1
      %p211 = scmp.eq.s32.totalorder %s26, 1
      %p212 = scmp.ne.s32.totalorder %s207, %s209
      %p213 = scmp.eq.s32.totalorder %s26, 0
      %p214 = por %p212, %p213
      %p215 = scmp.ne.s32.totalorder %s207, %s209
      %p216 = scmp.eq.s32.totalorder %s31, 1
      %p217 = por %p215, %p216
      %p218 = scmp.ne.s32.totalorder %s209, %s210
      %p219 = scmp.eq.s32.totalorder %s31, 0
      %p220 = por %p218, %p219
      %p221 = scmp.ne.s32.totalorder %s209, %s210
      %p222 = scmp.eq.s32.totalorder %s32, 1
      %p223 = por %p221, %p222
      %p225 = scmp.ne.s32.totalorder %s210, %s224
      %p226 = scmp.eq.s32.totalorder %s32, 0
      %p227 = por %p225, %p226
      %s229 = sadd.s32 %s228, 1
      %p232 = scmp.eq.s32.totalorder %s26, 1
      %p233 = scmp.ne.s32.totalorder %s228, %s230
      %p234 = scmp.eq.s32.totalorder %s26, 0
      %p235 = por %p233, %p234
      %p236 = scmp.ne.s32.totalorder %s228, %s230
      %p237 = scmp.eq.s32.totalorder %s31, 1
      %p238 = por %p236, %p237
      %p239 = scmp.ne.s32.totalorder %s230, %s231
      %p240 = scmp.eq.s32.totalorder %s31, 0
      %p241 = por %p239, %p240
      %p242 = scmp.ne.s32.totalorder %s230, %s231
      %p243 = scmp.eq.s32.totalorder %s32, 1
      %p244 = por %p242, %p243
      %p246 = scmp.ne.s32.totalorder %s231, %s245
      %p247 = scmp.eq.s32.totalorder %s32, 0
      %p248 = por %p246, %p247
      %s250 = sadd.s32 %s249, 1
      %p253 = scmp.eq.s32.totalorder %s26, 1
      %p254 = scmp.ne.s32.totalorder %s249, %s251
      %p255 = scmp.eq.s32.totalorder %s26, 0
      %p256 = por %p254, %p255
      %p257 = scmp.ne.s32.totalorder %s249, %s251
      %p258 = scmp.eq.s32.totalorder %s31, 1
      %p259 = por %p257, %p258
      %p260 = scmp.ne.s32.totalorder %s251, %s252
      %p261 = scmp.eq.s32.totalorder %s31, 0
      %p262 = por %p260, %p261
      %p263 = scmp.ne.s32.totalorder %s251, %s252
      %p264 = scmp.eq.s32.totalorder %s32, 1
      %p265 = por %p263, %p264
      %p267 = scmp.ne.s32.totalorder %s252, %s266
      %p268 = scmp.eq.s32.totalorder %s32, 0
      %p269 = por %p267, %p268
      %s271 = sadd.s32 %s270, 1
      %p274 = scmp.eq.s32.totalorder %s26, 1
      %p275 = scmp.ne.s32.totalorder %s270, %s272
      %p276 = scmp.eq.s32.totalorder %s26, 0
      %p277 = por %p275, %p276
      %p278 = scmp.ne.s32.totalorder %s270, %s272
      %p279 = scmp.eq.s32.totalorder %s31, 1
      %p280 = por %p278, %p279
      %p281 = scmp.ne.s32.totalorder %s272, %s273
      %p282 = scmp.eq.s32.totalorder %s31, 0
      %p283 = por %p281, %p282
      %p284 = scmp.ne.s32.totalorder %s272, %s273
      %p285 = scmp.eq.s32.totalorder %s32, 1
      %p286 = por %p284, %p285
      %p288 = scmp.ne.s32.totalorder %s273, %s287
      %p289 = scmp.eq.s32.totalorder %s32, 0
      %p290 = por %p288, %p289
      %s292 = sadd.s32 %s291, 1
      %p295 = scmp.eq.s32.totalorder %s26, 1
      %p296 = scmp.ne.s32.totalorder %s291, %s293
      %p297 = scmp.eq.s32.totalorder %s26, 0
      %p298 = por %p296, %p297
      %p299 = scmp.ne.s32.totalorder %s291, %s293
      %p300 = scmp.eq.s32.totalorder %s31, 1
      %p301 = por %p299, %p300
      %p302 = scmp.ne.s32.totalorder %s293, %s294
      %p303 = scmp.eq.s32.totalorder %s31, 0
      %p304 = por %p302, %p303
      %p305 = scmp.ne.s32.totalorder %s293, %s294
      %p306 = scmp.eq.s32.totalorder %s32, 1
      %p307 = por %p305, %p306
      %p309 = scmp.ne.s32.totalorder %s294, %s308
      %p310 = scmp.eq.s32.totalorder %s32, 0
      %p311 = por %p309, %p310
      %s313 = sadd.s32 %s312, 1
      %p316 = scmp.eq.s32.totalorder %s26, 1
      %p317 = scmp.ne.s32.totalorder %s312, %s314
      %p318 = scmp.eq.s32.totalorder %s26, 0
      %p319 = por %p317, %p318
      %p320 = scmp.ne.s32.totalorder %s312, %s314
      %p321 = scmp.eq.s32.totalorder %s31, 1
      %p322 = por %p320, %p321
      %p323 = scmp.ne.s32.totalorder %s314, %s315
      %p324 = scmp.eq.s32.totalorder %s31, 0
      %p325 = por %p323, %p324
      %p326 = scmp.ne.s32.totalorder %s314, %s315
      %p327 = scmp.eq.s32.totalorder %s32, 1
      %p328 = por %p326, %p327
      %p330 = scmp.ne.s32.totalorder %s315, %s329
      %p331 = scmp.eq.s32.totalorder %s32, 0
      %p332 = por %p330, %p331
      %s334 = sadd.s32 %s333, 1
      %p337 = scmp.eq.s32.totalorder %s26, 1
      %p338 = scmp.ne.s32.totalorder %s333, %s335
      %p339 = scmp.eq.s32.totalorder %s26, 0
      %p340 = por %p338, %p339
      %p341 = scmp.ne.s32.totalorder %s333, %s335
      %p342 = scmp.eq.s32.totalorder %s31, 1
      %p343 = por %p341, %p342
      %p344 = scmp.ne.s32.totalorder %s335, %s336
      %p345 = scmp.eq.s32.totalorder %s31, 0
      %p346 = por %p344, %p345
      %p347 = scmp.ne.s32.totalorder %s335, %s336
      %p348 = scmp.eq.s32.totalorder %s32, 1
      %p349 = por %p347, %p348
      %p351 = scmp.ne.s32.totalorder %s336, %s350
      %p352 = scmp.eq.s32.totalorder %s32, 0
      %p353 = por %p351, %p352
      %s354 = ssub.s32 %s26, %s33
      %p355 = scmp.eq.s32.totalorder %s354, 0
      %s357 = sadd.s32 %s356, 1
      %s358 = scalar_select %p355, %s356, %s357
      %p361 = pneg %p355
      %p362 = scmp.eq.s32.totalorder %s26, 1
      %p363 = por %p361, %p362
      %p364 = scmp.ne.s32.totalorder %s356, %s359
      %p365 = scmp.eq.s32.totalorder %s26, 0
      %p366 = por %p364, %p365
      %p367 = scmp.ne.s32.totalorder %s356, %s359
      %p368 = scmp.eq.s32.totalorder %s31, 1
      %p369 = por %p367, %p368
      %p370 = scmp.ne.s32.totalorder %s359, %s360
      %p371 = scmp.eq.s32.totalorder %s31, 0
      %p372 = por %p370, %p371
      %p373 = scmp.ne.s32.totalorder %s359, %s360
      %p374 = scmp.eq.s32.totalorder %s32, 1
      %p375 = por %p373, %p374
      %p377 = scmp.ne.s32.totalorder %s360, %s376
      %p378 = scmp.eq.s32.totalorder %s32, 0
      %p379 = por %p377, %p378
      %s380 = ssub.s32 %s26, %s33
      %p381 = scmp.eq.s32.totalorder %s380, 0
      %s383 = sadd.s32 %s382, 1
      %s384 = scalar_select %p381, %s382, %s383
      %p387 = pneg %p381
      %p388 = scmp.eq.s32.totalorder %s26, 1
      %p389 = por %p387, %p388
      %p390 = scmp.ne.s32.totalorder %s382, %s385
      %p391 = scmp.eq.s32.totalorder %s26, 0
      %p392 = por %p390, %p391
      %p393 = scmp.ne.s32.totalorder %s382, %s385
      %p394 = scmp.eq.s32.totalorder %s31, 1
      %p395 = por %p393, %p394
      %p396 = scmp.ne.s32.totalorder %s385, %s386
      %p397 = scmp.eq.s32.totalorder %s31, 0
      %p398 = por %p396, %p397
      %p399 = scmp.ne.s32.totalorder %s385, %s386
      %p400 = scmp.eq.s32.totalorder %s32, 1
      %p401 = por %p399, %p400
      %p403 = scmp.ne.s32.totalorder %s386, %s402
      %p404 = scmp.eq.s32.totalorder %s32, 0
      %p405 = por %p403, %p404
      %s406 = ssub.s32 %s26, %s33
      %p407 = scmp.eq.s32.totalorder %s406, 0
      %s409 = sadd.s32 %s408, 1
      %s410 = scalar_select %p407, %s408, %s409
      %p413 = pneg %p407
      %p414 = scmp.eq.s32.totalorder %s26, 1
      %p415 = por %p413, %p414
      %p416 = scmp.ne.s32.totalorder %s408, %s411
      %p417 = scmp.eq.s32.totalorder %s26, 0
      %p418 = por %p416, %p417
      %p419 = scmp.ne.s32.totalorder %s408, %s411
      %p420 = scmp.eq.s32.totalorder %s31, 1
      %p421 = por %p419, %p420
      %p422 = scmp.ne.s32.totalorder %s411, %s412
      %p423 = scmp.eq.s32.totalorder %s31, 0
      %p424 = por %p422, %p423
      %p425 = scmp.ne.s32.totalorder %s411, %s412
      %p426 = scmp.eq.s32.totalorder %s32, 1
      %p427 = por %p425, %p426
      %p429 = scmp.ne.s32.totalorder %s412, %s428
      %p430 = scmp.eq.s32.totalorder %s32, 0
      %p431 = por %p429, %p430
      %p432 = scmp.le.s32.totalorder 1, %s26
      %p433 = scmp.lt.s32.totalorder %s26, 3
      %p434 = pnand %p432, %p433
      %p435 = pneg %p434
      // Predicated region
      $region9: #{tpu_custom_call.1} parent=5 // pred_check
        _
      $region10: #{tpu_custom_call.1} parent=5 // pred_check_branch
        %437 = sbr.rel (%p434) target = $region12
      $region11: #{tpu_custom_call.1} parent=5 // pred_region
        %s438 = ssub.s32 %s26, 1
        // Predicated region
        $region13: #{tpu_custom_call.1} parent=11 // pred_check
          %p439 = pneg %p73
        $region14: #{tpu_custom_call.1} parent=11 // pred_check_branch
          %441 = sbr.rel (%p439) target = $region16
        $region15: #{tpu_custom_call.1} parent=11 // pred_region
          _
        $region16: #{tpu_custom_call.1} parent=11 // pred_fallthru
          _
        // Predicated region
        $region17: #{tpu_custom_call.1} parent=11 // pred_check
          %p442 = pneg %p94
        $region18: #{tpu_custom_call.1} parent=11 // pred_check_branch
          %444 = sbr.rel (%p442) target = $region20
        $region19: #{tpu_custom_call.1} parent=11 // pred_region
          _
        $region20: #{tpu_custom_call.1} parent=11 // pred_fallthru
          _
        // Predicated region
        $region21: #{tpu_custom_call.1} parent=11 // pred_check
          %p445 = pneg %p115
        $region22: #{tpu_custom_call.1} parent=11 // pred_check_branch
          %447 = sbr.rel (%p445) target = $region24
        $region23: #{tpu_custom_call.1} parent=11 // pred_region
          %s449 = ssub.s32 3072, 3072
          %450 = vsyncadd [#allocation3], %s449
          %s451 = sshll.u32 [#allocation2], 4
          %s452 = int_to_ptr.vmem [resolvable:$true] %s451
          %457 = dma.hbm_to_vmem [thread:$0]  %s3, 3072, %s452, [#allocation3], 192, 192, 12
        $region24: #{tpu_custom_call.1} parent=11 // pred_fallthru
          _
        // Predicated region
        $region25: #{tpu_custom_call.1} parent=11 // pred_check
          %p458 = pneg %p136
        $region26: #{tpu_custom_call.1} parent=11 // pred_check_branch
          %460 = sbr.rel (%p458) target = $region28
        $region27: #{tpu_custom_call.1} parent=11 // pred_region
          _
        $region28: #{tpu_custom_call.1} parent=11 // pred_fallthru
          _
        // Predicated region
        $region29: #{tpu_custom_call.1} parent=11 // pred_check
          %p461 = pneg %p157
        $region30: #{tpu_custom_call.1} parent=11 // pred_check_branch
          %463 = sbr.rel (%p461) target = $region32
        $region31: #{tpu_custom_call.1} parent=11 // pred_region
          _
        $region32: #{tpu_custom_call.1} parent=11 // pred_fallthru
          _
        // Predicated region
        $region33: #{tpu_custom_call.1} parent=11 // pred_check
          %p464 = pneg %p178
        $region34: #{tpu_custom_call.1} parent=11 // pred_check_branch
          %466 = sbr.rel (%p464) target = $region36
        $region35: #{tpu_custom_call.1} parent=11 // pred_region
          _
        $region36: #{tpu_custom_call.1} parent=11 // pred_fallthru
          _
        // Predicated region
        $region37: #{tpu_custom_call.1} parent=11 // pred_check
          %p467 = pneg %p199
        $region38: #{tpu_custom_call.1} parent=11 // pred_check_branch
          %469 = sbr.rel (%p467) target = $region40
        $region39: #{tpu_custom_call.1} parent=11 // pred_region
          _
        $region40: #{tpu_custom_call.1} parent=11 // pred_fallthru
          _
        // Predicated region
        $region41: #{tpu_custom_call.1} parent=11 // pred_check
          %p470 = pneg %p220
        $region42: #{tpu_custom_call.1} parent=11 // pred_check_branch
          %472 = sbr.rel (%p470) target = $region44
        $region43: #{tpu_custom_call.1} parent=11 // pred_region
          _
        $region44: #{tpu_custom_call.1} parent=11 // pred_fallthru
          _
        // Predicated region
        $region45: #{tpu_custom_call.1} parent=11 // pred_check
          %p473 = pneg %p241
        $region46: #{tpu_custom_call.1} parent=11 // pred_check_branch
          %475 = sbr.rel (%p473) target = $region48
        $region47: #{tpu_custom_call.1} parent=11 // pred_region
          _
        $region48: #{tpu_custom_call.1} parent=11 // pred_fallthru
          _
        // Predicated region
        $region49: #{tpu_custom_call.1} parent=11 // pred_check
          %p476 = pneg %p262
        $region50: #{tpu_custom_call.1} parent=11 // pred_check_branch
          %478 = sbr.rel (%p476) target = $region52
        $region51: #{tpu_custom_call.1} parent=11 // pred_region
          %s480 = ssub.s32 4096, 4096
          %481 = vsyncadd [#allocation5], %s480
          %s482 = sshll.u32 [#allocation4], 4
          %s483 = int_to_ptr.vmem [resolvable:$true] %s482
          %488 = dma.hbm_to_vmem [thread:$0]  %s10, 4096, %s483, [#allocation5], 256, 256, 16
        $region52: #{tpu_custom_call.1} parent=11 // pred_fallthru
          _
        // Predicated region
        $region53: #{tpu_custom_call.1} parent=11 // pred_check
          %p489 = pneg %p283
        $region54: #{tpu_custom_call.1} parent=11 // pred_check_branch
          %491 = sbr.rel (%p489) target = $region56
        $region55: #{tpu_custom_call.1} parent=11 // pred_region
          _
        $region56: #{tpu_custom_call.1} parent=11 // pred_fallthru
          _
        // Predicated region
        $region57: #{tpu_custom_call.1} parent=11 // pred_check
          %p492 = pneg %p304
        $region58: #{tpu_custom_call.1} parent=11 // pred_check_branch
          %494 = sbr.rel (%p492) target = $region60
        $region59: #{tpu_custom_call.1} parent=11 // pred_region
          %s496 = ssub.s32 4096, 4096
          %497 = vsyncadd [#allocation5], %s496
          %s498 = sshll.u32 [#allocation6], 4
          %s499 = int_to_ptr.vmem [resolvable:$true] %s498
          %504 = dma.hbm_to_vmem [thread:$0]  %s12, 4096, %s499, [#allocation5], 64, 64, 4
        $region60: #{tpu_custom_call.1} parent=11 // pred_fallthru
          _
        // Predicated region
        $region61: #{tpu_custom_call.1} parent=11 // pred_check
          %p505 = pneg %p325
        $region62: #{tpu_custom_call.1} parent=11 // pred_check_branch
          %507 = sbr.rel (%p505) target = $region64
        $region63: #{tpu_custom_call.1} parent=11 // pred_region
          _
        $region64: #{tpu_custom_call.1} parent=11 // pred_fallthru
          _
        // Predicated region
        $region65: #{tpu_custom_call.1} parent=11 // pred_check
          %p508 = pneg %p346
        $region66: #{tpu_custom_call.1} parent=11 // pred_check_branch
          %510 = sbr.rel (%p508) target = $region68
        $region67: #{tpu_custom_call.1} parent=11 // pred_region
          _
        $region68: #{tpu_custom_call.1} parent=11 // pred_fallthru
          _
      $region12: #{tpu_custom_call.1} parent=5 // pred_fallthru
        _
      %p511 = scmp.lt.s32.totalorder %s26, 2
      // Predicated region
      $region69: #{tpu_custom_call.1} parent=5 // pred_check
        %p512 = pneg %p511
      $region70: #{tpu_custom_call.1} parent=5 // pred_check_branch
        %514 = sbr.rel (%p512) target = $region72
      $region71: #{tpu_custom_call.1} parent=5 // pred_region
        // Predicated region
        $region73: #{tpu_custom_call.1} parent=71 // pred_check
          %p515 = pneg %p46
        $region74: #{tpu_custom_call.1} parent=71 // pred_check_branch
          %517 = sbr.rel (%p515) target = $region76
        $region75: #{tpu_custom_call.1} parent=71 // pred_region
          %p518 = scmp.lt.s32.totalorder %s26, 1
          %s519 = scalar_select %p518, %s26, 1
          %s520 = smul.addr %s519, 9
          %s521 = smul.addr %s520, 4
          %s522 = scalar_lea.vmem %s0, %s521
        $region76: #{tpu_custom_call.1} parent=71 // pred_fallthru
          _
      $region72: #{tpu_custom_call.1} parent=5 // pred_fallthru
        _
      %p523 = scmp.le.s32.totalorder 1, %s26
      %p524 = scmp.lt.s32.totalorder %s26, 3
      %p525 = pnand %p523, %p524
      %p526 = pneg %p525
      // Predicated region
      $region77: #{tpu_custom_call.1} parent=5 // pred_check
        _
      $region78: #{tpu_custom_call.1} parent=5 // pred_check_branch
        %528 = sbr.rel (%p525) target = $region80
      $region79: #{tpu_custom_call.1} parent=5 // pred_region
        %s529 = ssub.s32 %s26, 1
        // Predicated region
        $region81: #{tpu_custom_call.1} parent=79 // pred_check
          %p530 = pneg %p115
        $region82: #{tpu_custom_call.1} parent=79 // pred_check_branch
          %532 = sbr.rel (%p530) target = $region84
        $region83: #{tpu_custom_call.1} parent=79 // pred_region
          %533 = dma.done [#allocation3], 3072
        $region84: #{tpu_custom_call.1} parent=79 // pred_fallthru
          _
        // Predicated region
        $region85: #{tpu_custom_call.1} parent=79 // pred_check
          %p534 = pneg %p262
        $region86: #{tpu_custom_call.1} parent=79 // pred_check_branch
          %536 = sbr.rel (%p534) target = $region88
        $region87: #{tpu_custom_call.1} parent=79 // pred_region
          %537 = dma.done [#allocation5], 4096
        $region88: #{tpu_custom_call.1} parent=79 // pred_fallthru
          _
        // Predicated region
        $region89: #{tpu_custom_call.1} parent=79 // pred_check
          %p538 = pneg %p304
        $region90: #{tpu_custom_call.1} parent=79 // pred_check_branch
          %540 = sbr.rel (%p538) target = $region92
        $region91: #{tpu_custom_call.1} parent=79 // pred_region
          %541 = dma.done [#allocation5], 4096
        $region92: #{tpu_custom_call.1} parent=79 // pred_fallthru
          _
        %p542 = scmp.lt.s32.totalorder %s31, 1
        %s543 = scalar_select %p542, %s31, 1
        %s544 = smul.addr %s543, 9
        %s545 = smul.addr %s544, 4
        %s546 = scalar_lea.vmem %s0, %s545
        %p547 = pneg %p52
        %p548 = pneg %p49
        %p549 = pneg %p73
        %p550 = pneg %p70
        %p551 = pneg %p94
        %p552 = pneg %p91
        %p553 = pneg %p115
        %p554 = pneg %p112
        %p555 = pneg %p136
        %p556 = pneg %p133
        %p557 = pneg %p157
        %p558 = pneg %p154
        %p559 = pneg %p178
        %p560 = pneg %p175
        %p561 = pneg %p199
        %p562 = pneg %p196
        %p563 = pneg %p220
        %p564 = pneg %p217
        %p565 = pneg %p241
        %p566 = pneg %p238
        %p567 = pneg %p262
        %p568 = pneg %p259
        %p569 = pneg %p283
        %p570 = pneg %p280
        %p571 = pneg %p304
        %p572 = pneg %p301
        %p573 = pneg %p325
        %p574 = pneg %p322
        %p575 = pneg %p346
        %p576 = pneg %p343
        %p577 = pneg %p372
        %p578 = pneg %p369
        %p579 = scmp.lt.s32.totalorder %s31, 1
        %s580 = scalar_select %p579, %s31, 1
        %s581 = smul.addr %s580, 9
        %s582 = smul.addr %s581, 4
        %s583 = scalar_lea.vmem %s15, %s582
        %p584 = pneg %p398
        %p585 = pneg %p395
        %p586 = scmp.lt.s32.totalorder %s31, 1
        %s587 = scalar_select %p586, %s31, 1
        %s588 = smul.addr %s587, 9
        %s589 = smul.addr %s588, 4
        %s590 = scalar_lea.vmem %s16, %s589
        %p591 = pneg %p424
        %p592 = pneg %p421
        %p593 = scmp.lt.s32.totalorder %s31, 1
        %s594 = scalar_select %p593, %s31, 1
        %s595 = smul.addr %s594, 9
        %s596 = smul.addr %s595, 4
        %s597 = scalar_lea.vmem %s17, %s596
        %p598 = scmp.lt.s32.totalorder %s31, 1
        %s599 = scalar_select %p598, %s31, 1
        %s600 = smul.addr %s599, 9
        %s601 = smul.addr %s600, 4
        %s602 = scalar_lea.vmem %s0, %s601
        %p603 = scmp.lt.s32.totalorder %s31, 1
        %s604 = scalar_select %p603, %s31, 1
        %s605 = smul.addr %s604, 9
        %s606 = smul.addr %s605, 4
        %s607 = scalar_lea.vmem %s15, %s606
        %p608 = scmp.lt.s32.totalorder %s31, 1
        %s609 = scalar_select %p608, %s31, 1
        %s610 = smul.addr %s609, 9
        %s611 = smul.addr %s610, 4
        %s612 = scalar_lea.vmem %s16, %s611
        %p613 = scmp.lt.s32.totalorder %s31, 1
        %s614 = scalar_select %p613, %s31, 1
        %s615 = smul.addr %s614, 9
        %s616 = smul.addr %s615, 4
        %s617 = scalar_lea.vmem %s17, %s616
        %v619 = vld [vmem:[%s602] sm:$0xf]
        %v620 = vld [vmem:[%s602 + $0x4] sm:$0xf]
        %v621 = vld [vmem:[%s602 + $0x8] sm:$0xf]
        %v622 = vld [vmem:[%s602 + $0xc] sm:$0xf]
        %v623 = vld [vmem:[%s602 + $0x10] sm:$0xf]
        %v624 = vld [vmem:[%s602 + $0x14] sm:$0xf]
        %v625 = vld [vmem:[%s602 + $0x18] sm:$0xf]
        %v626 = vld [vmem:[%s602 + $0x1c] sm:$0xf]
        %v627 = vld [vmem:[%s602 + $0x20] sm:$0x1]
        %v628 = vunpack.c.l.bf16 %v619
        %v629 = vunpack.c.l.bf16 %v620
        %v630 = vunpack.c.l.bf16 %v621
        %v631 = vunpack.c.l.bf16 %v622
        %v632 = vunpack.c.l.bf16 %v623
        %v633 = vunpack.c.l.bf16 %v624
        %v634 = vunpack.c.l.bf16 %v625
        %v635 = vunpack.c.l.bf16 %v626
        %v636 = vunpack.c.l.bf16 %v627
        %v637 = vld [vmem:[%s1] sm:$0x1]
        %v638 = vunpack.c.l.bf16 %v637
        %v639 = vld [vmem:[%s2] sm:$0x1]
        %v640 = vunpack.c.l.bf16 %v639
        %641 = vadd.xlane.f32.xlu0 %v628
        %v642 = vpop.xlane.xlu0 %641
        %643 = vadd.xlane.f32.xlu0 %v629
        %v644 = vpop.xlane.xlu0 %643
        %645 = vadd.xlane.f32.xlu0 %v630
        %v646 = vpop.xlane.xlu0 %645
        %647 = vadd.xlane.f32.xlu0 %v631
        %v648 = vpop.xlane.xlu0 %647
        %649 = vadd.xlane.f32.xlu0 %v632
        %v650 = vpop.xlane.xlu0 %649
        %651 = vadd.xlane.f32.xlu0 %v633
        %v652 = vpop.xlane.xlu0 %651
        %653 = vadd.xlane.f32.xlu0 %v634
        %v654 = vpop.xlane.xlu0 %653
        %655 = vadd.xlane.f32.xlu0 %v635
        %v656 = vpop.xlane.xlu0 %655
        %vm657 = vcmask 1040384
        %v658 = vsel %vm657, %v636, 0.0
        %659 = vadd.xlane.f32.xlu0 %v658
        %v660 = vpop.xlane.xlu0 %659
        %v661 = vrcp.pop 128.0
        %v662 = vmul.f32 %v642, %v661
        %v663 = vmul.f32 %v644, %v661
        %v664 = vmul.f32 %v646, %v661
        %v665 = vmul.f32 %v648, %v661
        %v666 = vmul.f32 %v650, %v661
        %v667 = vmul.f32 %v652, %v661
        %v668 = vmul.f32 %v654, %v661
        %v669 = vmul.f32 %v656, %v661
        %v670 = vmul.f32 %v660, %v661
        %v671 = vsub.f32 %v628, %v662
        %v672 = vsub.f32 %v629, %v663
        %v673 = vsub.f32 %v630, %v664
        %v674 = vsub.f32 %v631, %v665
        %v675 = vsub.f32 %v632, %v666
        %v676 = vsub.f32 %v633, %v667
        %v677 = vsub.f32 %v634, %v668
        %v678 = vsub.f32 %v635, %v669
        %v679 = vsub.f32 %v636, %v670
        %v680 = vmul.f32 %v671, %v671
        %v681 = vmul.f32 %v672, %v672
        %v682 = vmul.f32 %v673, %v673
        %v683 = vmul.f32 %v674, %v674
        %v684 = vmul.f32 %v675, %v675
        %v685 = vmul.f32 %v676, %v676
        %v686 = vmul.f32 %v677, %v677
        %v687 = vmul.f32 %v678, %v678
        %v688 = vmul.f32 %v679, %v679
        %689 = vadd.xlane.f32.xlu0 %v680
        %v690 = vpop.xlane.xlu0 %689
        %691 = vadd.xlane.f32.xlu0 %v681
        %v692 = vpop.xlane.xlu0 %691
        %693 = vadd.xlane.f32.xlu0 %v682
        %v694 = vpop.xlane.xlu0 %693
        %695 = vadd.xlane.f32.xlu0 %v683
        %v696 = vpop.xlane.xlu0 %695
        %697 = vadd.xlane.f32.xlu0 %v684
        %v698 = vpop.xlane.xlu0 %697
        %699 = vadd.xlane.f32.xlu0 %v685
        %v700 = vpop.xlane.xlu0 %699
        %701 = vadd.xlane.f32.xlu0 %v686
        %v702 = vpop.xlane.xlu0 %701
        %703 = vadd.xlane.f32.xlu0 %v687
        %v704 = vpop.xlane.xlu0 %703
        %v705 = vsel %vm657, %v688, 0.0
        %706 = vadd.xlane.f32.xlu0 %v705
        %v707 = vpop.xlane.xlu0 %706
        %v708 = vmul.f32 %v690, %v661
        %v709 = vmul.f32 %v692, %v661
        %v710 = vmul.f32 %v694, %v661
        %v711 = vmul.f32 %v696, %v661
        %v712 = vmul.f32 %v698, %v661
        %v713 = vmul.f32 %v700, %v661
        %v714 = vmul.f32 %v702, %v661
        %v715 = vmul.f32 %v704, %v661
        %v716 = vmul.f32 %v707, %v661
        %v717 = vadd.f32 %v708, 1e-05
        %v718 = vadd.f32 %v709, 1e-05
        %v719 = vadd.f32 %v710, 1e-05
        %v720 = vadd.f32 %v711, 1e-05
        %v721 = vadd.f32 %v712, 1e-05
        %v722 = vadd.f32 %v713, 1e-05
        %v723 = vadd.f32 %v714, 1e-05
        %v724 = vadd.f32 %v715, 1e-05
        %v725 = vadd.f32 %v716, 1e-05
        %v726 = vrsqrt.pop %v717
        %v727 = vrsqrt.pop %v718
        %v728 = vrsqrt.pop %v719
        %v729 = vrsqrt.pop %v720
        %v730 = vrsqrt.pop %v721
        %v731 = vrsqrt.pop %v722
        %v732 = vrsqrt.pop %v723
        %v733 = vrsqrt.pop %v724
        %v734 = vrsqrt.pop %v725
        %v735 = vmul.f32 %v671, %v726
        %v736 = vmul.f32 %v672, %v727
        %v737 = vmul.f32 %v673, %v728
        %v738 = vmul.f32 %v674, %v729
        %v739 = vmul.f32 %v675, %v730
        %v740 = vmul.f32 %v676, %v731
        %v741 = vmul.f32 %v677, %v732
        %v742 = vmul.f32 %v678, %v733
        %v743 = vmul.f32 %v679, %v734
        %v744 = vlaneseq
        %v745 = vshrl.u32 %v744, 7
        %v746 = vsub.s32 0, %v745
        %v747 = vrot.slane %v638, %v746
        %v748 = vmul.f32 %v735, %v747
        %v749 = vmul.f32 %v736, %v747
        %v750 = vmul.f32 %v737, %v747
        %v751 = vmul.f32 %v738, %v747
        %v752 = vmul.f32 %v739, %v747
        %v753 = vmul.f32 %v740, %v747
        %v754 = vmul.f32 %v741, %v747
        %v755 = vmul.f32 %v742, %v747
        %v756 = vmul.f32 %v743, %v747
        %v757 = vlaneseq
        %v758 = vshrl.u32 %v757, 7
        %v759 = vsub.s32 0, %v758
        %v760 = vrot.slane %v640, %v759
        %v761 = vadd.f32 %v748, %v760
        %v762 = vadd.f32 %v749, %v760
        %v763 = vadd.f32 %v750, %v760
        %v764 = vadd.f32 %v751, %v760
        %v765 = vadd.f32 %v752, %v760
        %v766 = vadd.f32 %v753, %v760
        %v767 = vadd.f32 %v754, %v760
        %v768 = vadd.f32 %v755, %v760
        %v769 = vadd.f32 %v756, %v760
        %v770 = vpack.c.bf16 %v762, %v761
        %v771 = vpack.c.bf16 %v764, %v763
        %v772 = vpack.c.bf16 %v766, %v765
        %v773 = vpack.c.bf16 %v768, %v767
        %v774 = vpack.c.bf16 %v769, %v769
        %v775 = vld [vmem:[#allocation2] sm:$0xff]
        %v776 = vld [vmem:[#allocation2 + $0x8] sm:$0xf]
        %v777 = vld [vmem:[#allocation2 + $0xc] sm:$0xff]
        %v778 = vld [vmem:[#allocation2 + $0x14] sm:$0xf]
        %v779 = vld [vmem:[#allocation2 + $0x18] sm:$0xff]
        %v780 = vld [vmem:[#allocation2 + $0x20] sm:$0xf]
        %v781 = vld [vmem:[#allocation2 + $0x24] sm:$0xff]
        %v782 = vld [vmem:[#allocation2 + $0x2c] sm:$0xf]
        %v783 = vld [vmem:[#allocation2 + $0x30] sm:$0xff]
        %v784 = vld [vmem:[#allocation2 + $0x38] sm:$0xf]
        %v785 = vld [vmem:[#allocation2 + $0x3c] sm:$0xff]
        %v786 = vld [vmem:[#allocation2 + $0x44] sm:$0xf]
        %v787 = vld [vmem:[#allocation2 + $0x48] sm:$0xff]
        %v788 = vld [vmem:[#allocation2 + $0x50] sm:$0xf]
        %v789 = vld [vmem:[#allocation2 + $0x54] sm:$0xff]
        %v790 = vld [vmem:[#allocation2 + $0x5c] sm:$0xf]
        %v791 = vld [vmem:[#allocation2 + $0x60] sm:$0xff]
        %v792 = vld [vmem:[#allocation2 + $0x68] sm:$0xf]
        %v793 = vld [vmem:[#allocation2 + $0x6c] sm:$0xff]
        %v794 = vld [vmem:[#allocation2 + $0x74] sm:$0xf]
        %v795 = vld [vmem:[#allocation2 + $0x78] sm:$0xff]
        %v796 = vld [vmem:[#allocation2 + $0x80] sm:$0xf]
        %v797 = vld [vmem:[#allocation2 + $0x84] sm:$0xff]
        %v798 = vld [vmem:[#allocation2 + $0x8c] sm:$0xf]
        %v799 = vld [vmem:[#allocation2 + $0x90] sm:$0xff]
        %v800 = vld [vmem:[#allocation2 + $0x98] sm:$0xf]
        %v801 = vld [vmem:[#allocation2 + $0x9c] sm:$0xff]
        %v802 = vld [vmem:[#allocation2 + $0xa4] sm:$0xf]
        %v803 = vld [vmem:[#allocation2 + $0xa8] sm:$0xff]
        %v804 = vld [vmem:[#allocation2 + $0xb0] sm:$0xf]
        %v805 = vld [vmem:[#allocation2 + $0xb4] sm:$0xff]
        %v806 = vld [vmem:[#allocation2 + $0xbc] sm:$0xf]
        %v807 = vld [vmem:[%s4] sm:$0x7]
        %v808 = vunpack.c.l.bf16 %v807
        %v810 = vlaneseq
        %v811 = vshrl.u32 %v810, 7
        %v812 = vsub.s32 0, %v811
        %v813 = vrot.slane %v808, %v812
        %v814 = vlaneseq
        %v815 = vshrl.u32 %v814, 7
        %v816 = vsub.s32 2, %v815
        %v817 = vrot.slane %v808, %v816
        %v818 = vlaneseq
        %v819 = vshrl.u32 %v818, 7
        %v820 = vsub.s32 4, %v819
        %v821 = vrot.slane %v808, %v820
        %v825 = vlaneseq
        %v826 = vshrl.u32 %v825, 7
        %v827 = vsub.s32 0, %v826
        %v828 = vrot.slane %v813, %v827
        %v829 = vlaneseq
        %v830 = vshrl.u32 %v829, 7
        %v831 = vsub.s32 0, %v830
        %v832 = vrot.slane %v817, %v831
        %v833 = vlaneseq
        %v834 = vshrl.u32 %v833, 7
        %v835 = vsub.s32 0, %v834
        %v836 = vrot.slane %v821, %v835
        %v869 = vunpack.c.l.b16 %v775
        %v870 = vunpack.c.h.b16 %v775
        %v871 = vunpack.c.l.b16 %v776
        %v872 = vunpack.c.l.b16 %v777
        %v873 = vunpack.c.h.b16 %v777
        %v874 = vunpack.c.l.b16 %v778
        %v875 = vunpack.c.l.b16 %v779
        %v876 = vunpack.c.h.b16 %v779
        %v877 = vunpack.c.l.b16 %v780
        %v878 = vunpack.c.l.b16 %v781
        %v879 = vunpack.c.h.b16 %v781
        %v880 = vunpack.c.l.b16 %v782
        %v881 = vunpack.c.l.b16 %v783
        %v882 = vunpack.c.h.b16 %v783
        %v883 = vunpack.c.l.b16 %v784
        %v884 = vunpack.c.l.b16 %v785
        %v885 = vunpack.c.h.b16 %v785
        %v886 = vunpack.c.l.b16 %v786
        %v887 = vunpack.c.l.b16 %v787
        %v888 = vunpack.c.h.b16 %v787
        %v889 = vunpack.c.l.b16 %v788
        %v890 = vunpack.c.l.b16 %v789
        %v891 = vunpack.c.h.b16 %v789
        %v892 = vunpack.c.l.b16 %v790
        %v893 = vunpack.c.l.b16 %v791
        %v894 = vunpack.c.h.b16 %v791
        %v895 = vunpack.c.l.b16 %v792
        %v896 = vunpack.c.l.b16 %v793
        %v897 = vunpack.c.h.b16 %v793
        %v898 = vunpack.c.l.b16 %v794
        %v899 = vunpack.c.l.b16 %v795
        %v900 = vunpack.c.h.b16 %v795
        %v901 = vunpack.c.l.b16 %v796
        %v902 = vunpack.c.l.b16 %v797
        %v903 = vunpack.c.h.b16 %v797
        %v904 = vunpack.c.l.b16 %v798
        %v905 = vunpack.c.l.b16 %v799
        %v906 = vunpack.c.h.b16 %v799
        %v907 = vunpack.c.l.b16 %v800
        %v908 = vunpack.c.l.b16 %v801
        %v909 = vunpack.c.h.b16 %v801
        %v910 = vunpack.c.l.b16 %v802
        %v911 = vunpack.c.l.b16 %v803
        %v912 = vunpack.c.h.b16 %v803
        %v913 = vunpack.c.l.b16 %v804
        %v914 = vunpack.c.l.b16 %v805
        %v915 = vunpack.c.h.b16 %v805
        %v916 = vunpack.c.l.b16 %v806
        %v917 = vpack.c.b16 %v872, %v869
        %v918 = vpack.c.b16 %v873, %v870
        %v919 = vpack.c.b16 %v874, %v871
        %v920 = vpack.c.b16 %v878, %v875
        %v921 = vpack.c.b16 %v879, %v876
        %v922 = vpack.c.b16 %v880, %v877
        %v923 = vpack.c.b16 %v884, %v881
        %v924 = vpack.c.b16 %v885, %v882
        %v925 = vpack.c.b16 %v886, %v883
        %v926 = vpack.c.b16 %v890, %v887
        %v927 = vpack.c.b16 %v891, %v888
        %v928 = vpack.c.b16 %v892, %v889
        %v929 = vpack.c.b16 %v896, %v893
        %v930 = vpack.c.b16 %v897, %v894
        %v931 = vpack.c.b16 %v898, %v895
        %v932 = vpack.c.b16 %v902, %v899
        %v933 = vpack.c.b16 %v903, %v900
        %v934 = vpack.c.b16 %v904, %v901
        %v935 = vpack.c.b16 %v908, %v905
        %v936 = vpack.c.b16 %v909, %v906
        %v937 = vpack.c.b16 %v910, %v907
        %v938 = vpack.c.b16 %v914, %v911
        %v939 = vpack.c.b16 %v915, %v912
        %v940 = vpack.c.b16 %v916, %v913
        %965 = vmatprep.subr.bf16.mxu0 %v918
        %966 = vmatpush1.bf16.msra.mxu0 %v917
        %967 = vmatprep.subr.bf16.mxu0 %v921
        %968 = vmatpush1.bf16.msra.mxu0 %v920
        %969 = vmatprep.subr.bf16.mxu0 %v924
        %970 = vmatpush1.bf16.msra.mxu0 %v923
        %971 = vmatprep.subr.bf16.mxu0 %v927
        %972 = vmatpush1.bf16.msra.mxu0 %v926
        %973 = vmatprep.subr.bf16.mxu0 %v930
        %974 = vmatpush1.bf16.msra.mxu0 %v929
        %975 = vmatprep.subr.bf16.mxu0 %v933
        %976 = vmatpush1.bf16.msra.mxu0 %v932
        %977 = vmatprep.subr.bf16.mxu0 %v936
        %978 = vmatpush1.bf16.msra.mxu0 %v935
        %979 = vmatprep.subr.bf16.mxu0 %v939
        %980 = vmatpush1.bf16.msra.mxu0 %v938
        %981 = vmatprep.subr.bf16.mxu0 0
        %982 = vmatpush1.bf16.msra.mxu0 0
        %983 = vmatprep.subr.bf16.mxu0 0
        %984 = vmatpush1.bf16.msra.mxu0 0
        %985 = vmatprep.subr.bf16.mxu0 0
        %986 = vmatpush1.bf16.msra.mxu0 0
        %987 = vmatprep.subr.bf16.mxu0 0
        %988 = vmatpush1.bf16.msra.mxu0 0
        %989 = vmatprep.subr.bf16.mxu0 0
        %990 = vmatpush1.bf16.msra.mxu0 0
        %991 = vmatprep.subr.bf16.mxu0 0
        %992 = vmatpush1.bf16.msra.mxu0 0
        %993 = vmatprep.subr.bf16.mxu0 0
        %994 = vmatpush1.bf16.msra.mxu0 0
        %995 = vmatprep.subr.bf16.mxu0 0
        %996 = vmatpush1.bf16.msra.mxu0 0
        %997 = vmatprep.mubr.bf16.mxu0 0
        %998 = vmatmul.mubr.bf16.gmra.mrb[0].mxu0 %v770
        %v999 = vpop.f32.mrb[0].mxu0
        %v1000 = vadd.f32 %v828, %v999
        %v1001 = vpop.f32.mrb[0].mxu0
        %v1002 = vadd.f32 %v832, %v1001
        %v1003 = vpop.f32.mrb[0].mxu0
        %v1004 = vadd.f32 %v828, %v1003
        %v1005 = vpop.f32.mrb[0].mxu0
        %v1006 = vadd.f32 %v832, %v1005
        %1007 = vmatprep.mubr.bf16.mxu0 0
        %1008 = vmatmul.mubr.bf16.gmra.mrb[0].mxu0 %v771
        %v1009 = vpop.f32.mrb[0].mxu0
        %v1010 = vadd.f32 %v828, %v1009
        %v1011 = vpop.f32.mrb[0].mxu0
        %v1012 = vadd.f32 %v832, %v1011
        %v1013 = vpop.f32.mrb[0].mxu0
        %v1014 = vadd.f32 %v828, %v1013
        %v1015 = vpop.f32.mrb[0].mxu0
        %v1016 = vadd.f32 %v832, %v1015
        %1017 = vmatprep.mubr.bf16.mxu0 0
        %1018 = vmatmul.mubr.bf16.gmra.mrb[0].mxu0 %v772
        %v1019 = vpop.f32.mrb[0].mxu0
        %v1020 = vadd.f32 %v828, %v1019
        %v1021 = vpop.f32.mrb[0].mxu0
        %v1022 = vadd.f32 %v832, %v1021
        %v1023 = vpop.f32.mrb[0].mxu0
        %v1024 = vadd.f32 %v828, %v1023
        %v1025 = vpop.f32.mrb[0].mxu0
        %v1026 = vadd.f32 %v832, %v1025
        %1027 = vmatprep.mubr.bf16.mxu0 0
        %1028 = vmatmul.mubr.bf16.gmra.mrb[0].mxu0 %v773
        %v1029 = vpop.f32.mrb[0].mxu0
        %v1030 = vadd.f32 %v828, %v1029
        %v1031 = vpop.f32.mrb[0].mxu0
        %v1032 = vadd.f32 %v832, %v1031
        %v1033 = vpop.f32.mrb[0].mxu0
        %v1034 = vadd.f32 %v828, %v1033
        %v1035 = vpop.f32.mrb[0].mxu0
        %v1036 = vadd.f32 %v832, %v1035
        %1037 = vmatprep.mubr.bf16.mxu0 0
        %1038 = vmatmul.mubr.bf16.gmra.mrb[0].mxu0 %v774
        %v1039 = vpop.f32.mrb[0].mxu0
        %v1040 = vadd.f32 %v828, %v1039
        %v1041 = vpop.f32.mrb[0].mxu0
        %v1042 = vadd.f32 %v832, %v1041
        %v1043 = vpop.f32.mrb[0].mxu0
        %v1044 = vpop.f32.mrb[0].mxu0
        %1045 = vdwg.mxu0
        %1046 = vmatprep.subr.bf16.mxu0 0
        %1047 = vmatpush1.bf16.msra.mxu0 %v919
        %1048 = vmatprep.subr.bf16.mxu0 0
        %1049 = vmatpush1.bf16.msra.mxu0 %v922
        %1050 = vmatprep.subr.bf16.mxu0 0
        %1051 = vmatpush1.bf16.msra.mxu0 %v925
        %1052 = vmatprep.subr.bf16.mxu0 0
        %1053 = vmatpush1.bf16.msra.mxu0 %v928
        %1054 = vmatprep.subr.bf16.mxu0 0
        %1055 = vmatpush1.bf16.msra.mxu0 %v931
        %1056 = vmatprep.subr.bf16.mxu0 0
        %1057 = vmatpush1.bf16.msra.mxu0 %v934
        %1058 = vmatprep.subr.bf16.mxu0 0
        %1059 = vmatpush1.bf16.msra.mxu0 %v937
        %1060 = vmatprep.subr.bf16.mxu0 0
        %1061 = vmatpush1.bf16.msra.mxu0 %v940
        %1062 = vmatprep.subr.bf16.mxu0 0
        %1063 = vmatpush1.bf16.msra.mxu0 0
        %1064 = vmatprep.subr.bf16.mxu0 0
        %1065 = vmatpush1.bf16.msra.mxu0 0
        %1066 = vmatprep.subr.bf16.mxu0 0
        %1067 = vmatpush1.bf16.msra.mxu0 0
        %1068 = vmatprep.subr.bf16.mxu0 0
        %1069 = vmatpush1.bf16.msra.mxu0 0
        %1070 = vmatprep.subr.bf16.mxu0 0
        %1071 = vmatpush1.bf16.msra.mxu0 0
        %1072 = vmatprep.subr.bf16.mxu0 0
        %1073 = vmatpush1.bf16.msra.mxu0 0
        %1074 = vmatprep.subr.bf16.mxu0 0
        %1075 = vmatpush1.bf16.msra.mxu0 0
        %1076 = vmatprep.subr.bf16.mxu0 0
        %1077 = vmatpush1.bf16.msra.mxu0 0
        %1078 = vmatprep.mubr.bf16.mxu0 0
        %1079 = vmatmul.mubr.bf16.gmra.mrb[0].mxu0 %v770
        %v1080 = vpop.f32.mrb[0].mxu0
        %v1081 = vadd.f32 %v836, %v1080
        %v1082 = vpop.f32.mrb[0].mxu0
        %v1083 = vpop.f32.mrb[0].mxu0
        %v1084 = vadd.f32 %v836, %v1083
        %v1085 = vpop.f32.mrb[0].mxu0
        %1086 = vmatprep.mubr.bf16.mxu0 0
        %1087 = vmatmul.mubr.bf16.gmra.mrb[0].mxu0 %v771
        %v1088 = vpop.f32.mrb[0].mxu0
        %v1089 = vadd.f32 %v836, %v1088
        %v1090 = vpop.f32.mrb[0].mxu0
        %v1091 = vpop.f32.mrb[0].mxu0
        %v1092 = vadd.f32 %v836, %v1091
        %v1093 = vpop.f32.mrb[0].mxu0
        %1094 = vmatprep.mubr.bf16.mxu0 0
        %1095 = vmatmul.mubr.bf16.gmra.mrb[0].mxu0 %v772
        %v1096 = vpop.f32.mrb[0].mxu0
        %v1097 = vadd.f32 %v836, %v1096
        %v1098 = vpop.f32.mrb[0].mxu0
        %v1099 = vpop.f32.mrb[0].mxu0
        %v1100 = vadd.f32 %v836, %v1099
        %v1101 = vpop.f32.mrb[0].mxu0
        %1102 = vmatprep.mubr.bf16.mxu0 0
        %1103 = vmatmul.mubr.bf16.gmra.mrb[0].mxu0 %v773
        %v1104 = vpop.f32.mrb[0].mxu0
        %v1105 = vadd.f32 %v836, %v1104
        %v1106 = vpop.f32.mrb[0].mxu0
        %v1107 = vpop.f32.mrb[0].mxu0
        %v1108 = vadd.f32 %v836, %v1107
        %v1109 = vpop.f32.mrb[0].mxu0
        %1110 = vmatprep.mubr.bf16.mxu0 0
        %1111 = vmatmul.mubr.bf16.gmra.mrb[0].mxu0 %v774
        %v1112 = vpop.f32.mrb[0].mxu0
        %v1113 = vadd.f32 %v836, %v1112
        %v1114 = vpop.f32.mrb[0].mxu0
        %v1115 = vpop.f32.mrb[0].mxu0
        %v1116 = vpop.f32.mrb[0].mxu0
        %1117 = vdwg.mxu0
        %v1118 = vmul.f32 %v1000, 0.17677669
        %v1119 = vmul.f32 %v1004, 0.17677669
        %v1120 = vmul.f32 %v1010, 0.17677669
        %v1121 = vmul.f32 %v1014, 0.17677669
        %v1122 = vmul.f32 %v1020, 0.17677669
        %v1123 = vmul.f32 %v1024, 0.17677669
        %v1124 = vmul.f32 %v1030, 0.17677669
        %v1125 = vmul.f32 %v1034, 0.17677669
        %v1126 = vmul.f32 %v1040, 0.17677669
        %v1127 = vld [vmem:[%s5] sm:$0xf]
        %v1128 = vld [vmem:[%s5 + $0x4] sm:$0xf]
        %v1129 = vld [vmem:[%s5 + $0x8] sm:$0xf]
        %v1130 = vld [vmem:[%s5 + $0xc] sm:$0xf]
        %v1131 = vld [vmem:[%s5 + $0x10] sm:$0xf]
        %v1132 = vld [vmem:[%s5 + $0x14] sm:$0xf]
        %v1133 = vld [vmem:[%s5 + $0x18] sm:$0xf]
        %v1134 = vld [vmem:[%s5 + $0x1c] sm:$0xf]
        %v1135 = vld [vmem:[%s5 + $0x20] sm:$0xf]
        %v1136 = vld [vmem:[%s5 + $0x24] sm:$0xf]
        %v1137 = vld [vmem:[%s5 + $0x28] sm:$0xf]
        %v1138 = vld [vmem:[%s5 + $0x2c] sm:$0xf]
        %v1139 = vld [vmem:[%s5 + $0x30] sm:$0xf]
        %v1140 = vld [vmem:[%s5 + $0x34] sm:$0xf]
        %v1141 = vld [vmem:[%s5 + $0x38] sm:$0xf]
        %v1142 = vld [vmem:[%s5 + $0x3c] sm:$0xf]
        %v1143 = vpack.c.bf16 %v1119, %v1118
        %v1144 = vpack.c.bf16 %v1121, %v1120
        %v1145 = vpack.c.bf16 %v1123, %v1122
        %v1146 = vpack.c.bf16 %v1125, %v1124
        %v1147 = vpack.c.bf16 %v1126, %v1126
        %v1148 = vpack.c.bf16 %v1006, %v1002
        %v1149 = vpack.c.bf16 %v1016, %v1012
        %v1150 = vpack.c.bf16 %v1026, %v1022
        %v1151 = vpack.c.bf16 %v1036, %v1032
        %v1152 = vpack.c.bf16 %v1042, %v1042
        %v1153 = vpack.c.bf16 %v1084, %v1081
        %v1154 = vpack.c.bf16 %v1092, %v1089
        %v1155 = vpack.c.bf16 %v1100, %v1097
        %v1156 = vpack.c.bf16 %v1108, %v1105
        %v1157 = vpack.c.bf16 %v1113, %v1113
        %vm1158 = vcmask 261120
        %v1160 = vsel %vm1158, %v1143, 0
        %v1163 = vsel %vm1158, %v1144, 0
        %v1166 = vsel %vm1158, %v1145, 0
        %v1169 = vsel %vm1158, %v1146, 0
        %v1172 = vsel %vm1158, %v1147, 0
        %v1175 = vsel %vm1158, %v1148, 0
        %v1178 = vsel %vm1158, %v1149, 0
        %v1181 = vsel %vm1158, %v1150, 0
        %v1184 = vsel %vm1158, %v1151, 0
        %v1187 = vsel %vm1158, %v1152, 0
        %1189 = vmatprep.subr.bf16.mxu0 0
        %1190 = vmatpush1.bf16.xpose.msra.mxu0 %v1175
        %1191 = vmatprep.subr.bf16.mxu0 0
        %1192 = vmatpush1.bf16.xpose.msra.mxu0 %v1178
        %1193 = vmatprep.subr.bf16.mxu0 0
        %1194 = vmatpush1.bf16.xpose.msra.mxu0 %v1181
        %1195 = vmatprep.subr.bf16.mxu0 0
        %1196 = vmatpush1.bf16.xpose.msra.mxu0 %v1184
        %1197 = vmatprep.subr.bf16.mxu0 0
        %1198 = vmatpush1.bf16.xpose.msra.mxu0 %v1187
        %1199 = vmatprep.subr.bf16.mxu0 0
        %1200 = vmatpush1.bf16.xpose.msra.mxu0 0
        %1201 = vmatprep.subr.bf16.mxu0 0
        %1202 = vmatpush1.bf16.xpose.msra.mxu0 0
        %1203 = vmatprep.subr.bf16.mxu0 0
        %1204 = vmatpush1.bf16.xpose.msra.mxu0 0
        %1205 = vmatprep.subr.bf16.mxu0 0
        %1206 = vmatpush1.bf16.xpose.msra.mxu0 0
        %1207 = vmatprep.subr.bf16.mxu0 0
        %1208 = vmatpush1.bf16.xpose.msra.mxu0 0
        %1209 = vmatprep.subr.bf16.mxu0 0
        %1210 = vmatpush1.bf16.xpose.msra.mxu0 0
        %1211 = vmatprep.subr.bf16.mxu0 0
        %1212 = vmatpush1.bf16.xpose.msra.mxu0 0
        %1213 = vmatprep.subr.bf16.mxu0 0
        %1214 = vmatpush1.bf16.xpose.msra.mxu0 0
        %1215 = vmatprep.subr.bf16.mxu0 0
        %1216 = vmatpush1.bf16.xpose.msra.mxu0 0
        %1217 = vmatprep.subr.bf16.mxu0 0
        %1218 = vmatpush1.bf16.xpose.msra.mxu0 0
        %1219 = vmatprep.subr.bf16.mxu0 0
        %1220 = vmatpush1.bf16.xpose.msra.mxu0 0
        %1221 = vmatprep.mubr.bf16.mxu0 0
        %1222 = vmatmul.mubr.bf16.gmra.mrb[0].mxu0 %v1160
        %v1223 = vpop.f32.mrb[0].mxu0
        %v1224 = vadd.f32 0.0, %v1223
        %v1225 = vpop.f32.mrb[0].mxu0
        %v1226 = vpop.f32.mrb[0].mxu0
        %v1227 = vadd.f32 0.0, %v1226
        %v1228 = vpop.f32.mrb[0].mxu0
        %1229 = vmatprep.mubr.bf16.mxu0 0
        %1230 = vmatmul.mubr.bf16.gmra.mrb[0].mxu0 %v1163
        %v1231 = vpop.f32.mrb[0].mxu0
        %v1232 = vadd.f32 0.0, %v1231
        %v1233 = vpop.f32.mrb[0].mxu0
        %v1234 = vpop.f32.mrb[0].mxu0
        %v1235 = vadd.f32 0.0, %v1234
        %v1236 = vpop.f32.mrb[0].mxu0
        %1237 = vmatprep.mubr.bf16.mxu0 0
        %1238 = vmatmul.mubr.bf16.gmra.mrb[0].mxu0 %v1166
        %v1239 = vpop.f32.mrb[0].mxu0
        %v1240 = vadd.f32 0.0, %v1239
        %v1241 = vpop.f32.mrb[0].mxu0
        %v1242 = vpop.f32.mrb[0].mxu0
        %v1243 = vadd.f32 0.0, %v1242
        %v1244 = vpop.f32.mrb[0].mxu0
        %1245 = vmatprep.mubr.bf16.mxu0 0
        %1246 = vmatmul.mubr.bf16.gmra.mrb[0].mxu0 %v1169
        %v1247 = vpop.f32.mrb[0].mxu0
        %v1248 = vadd.f32 0.0, %v1247
        %v1249 = vpop.f32.mrb[0].mxu0
        %v1250 = vpop.f32.mrb[0].mxu0
        %v1251 = vadd.f32 0.0, %v1250
        %v1252 = vpop.f32.mrb[0].mxu0
        %1253 = vmatprep.mubr.bf16.mxu0 0
        %1254 = vmatmul.mubr.bf16.gmra.mrb[0].mxu0 %v1172
        %v1255 = vpop.f32.mrb[0].mxu0
        %v1256 = vadd.f32 0.0, %v1255
        %v1257 = vpop.f32.mrb[0].mxu0
        %v1258 = vpop.f32.mrb[0].mxu0
        %v1259 = vpop.f32.mrb[0].mxu0
        %1260 = vdwg.mxu0
        %vm1261 = vcmask 531456
        %v1262 = vsel %vm1261, %v1224, -inf
        %1263 = vmax.xlane.f32.xlu0 %v1262
        %v1264 = vpop.xlane.xlu0 %1263
        %v1265 = vsel %vm1261, %v1227, -inf
        %1266 = vmax.xlane.f32.xlu0 %v1265
        %v1267 = vpop.xlane.xlu0 %1266
        %v1268 = vsel %vm1261, %v1232, -inf
        %1269 = vmax.xlane.f32.xlu0 %v1268
        %v1270 = vpop.xlane.xlu0 %1269
        %v1271 = vsel %vm1261, %v1235, -inf
        %1272 = vmax.xlane.f32.xlu0 %v1271
        %v1273 = vpop.xlane.xlu0 %1272
        %v1274 = vsel %vm1261, %v1240, -inf
        %1275 = vmax.xlane.f32.xlu0 %v1274
        %v1276 = vpop.xlane.xlu0 %1275
        %v1277 = vsel %vm1261, %v1243, -inf
        %1278 = vmax.xlane.f32.xlu0 %v1277
        %v1279 = vpop.xlane.xlu0 %1278
        %v1280 = vsel %vm1261, %v1248, -inf
        %1281 = vmax.xlane.f32.xlu0 %v1280
        %v1282 = vpop.xlane.xlu0 %1281
        %v1283 = vsel %vm1261, %v1251, -inf
        %1284 = vmax.xlane.f32.xlu0 %v1283
        %v1285 = vpop.xlane.xlu0 %1284
        %vm1286 = vcmask 524288
        %v1287 = vsel %vm1286, %v1256, -inf
        %1288 = vmax.xlane.f32.xlu0 %v1287
        %v1289 = vpop.xlane.xlu0 %1288
        %v1290 = vsub.f32 %v1224, %v1264
        %v1291 = vsub.f32 %v1227, %v1267
        %v1292 = vsub.f32 %v1232, %v1270
        %v1293 = vsub.f32 %v1235, %v1273
        %v1294 = vsub.f32 %v1240, %v1276
        %v1295 = vsub.f32 %v1243, %v1279
        %v1296 = vsub.f32 %v1248, %v1282
        %v1297 = vsub.f32 %v1251, %v1285
        %v1298 = vsub.f32 %v1256, %v1289
        %v1299 = vmul.f32 %v1290, 1.442695
        %v1300 = vpow.pop %v1299
        %v1301 = vmul.f32 %v1291, 1.442695
        %v1302 = vpow.pop %v1301
        %v1303 = vmul.f32 %v1292, 1.442695
        %v1304 = vpow.pop %v1303
        %v1305 = vmul.f32 %v1293, 1.442695
        %v1306 = vpow.pop %v1305
        %v1307 = vmul.f32 %v1294, 1.442695
        %v1308 = vpow.pop %v1307
        %v1309 = vmul.f32 %v1295, 1.442695
        %v1310 = vpow.pop %v1309
        %v1311 = vmul.f32 %v1296, 1.442695
        %v1312 = vpow.pop %v1311
        %v1313 = vmul.f32 %v1297, 1.442695
        %v1314 = vpow.pop %v1313
        %v1315 = vmul.f32 %v1298, 1.442695
        %v1316 = vpow.pop %v1315
        %v1317 = vsel %vm1261, %v1300, 0.0
        %1318 = vadd.xlane.f32.xlu0 %v1317
        %v1319 = vpop.xlane.xlu0 %1318
        %v1320 = vsel %vm1261, %v1302, 0.0
        %1321 = vadd.xlane.f32.xlu0 %v1320
        %v1322 = vpop.xlane.xlu0 %1321
        %v1323 = vsel %vm1261, %v1304, 0.0
        %1324 = vadd.xlane.f32.xlu0 %v1323
        %v1325 = vpop.xlane.xlu0 %1324
        %v1326 = vsel %vm1261, %v1306, 0.0
        %1327 = vadd.xlane.f32.xlu0 %v1326
        %v1328 = vpop.xlane.xlu0 %1327
        %v1329 = vsel %vm1261, %v1308, 0.0
        %1330 = vadd.xlane.f32.xlu0 %v1329
        %v1331 = vpop.xlane.xlu0 %1330
        %v1332 = vsel %vm1261, %v1310, 0.0
        %1333 = vadd.xlane.f32.xlu0 %v1332
        %v1334 = vpop.xlane.xlu0 %1333
        %v1335 = vsel %vm1261, %v1312, 0.0
        %1336 = vadd.xlane.f32.xlu0 %v1335
        %v1337 = vpop.xlane.xlu0 %1336
        %v1338 = vsel %vm1261, %v1314, 0.0
        %1339 = vadd.xlane.f32.xlu0 %v1338
        %v1340 = vpop.xlane.xlu0 %1339
        %v1341 = vsel %vm1286, %v1316, 0.0
        %1342 = vadd.xlane.f32.xlu0 %v1341
        %v1343 = vpop.xlane.xlu0 %1342
        %v1344 = vrcp.pop %v1319
        %v1345 = vrcp.pop %v1322
        %v1346 = vrcp.pop %v1325
        %v1347 = vrcp.pop %v1328
        %v1348 = vrcp.pop %v1331
        %v1349 = vrcp.pop %v1334
        %v1350 = vrcp.pop %v1337
        %v1351 = vrcp.pop %v1340
        %v1352 = vrcp.pop %v1343
        %v1353 = vmul.f32 %v1300, %v1344
        %v1354 = vmul.f32 %v1302, %v1345
        %v1355 = vmul.f32 %v1304, %v1346
        %v1356 = vmul.f32 %v1306, %v1347
        %v1357 = vmul.f32 %v1308, %v1348
        %v1358 = vmul.f32 %v1310, %v1349
        %v1359 = vmul.f32 %v1312, %v1350
        %v1360 = vmul.f32 %v1314, %v1351
        %v1361 = vmul.f32 %v1316, %v1352
        %v1362 = vpack.c.bf16 %v1354, %v1353
        %v1363 = vpack.c.bf16 %v1356, %v1355
        %v1364 = vpack.c.bf16 %v1358, %v1357
        %v1365 = vpack.c.bf16 %v1360, %v1359
        %v1366 = vpack.c.bf16 %v1361, %v1361
        %v1368 = vsel %vm1261, %v1362, 0
        %v1371 = vsel %vm1261, %v1363, 0
        %v1374 = vsel %vm1261, %v1364, 0
        %v1377 = vsel %vm1261, %v1365, 0
        %v1380 = vsel %vm1261, %v1366, 0
        %v1382 = vsel 0, 4294967295, 65535
        %v1383 = vsel %vm657, %v1382, 0
        %v1385 = vand.u32 %v1157, %v1383
        %1387 = vmatprep.subr.bf16.mxu0 0
        %1388 = vmatpush1.bf16.msra.mxu0 %v1153
        %1389 = vmatprep.subr.bf16.mxu0 0
        %1390 = vmatpush1.bf16.msra.mxu0 %v1154
        %1391 = vmatprep.subr.bf16.mxu0 0
        %1392 = vmatpush1.bf16.msra.mxu0 %v1155
        %1393 = vmatprep.subr.bf16.mxu0 0
        %1394 = vmatpush1.bf16.msra.mxu0 %v1156
        %1395 = vmatprep.subr.bf16.mxu0 0
        %1396 = vmatpush1.bf16.msra.mxu0 %v1385
        %1397 = vmatprep.subr.bf16.mxu0 0
        %1398 = vmatpush1.bf16.msra.mxu0 0
        %1399 = vmatprep.subr.bf16.mxu0 0
        %1400 = vmatpush1.bf16.msra.mxu0 0
        %1401 = vmatprep.subr.bf16.mxu0 0
        %1402 = vmatpush1.bf16.msra.mxu0 0
        %1403 = vmatprep.subr.bf16.mxu0 0
        %1404 = vmatpush1.bf16.msra.mxu0 0
        %1405 = vmatprep.subr.bf16.mxu0 0
        %1406 = vmatpush1.bf16.msra.mxu0 0
        %1407 = vmatprep.subr.bf16.mxu0 0
        %1408 = vmatpush1.bf16.msra.mxu0 0
        %1409 = vmatprep.subr.bf16.mxu0 0
        %1410 = vmatpush1.bf16.msra.mxu0 0
        %1411 = vmatprep.subr.bf16.mxu0 0
        %1412 = vmatpush1.bf16.msra.mxu0 0
        %1413 = vmatprep.subr.bf16.mxu0 0
        %1414 = vmatpush1.bf16.msra.mxu0 0
        %1415 = vmatprep.subr.bf16.mxu0 0
        %1416 = vmatpush1.bf16.msra.mxu0 0
        %1417 = vmatprep.subr.bf16.mxu0 0
        %1418 = vmatpush1.bf16.msra.mxu0 0
        %1419 = vmatprep.mubr.bf16.mxu0 0
        %1420 = vmatmul.mubr.bf16.gmra.mrb[0].mxu0 %v1368
        %v1421 = vpop.f32.mrb[0].mxu0
        %v1422 = vadd.f32 0.0, %v1421
        %v1423 = vpop.f32.mrb[0].mxu0
        %v1424 = vpop.f32.mrb[0].mxu0
        %v1425 = vadd.f32 0.0, %v1424
        %v1426 = vpop.f32.mrb[0].mxu0
        %1427 = vmatprep.mubr.bf16.mxu0 0
        %1428 = vmatmul.mubr.bf16.gmra.mrb[0].mxu0 %v1371
        %v1429 = vpop.f32.mrb[0].mxu0
        %v1430 = vadd.f32 0.0, %v1429
        %v1431 = vpop.f32.mrb[0].mxu0
        %v1432 = vpop.f32.mrb[0].mxu0
        %v1433 = vadd.f32 0.0, %v1432
        %v1434 = vpop.f32.mrb[0].mxu0
        %1435 = vmatprep.mubr.bf16.mxu0 0
        %1436 = vmatmul.mubr.bf16.gmra.mrb[0].mxu0 %v1374
        %v1437 = vpop.f32.mrb[0].mxu0
        %v1438 = vadd.f32 0.0, %v1437
        %v1439 = vpop.f32.mrb[0].mxu0
        %v1440 = vpop.f32.mrb[0].mxu0
        %v1441 = vadd.f32 0.0, %v1440
        %v1442 = vpop.f32.mrb[0].mxu0
        %1443 = vmatprep.mubr.bf16.mxu0 0
        %1444 = vmatmul.mubr.bf16.gmra.mrb[0].mxu0 %v1377
        %v1445 = vpop.f32.mrb[0].mxu0
        %v1446 = vadd.f32 0.0, %v1445
        %v1447 = vpop.f32.mrb[0].mxu0
        %v1448 = vpop.f32.mrb[0].mxu0
        %v1449 = vadd.f32 0.0, %v1448
        %v1450 = vpop.f32.mrb[0].mxu0
        %1451 = vmatprep.mubr.bf16.mxu0 0
        %1452 = vmatmul.mubr.bf16.gmra.mrb[0].mxu0 %v1380
        %v1453 = vpop.f32.mrb[0].mxu0
        %v1454 = vadd.f32 0.0, %v1453
        %v1455 = vpop.f32.mrb[0].mxu0
        %v1456 = vpop.f32.mrb[0].mxu0
        %v1457 = vpop.f32.mrb[0].mxu0
        %1458 = vdwg.mxu0
        %v1459 = vpack.c.bf16 %v1425, %v1422
        %v1460 = vpack.c.bf16 %v1433, %v1430
        %v1461 = vpack.c.bf16 %v1441, %v1438
        %v1462 = vpack.c.bf16 %v1449, %v1446
        %v1463 = vpack.c.bf16 %v1454, %v1454
        %1469 = vrot.lane.b32.xlu0 %v1143, 96
        %v1470 = vpop.permute.xlu0 %1469
        %1471 = vrot.lane.b32.xlu0 %v1144, 96
        %v1472 = vpop.permute.xlu0 %1471
        %1473 = vrot.lane.b32.xlu0 %v1145, 96
        %v1474 = vpop.permute.xlu0 %1473
        %1475 = vrot.lane.b32.xlu0 %v1146, 96
        %v1476 = vpop.permute.xlu0 %1475
        %1477 = vrot.lane.b32.xlu0 %v1147, 96
        %v1478 = vpop.permute.xlu0 %1477
        %1484 = vrot.lane.b32.xlu0 %v1148, 96
        %v1485 = vpop.permute.xlu0 %1484
        %1486 = vrot.lane.b32.xlu0 %v1149, 96
        %v1487 = vpop.permute.xlu0 %1486
        %1488 = vrot.lane.b32.xlu0 %v1150, 96
        %v1489 = vpop.permute.xlu0 %1488
        %1490 = vrot.lane.b32.xlu0 %v1151, 96
        %v1491 = vpop.permute.xlu0 %1490
        %1492 = vrot.lane.b32.xlu0 %v1152, 96
        %v1493 = vpop.permute.xlu0 %1492
        %v1495 = vsel %vm1158, %v1470, 0
        %v1498 = vsel %vm1158, %v1472, 0
        %v1501 = vsel %vm1158, %v1474, 0
        %v1504 = vsel %vm1158, %v1476, 0
        %v1507 = vsel %vm1158, %v1478, 0
        %v1510 = vsel %vm1158, %v1485, 0
        %v1513 = vsel %vm1158, %v1487, 0
        %v1516 = vsel %vm1158, %v1489, 0
        %v1519 = vsel %vm1158, %v1491, 0
        %v1522 = vsel %vm1158, %v1493, 0
        %1524 = vmatprep.subr.bf16.mxu0 0
        %1525 = vmatpush1.bf16.xpose.msra.mxu0 %v1510
        %1526 = vmatprep.subr.bf16.mxu0 0
        %1527 = vmatpush1.bf16.xpose.msra.mxu0 %v1513
        %1528 = vmatprep.subr.bf16.mxu0 0
        %1529 = vmatpush1.bf16.xpose.msra.mxu0 %v1516
        %1530 = vmatprep.subr.bf16.mxu0 0
        %1531 = vmatpush1.bf16.xpose.msra.mxu0 %v1519
        %1532 = vmatprep.subr.bf16.mxu0 0
        %1533 = vmatpush1.bf16.xpose.msra.mxu0 %v1522
        %1534 = vmatprep.subr.bf16.mxu0 0
        %1535 = vmatpush1.bf16.xpose.msra.mxu0 0
        %1536 = vmatprep.subr.bf16.mxu0 0
        %1537 = vmatpush1.bf16.xpose.msra.mxu0 0
        %1538 = vmatprep.subr.bf16.mxu0 0
        %1539 = vmatpush1.bf16.xpose.msra.mxu0 0
        %1540 = vmatprep.subr.bf16.mxu0 0
        %1541 = vmatpush1.bf16.xpose.msra.mxu0 0
        %1542 = vmatprep.subr.bf16.mxu0 0
        %1543 = vmatpush1.bf16.xpose.msra.mxu0 0
        %1544 = vmatprep.subr.bf16.mxu0 0
        %1545 = vmatpush1.bf16.xpose.msra.mxu0 0
        %1546 = vmatprep.subr.bf16.mxu0 0
        %1547 = vmatpush1.bf16.xpose.msra.mxu0 0
        %1548 = vmatprep.subr.bf16.mxu0 0
        %1549 = vmatpush1.bf16.xpose.msra.mxu0 0
        %1550 = vmatprep.subr.bf16.mxu0 0
        %1551 = vmatpush1.bf16.xpose.msra.mxu0 0
        %1552 = vmatprep.subr.bf16.mxu0 0
        %1553 = vmatpush1.bf16.xpose.msra.mxu0 0
        %1554 = vmatprep.subr.bf16.mxu0 0
        %1555 = vmatpush1.bf16.xpose.msra.mxu0 0
        %1556 = vmatprep.mubr.bf16.mxu0 0
        %1557 = vmatmul.mubr.bf16.gmra.mrb[0].mxu0 %v1495
        %v1558 = vpop.f32.mrb[0].mxu0
        %v1559 = vadd.f32 0.0, %v1558
        %v1560 = vpop.f32.mrb[0].mxu0
        %v1561 = vpop.f32.mrb[0].mxu0
        %v1562 = vadd.f32 0.0, %v1561
        %v1563 = vpop.f32.mrb[0].mxu0
        %1564 = vmatprep.mubr.bf16.mxu0 0
        %1565 = vmatmul.mubr.bf16.gmra.mrb[0].mxu0 %v1498
        %v1566 = vpop.f32.mrb[0].mxu0
        %v1567 = vadd.f32 0.0, %v1566
        %v1568 = vpop.f32.mrb[0].mxu0
        %v1569 = vpop.f32.mrb[0].mxu0
        %v1570 = vadd.f32 0.0, %v1569
        %v1571 = vpop.f32.mrb[0].mxu0
        %1572 = vmatprep.mubr.bf16.mxu0 0
        %1573 = vmatmul.mubr.bf16.gmra.mrb[0].mxu0 %v1501
        %v1574 = vpop.f32.mrb[0].mxu0
        %v1575 = vadd.f32 0.0, %v1574
        %v1576 = vpop.f32.mrb[0].mxu0
        %v1577 = vpop.f32.mrb[0].mxu0
        %v1578 = vadd.f32 0.0, %v1577
        %v1579 = vpop.f32.mrb[0].mxu0
        %1580 = vmatprep.mubr.bf16.mxu0 0
        %1581 = vmatmul.mubr.bf16.gmra.mrb[0].mxu0 %v1504
        %v1582 = vpop.f32.mrb[0].mxu0
        %v1583 = vadd.f32 0.0, %v1582
        %v1584 = vpop.f32.mrb[0].mxu0
        %v1585 = vpop.f32.mrb[0].mxu0
        %v1586 = vadd.f32 0.0, %v1585
        %v1587 = vpop.f32.mrb[0].mxu0
        %1588 = vmatprep.mubr.bf16.mxu0 0
        %1589 = vmatmul.mubr.bf16.gmra.mrb[0].mxu0 %v1507
        %v1590 = vpop.f32.mrb[0].mxu0
        %v1591 = vadd.f32 0.0, %v1590
        %v1592 = vpop.f32.mrb[0].mxu0
        %v1593 = vpop.f32.mrb[0].mxu0
        %v1594 = vpop.f32.mrb[0].mxu0
        %1595 = vdwg.mxu0
        %v1596 = vsel %vm1261, %v1559, -inf
        %1597 = vmax.xlane.f32.xlu0 %v1596
        %v1598 = vpop.xlane.xlu0 %1597
        %v1599 = vsel %vm1261, %v1562, -inf
        %1600 = vmax.xlane.f32.xlu0 %v1599
        %v1601 = vpop.xlane.xlu0 %1600
        %v1602 = vsel %vm1261, %v1567, -inf
        %1603 = vmax.xlane.f32.xlu0 %v1602
        %v1604 = vpop.xlane.xlu0 %1603
        %v1605 = vsel %vm1261, %v1570, -inf
        %1606 = vmax.xlane.f32.xlu0 %v1605
        %v1607 = vpop.xlane.xlu0 %1606
        %v1608 = vsel %vm1261, %v1575, -inf
        %1609 = vmax.xlane.f32.xlu0 %v1608
        %v1610 = vpop.xlane.xlu0 %1609
        %v1611 = vsel %vm1261, %v1578, -inf
        %1612 = vmax.xlane.f32.xlu0 %v1611
        %v1613 = vpop.xlane.xlu0 %1612
        %v1614 = vsel %vm1261, %v1583, -inf
        %1615 = vmax.xlane.f32.xlu0 %v1614
        %v1616 = vpop.xlane.xlu0 %1615
        %v1617 = vsel %vm1261, %v1586, -inf
        %1618 = vmax.xlane.f32.xlu0 %v1617
        %v1619 = vpop.xlane.xlu0 %1618
        %v1620 = vsel %vm1286, %v1591, -inf
        %1621 = vmax.xlane.f32.xlu0 %v1620
        %v1622 = vpop.xlane.xlu0 %1621
        %v1623 = vsub.f32 %v1559, %v1598
        %v1624 = vsub.f32 %v1562, %v1601
        %v1625 = vsub.f32 %v1567, %v1604
        %v1626 = vsub.f32 %v1570, %v1607
        %v1627 = vsub.f32 %v1575, %v1610
        %v1628 = vsub.f32 %v1578, %v1613
        %v1629 = vsub.f32 %v1583, %v1616
        %v1630 = vsub.f32 %v1586, %v1619
        %v1631 = vsub.f32 %v1591, %v1622
        %v1632 = vmul.f32 %v1623, 1.442695
        %v1633 = vpow.pop %v1632
        %v1634 = vmul.f32 %v1624, 1.442695
        %v1635 = vpow.pop %v1634
        %v1636 = vmul.f32 %v1625, 1.442695
        %v1637 = vpow.pop %v1636
        %v1638 = vmul.f32 %v1626, 1.442695
        %v1639 = vpow.pop %v1638
        %v1640 = vmul.f32 %v1627, 1.442695
        %v1641 = vpow.pop %v1640
        %v1642 = vmul.f32 %v1628, 1.442695
        %v1643 = vpow.pop %v1642
        %v1644 = vmul.f32 %v1629, 1.442695
        %v1645 = vpow.pop %v1644
        %v1646 = vmul.f32 %v1630, 1.442695
        %v1647 = vpow.pop %v1646
        %v1648 = vmul.f32 %v1631, 1.442695
        %v1649 = vpow.pop %v1648
        %v1650 = vsel %vm1261, %v1633, 0.0
        %1651 = vadd.xlane.f32.xlu0 %v1650
        %v1652 = vpop.xlane.xlu0 %1651
        %v1653 = vsel %vm1261, %v1635, 0.0
        %1654 = vadd.xlane.f32.xlu0 %v1653
        %v1655 = vpop.xlane.xlu0 %1654
        %v1656 = vsel %vm1261, %v1637, 0.0
        %1657 = vadd.xlane.f32.xlu0 %v1656
        %v1658 = vpop.xlane.xlu0 %1657
        %v1659 = vsel %vm1261, %v1639, 0.0
        %1660 = vadd.xlane.f32.xlu0 %v1659
        %v1661 = vpop.xlane.xlu0 %1660
        %v1662 = vsel %vm1261, %v1641, 0.0
        %1663 = vadd.xlane.f32.xlu0 %v1662
        %v1664 = vpop.xlane.xlu0 %1663
        %v1665 = vsel %vm1261, %v1643, 0.0
        %1666 = vadd.xlane.f32.xlu0 %v1665
        %v1667 = vpop.xlane.xlu0 %1666
        %v1668 = vsel %vm1261, %v1645, 0.0
        %1669 = vadd.xlane.f32.xlu0 %v1668
        %v1670 = vpop.xlane.xlu0 %1669
        %v1671 = vsel %vm1261, %v1647, 0.0
        %1672 = vadd.xlane.f32.xlu0 %v1671
        %v1673 = vpop.xlane.xlu0 %1672
        %v1674 = vsel %vm1286, %v1649, 0.0
        %1675 = vadd.xlane.f32.xlu0 %v1674
        %v1676 = vpop.xlane.xlu0 %1675
        %v1677 = vrcp.pop %v1652
        %v1678 = vrcp.pop %v1655
        %v1679 = vrcp.pop %v1658
        %v1680 = vrcp.pop %v1661
        %v1681 = vrcp.pop %v1664
        %v1682 = vrcp.pop %v1667
        %v1683 = vrcp.pop %v1670
        %v1684 = vrcp.pop %v1673
        %v1685 = vrcp.pop %v1676
        %v1686 = vmul.f32 %v1633, %v1677
        %v1687 = vmul.f32 %v1635, %v1678
        %v1688 = vmul.f32 %v1637, %v1679
        %v1689 = vmul.f32 %v1639, %v1680
        %v1690 = vmul.f32 %v1641, %v1681
        %v1691 = vmul.f32 %v1643, %v1682
        %v1692 = vmul.f32 %v1645, %v1683
        %v1693 = vmul.f32 %v1647, %v1684
        %v1694 = vmul.f32 %v1649, %v1685
        %v1695 = vpack.c.bf16 %v1687, %v1686
        %v1696 = vpack.c.bf16 %v1689, %v1688
        %v1697 = vpack.c.bf16 %v1691, %v1690
        %v1698 = vpack.c.bf16 %v1693, %v1692
        %v1699 = vpack.c.bf16 %v1694, %v1694
        %1705 = vrot.lane.b32.xlu0 %v1153, 96
        %v1706 = vpop.permute.xlu0 %1705
        %1707 = vrot.lane.b32.xlu0 %v1154, 96
        %v1708 = vpop.permute.xlu0 %1707
        %1709 = vrot.lane.b32.xlu0 %v1155, 96
        %v1710 = vpop.permute.xlu0 %1709
        %1711 = vrot.lane.b32.xlu0 %v1156, 96
        %v1712 = vpop.permute.xlu0 %1711
        %1713 = vrot.lane.b32.xlu0 %v1157, 96
        %v1714 = vpop.permute.xlu0 %1713
        %v1720 = vsel %vm1261, %v1695, 0
        %v1723 = vsel %vm1261, %v1696, 0
        %v1726 = vsel %vm1261, %v1697, 0
        %v1729 = vsel %vm1261, %v1698, 0
        %v1732 = vsel %vm1261, %v1699, 0
        %v1735 = vand.u32 %v1714, %v1383
        %1737 = vmatprep.subr.bf16.mxu0 0
        %1738 = vmatpush1.bf16.msra.mxu0 %v1706
        %1739 = vmatprep.subr.bf16.mxu0 0
        %1740 = vmatpush1.bf16.msra.mxu0 %v1708
        %1741 = vmatprep.subr.bf16.mxu0 0
        %1742 = vmatpush1.bf16.msra.mxu0 %v1710
        %1743 = vmatprep.subr.bf16.mxu0 0
        %1744 = vmatpush1.bf16.msra.mxu0 %v1712
        %1745 = vmatprep.subr.bf16.mxu0 0
        %1746 = vmatpush1.bf16.msra.mxu0 %v1735
        %1747 = vmatprep.subr.bf16.mxu0 0
        %1748 = vmatpush1.bf16.msra.mxu0 0
        %1749 = vmatprep.subr.bf16.mxu0 0
        %1750 = vmatpush1.bf16.msra.mxu0 0
        %1751 = vmatprep.subr.bf16.mxu0 0
        %1752 = vmatpush1.bf16.msra.mxu0 0
        %1753 = vmatprep.subr.bf16.mxu0 0
        %1754 = vmatpush1.bf16.msra.mxu0 0
        %1755 = vmatprep.subr.bf16.mxu0 0
        %1756 = vmatpush1.bf16.msra.mxu0 0
        %1757 = vmatprep.subr.bf16.mxu0 0
        %1758 = vmatpush1.bf16.msra.mxu0 0
        %1759 = vmatprep.subr.bf16.mxu0 0
        %1760 = vmatpush1.bf16.msra.mxu0 0
        %1761 = vmatprep.subr.bf16.mxu0 0
        %1762 = vmatpush1.bf16.msra.mxu0 0
        %1763 = vmatprep.subr.bf16.mxu0 0
        %1764 = vmatpush1.bf16.msra.mxu0 0
        %1765 = vmatprep.subr.bf16.mxu0 0
        %1766 = vmatpush1.bf16.msra.mxu0 0
        %1767 = vmatprep.subr.bf16.mxu0 0
        %1768 = vmatpush1.bf16.msra.mxu0 0
        %1769 = vmatprep.mubr.bf16.mxu0 0
        %1770 = vmatmul.mubr.bf16.gmra.mrb[0].mxu0 %v1720
        %v1771 = vpop.f32.mrb[0].mxu0
        %v1772 = vadd.f32 0.0, %v1771
        %v1773 = vpop.f32.mrb[0].mxu0
        %v1774 = vpop.f32.mrb[0].mxu0
        %v1775 = vadd.f32 0.0, %v1774
        %v1776 = vpop.f32.mrb[0].mxu0
        %1777 = vmatprep.mubr.bf16.mxu0 0
        %1778 = vmatmul.mubr.bf16.gmra.mrb[0].mxu0 %v1723
        %v1779 = vpop.f32.mrb[0].mxu0
        %v1780 = vadd.f32 0.0, %v1779
        %v1781 = vpop.f32.mrb[0].mxu0
        %v1782 = vpop.f32.mrb[0].mxu0
        %v1783 = vadd.f32 0.0, %v1782
        %v1784 = vpop.f32.mrb[0].mxu0
        %1785 = vmatprep.mubr.bf16.mxu0 0
        %1786 = vmatmul.mubr.bf16.gmra.mrb[0].mxu0 %v1726
        %v1787 = vpop.f32.mrb[0].mxu0
        %v1788 = vadd.f32 0.0, %v1787
        %v1789 = vpop.f32.mrb[0].mxu0
        %v1790 = vpop.f32.mrb[0].mxu0
        %v1791 = vadd.f32 0.0, %v1790
        %v1792 = vpop.f32.mrb[0].mxu0
        %1793 = vmatprep.mubr.bf16.mxu0 0
        %1794 = vmatmul.mubr.bf16.gmra.mrb[0].mxu0 %v1729
        %v1795 = vpop.f32.mrb[0].mxu0
        %v1796 = vadd.f32 0.0, %v1795
        %v1797 = vpop.f32.mrb[0].mxu0
        %v1798 = vpop.f32.mrb[0].mxu0
        %v1799 = vadd.f32 0.0, %v1798
        %v1800 = vpop.f32.mrb[0].mxu0
        %1801 = vmatprep.mubr.bf16.mxu0 0
        %1802 = vmatmul.mubr.bf16.gmra.mrb[0].mxu0 %v1732
        %v1803 = vpop.f32.mrb[0].mxu0
        %v1804 = vadd.f32 0.0, %v1803
        %v1805 = vpop.f32.mrb[0].mxu0
        %v1806 = vpop.f32.mrb[0].mxu0
        %v1807 = vpop.f32.mrb[0].mxu0
        %1808 = vdwg.mxu0
        %v1809 = vpack.c.bf16 %v1775, %v1772
        %v1810 = vpack.c.bf16 %v1783, %v1780
        %v1811 = vpack.c.bf16 %v1791, %v1788
        %v1812 = vpack.c.bf16 %v1799, %v1796
        %v1813 = vpack.c.bf16 %v1804, %v1804
        %v1818 = vunpack.c.l.b16 %v1131
        %v1819 = vunpack.c.l.b16 %v1132
        %v1820 = vunpack.c.l.b16 %v1133
        %v1821 = vunpack.c.l.b16 %v1134
        %v1822 = vpack.c.b16 %v1819, %v1818
        %v1823 = vpack.c.b16 %v1821, %v1820
        %v1827 = vsel %vm1158, %v1809, 0
        %v1830 = vsel %vm1158, %v1810, 0
        %v1833 = vsel %vm1158, %v1811, 0
        %v1836 = vsel %vm1158, %v1812, 0
        %v1839 = vsel %vm1158, %v1813, 0
        %1841 = vmatprep.subr.bf16.mxu0 0
        %1842 = vmatpush1.bf16.msra.mxu0 %v1822
        %1843 = vmatprep.subr.bf16.mxu0 0
        %1844 = vmatpush1.bf16.msra.mxu0 %v1823
        %1845 = vmatprep.subr.bf16.mxu0 0
        %1846 = vmatpush1.bf16.msra.mxu0 0
        %1847 = vmatprep.subr.bf16.mxu0 0
        %1848 = vmatpush1.bf16.msra.mxu0 0
        %1849 = vmatprep.subr.bf16.mxu0 0
        %1850 = vmatpush1.bf16.msra.mxu0 0
        %1851 = vmatprep.subr.bf16.mxu0 0
        %1852 = vmatpush1.bf16.msra.mxu0 0
        %1853 = vmatprep.subr.bf16.mxu0 0
        %1854 = vmatpush1.bf16.msra.mxu0 0
        %1855 = vmatprep.subr.bf16.mxu0 0
        %1856 = vmatpush1.bf16.msra.mxu0 0
        %1857 = vmatprep.subr.bf16.mxu0 0
        %1858 = vmatpush1.bf16.msra.mxu0 0
        %1859 = vmatprep.subr.bf16.mxu0 0
        %1860 = vmatpush1.bf16.msra.mxu0 0
        %1861 = vmatprep.subr.bf16.mxu0 0
        %1862 = vmatpush1.bf16.msra.mxu0 0
        %1863 = vmatprep.subr.bf16.mxu0 0
        %1864 = vmatpush1.bf16.msra.mxu0 0
        %1865 = vmatprep.subr.bf16.mxu0 0
        %1866 = vmatpush1.bf16.msra.mxu0 0
        %1867 = vmatprep.subr.bf16.mxu0 0
        %1868 = vmatpush1.bf16.msra.mxu0 0
        %1869 = vmatprep.subr.bf16.mxu0 0
        %1870 = vmatpush1.bf16.msra.mxu0 0
        %1871 = vmatprep.subr.bf16.mxu0 0
        %1872 = vmatpush1.bf16.msra.mxu0 0
        %1873 = vmatprep.mubr.bf16.mxu0 0
        %1874 = vmatmul.mubr.bf16.gmra.mrb[0].mxu0 %v1827
        %v1875 = vpop.f32.mrb[0].mxu0
        %v1876 = vadd.f32 0.0, %v1875
        %v1877 = vpop.f32.mrb[0].mxu0
        %v1878 = vpop.f32.mrb[0].mxu0
        %v1879 = vadd.f32 0.0, %v1878
        %v1880 = vpop.f32.mrb[0].mxu0
        %1881 = vmatprep.mubr.bf16.mxu0 0
        %1882 = vmatmul.mubr.bf16.gmra.mrb[0].mxu0 %v1830
        %v1883 = vpop.f32.mrb[0].mxu0
        %v1884 = vadd.f32 0.0, %v1883
        %v1885 = vpop.f32.mrb[0].mxu0
        %v1886 = vpop.f32.mrb[0].mxu0
        %v1887 = vadd.f32 0.0, %v1886
        %v1888 = vpop.f32.mrb[0].mxu0
        %1889 = vmatprep.mubr.bf16.mxu0 0
        %1890 = vmatmul.mubr.bf16.gmra.mrb[0].mxu0 %v1833
        %v1891 = vpop.f32.mrb[0].mxu0
        %v1892 = vadd.f32 0.0, %v1891
        %v1893 = vpop.f32.mrb[0].mxu0
        %v1894 = vpop.f32.mrb[0].mxu0
        %v1895 = vadd.f32 0.0, %v1894
        %v1896 = vpop.f32.mrb[0].mxu0
        %1897 = vmatprep.mubr.bf16.mxu0 0
        %1898 = vmatmul.mubr.bf16.gmra.mrb[0].mxu0 %v1836
        %v1899 = vpop.f32.mrb[0].mxu0
        %v1900 = vadd.f32 0.0, %v1899
        %v1901 = vpop.f32.mrb[0].mxu0
        %v1902 = vpop.f32.mrb[0].mxu0
        %v1903 = vadd.f32 0.0, %v1902
        %v1904 = vpop.f32.mrb[0].mxu0
        %1905 = vmatprep.mubr.bf16.mxu0 0
        %1906 = vmatmul.mubr.bf16.gmra.mrb[0].mxu0 %v1839
        %v1907 = vpop.f32.mrb[0].mxu0
        %v1908 = vadd.f32 0.0, %v1907
        %v1909 = vpop.f32.mrb[0].mxu0
        %v1910 = vpop.f32.mrb[0].mxu0
        %v1911 = vpop.f32.mrb[0].mxu0
        %1912 = vdwg.mxu0
        %v1917 = vunpack.c.l.b16 %v1127
        %v1918 = vunpack.c.l.b16 %v1128
        %v1919 = vunpack.c.l.b16 %v1129
        %v1920 = vunpack.c.l.b16 %v1130
        %v1921 = vpack.c.b16 %v1918, %v1917
        %v1922 = vpack.c.b16 %v1920, %v1919
        %v1926 = vsel %vm1158, %v1459, 0
        %v1929 = vsel %vm1158, %v1460, 0
        %v1932 = vsel %vm1158, %v1461, 0
        %v1935 = vsel %vm1158, %v1462, 0
        %v1938 = vsel %vm1158, %v1463, 0
        %1940 = vmatprep.subr.bf16.mxu0 0
        %1941 = vmatpush1.bf16.msra.mxu0 %v1921
        %1942 = vmatprep.subr.bf16.mxu0 0
        %1943 = vmatpush1.bf16.msra.mxu0 %v1922
        %1944 = vmatprep.subr.bf16.mxu0 0
        %1945 = vmatpush1.bf16.msra.mxu0 0
        %1946 = vmatprep.subr.bf16.mxu0 0
        %1947 = vmatpush1.bf16.msra.mxu0 0
        %1948 = vmatprep.subr.bf16.mxu0 0
        %1949 = vmatpush1.bf16.msra.mxu0 0
        %1950 = vmatprep.subr.bf16.mxu0 0
        %1951 = vmatpush1.bf16.msra.mxu0 0
        %1952 = vmatprep.subr.bf16.mxu0 0
        %1953 = vmatpush1.bf16.msra.mxu0 0
        %1954 = vmatprep.subr.bf16.mxu0 0
        %1955 = vmatpush1.bf16.msra.mxu0 0
        %1956 = vmatprep.subr.bf16.mxu0 0
        %1957 = vmatpush1.bf16.msra.mxu0 0
        %1958 = vmatprep.subr.bf16.mxu0 0
        %1959 = vmatpush1.bf16.msra.mxu0 0
        %1960 = vmatprep.subr.bf16.mxu0 0
        %1961 = vmatpush1.bf16.msra.mxu0 0
        %1962 = vmatprep.subr.bf16.mxu0 0
        %1963 = vmatpush1.bf16.msra.mxu0 0
        %1964 = vmatprep.subr.bf16.mxu0 0
        %1965 = vmatpush1.bf16.msra.mxu0 0
        %1966 = vmatprep.subr.bf16.mxu0 0
        %1967 = vmatpush1.bf16.msra.mxu0 0
        %1968 = vmatprep.subr.bf16.mxu0 0
        %1969 = vmatpush1.bf16.msra.mxu0 0
        %1970 = vmatprep.subr.bf16.mxu0 0
        %1971 = vmatpush1.bf16.msra.mxu0 0
        %1972 = vmatprep.mubr.bf16.mxu0 0
        %1973 = vmatmul.mubr.bf16.gmra.mrb[0].mxu0 %v1926
        %v1974 = vpop.f32.mrb[0].mxu0
        %v1975 = vadd.f32 %v1876, %v1974
        %v1976 = vpop.f32.mrb[0].mxu0
        %v1977 = vpop.f32.mrb[0].mxu0
        %v1978 = vadd.f32 %v1879, %v1977
        %v1979 = vpop.f32.mrb[0].mxu0
        %1980 = vmatprep.mubr.bf16.mxu0 0
        %1981 = vmatmul.mubr.bf16.gmra.mrb[0].mxu0 %v1929
        %v1982 = vpop.f32.mrb[0].mxu0
        %v1983 = vadd.f32 %v1884, %v1982
        %v1984 = vpop.f32.mrb[0].mxu0
        %v1985 = vpop.f32.mrb[0].mxu0
        %v1986 = vadd.f32 %v1887, %v1985
        %v1987 = vpop.f32.mrb[0].mxu0
        %1988 = vmatprep.mubr.bf16.mxu0 0
        %1989 = vmatmul.mubr.bf16.gmra.mrb[0].mxu0 %v1932
        %v1990 = vpop.f32.mrb[0].mxu0
        %v1991 = vadd.f32 %v1892, %v1990
        %v1992 = vpop.f32.mrb[0].mxu0
        %v1993 = vpop.f32.mrb[0].mxu0
        %v1994 = vadd.f32 %v1895, %v1993
        %v1995 = vpop.f32.mrb[0].mxu0
        %1996 = vmatprep.mubr.bf16.mxu0 0
        %1997 = vmatmul.mubr.bf16.gmra.mrb[0].mxu0 %v1935
        %v1998 = vpop.f32.mrb[0].mxu0
        %v1999 = vadd.f32 %v1900, %v1998
        %v2000 = vpop.f32.mrb[0].mxu0
        %v2001 = vpop.f32.mrb[0].mxu0
        %v2002 = vadd.f32 %v1903, %v2001
        %v2003 = vpop.f32.mrb[0].mxu0
        %2004 = vmatprep.mubr.bf16.mxu0 0
        %2005 = vmatmul.mubr.bf16.gmra.mrb[0].mxu0 %v1938
        %v2006 = vpop.f32.mrb[0].mxu0
        %v2007 = vadd.f32 %v1908, %v2006
        %v2008 = vpop.f32.mrb[0].mxu0
        %v2009 = vpop.f32.mrb[0].mxu0
        %v2010 = vpop.f32.mrb[0].mxu0
        %2011 = vdwg.mxu0
        %2012 = vrot.lane.b32.xlu0 %v1143, 64
        %v2013 = vpop.permute.xlu0 %2012
        %2014 = vrot.lane.b32.xlu0 %v1144, 64
        %v2015 = vpop.permute.xlu0 %2014
        %2016 = vrot.lane.b32.xlu0 %v1145, 64
        %v2017 = vpop.permute.xlu0 %2016
        %2018 = vrot.lane.b32.xlu0 %v1146, 64
        %v2019 = vpop.permute.xlu0 %2018
        %2020 = vrot.lane.b32.xlu0 %v1147, 64
        %v2021 = vpop.permute.xlu0 %2020
        %2022 = vrot.lane.b32.xlu0 %v1148, 64
        %v2023 = vpop.permute.xlu0 %2022
        %2024 = vrot.lane.b32.xlu0 %v1149, 64
        %v2025 = vpop.permute.xlu0 %2024
        %2026 = vrot.lane.b32.xlu0 %v1150, 64
        %v2027 = vpop.permute.xlu0 %2026
        %2028 = vrot.lane.b32.xlu0 %v1151, 64
        %v2029 = vpop.permute.xlu0 %2028
        %2030 = vrot.lane.b32.xlu0 %v1152, 64
        %v2031 = vpop.permute.xlu0 %2030
        %v2033 = vsel %vm1158, %v2013, 0
        %v2036 = vsel %vm1158, %v2015, 0
        %v2039 = vsel %vm1158, %v2017, 0
        %v2042 = vsel %vm1158, %v2019, 0
        %v2045 = vsel %vm1158, %v2021, 0
        %v2048 = vsel %vm1158, %v2023, 0
        %v2051 = vsel %vm1158, %v2025, 0
        %v2054 = vsel %vm1158, %v2027, 0
        %v2057 = vsel %vm1158, %v2029, 0
        %v2060 = vsel %vm1158, %v2031, 0
        %2062 = vmatprep.subr.bf16.mxu0 0
        %2063 = vmatpush1.bf16.xpose.msra.mxu0 %v2048
        %2064 = vmatprep.subr.bf16.mxu0 0
        %2065 = vmatpush1.bf16.xpose.msra.mxu0 %v2051
        %2066 = vmatprep.subr.bf16.mxu0 0
        %2067 = vmatpush1.bf16.xpose.msra.mxu0 %v2054
        %2068 = vmatprep.subr.bf16.mxu0 0
        %2069 = vmatpush1.bf16.xpose.msra.mxu0 %v2057
        %2070 = vmatprep.subr.bf16.mxu0 0
        %2071 = vmatpush1.bf16.xpose.msra.mxu0 %v2060
        %2072 = vmatprep.subr.bf16.mxu0 0
        %2073 = vmatpush1.bf16.xpose.msra.mxu0 0
        %2074 = vmatprep.subr.bf16.mxu0 0
        %2075 = vmatpush1.bf16.xpose.msra.mxu0 0
        %2076 = vmatprep.subr.bf16.mxu0 0
        %2077 = vmatpush1.bf16.xpose.msra.mxu0 0
        %2078 = vmatprep.subr.bf16.mxu0 0
        %2079 = vmatpush1.bf16.xpose.msra.mxu0 0
        %2080 = vmatprep.subr.bf16.mxu0 0
        %2081 = vmatpush1.bf16.xpose.msra.mxu0 0
        %2082 = vmatprep.subr.bf16.mxu0 0
        %2083 = vmatpush1.bf16.xpose.msra.mxu0 0
        %2084 = vmatprep.subr.bf16.mxu0 0
        %2085 = vmatpush1.bf16.xpose.msra.mxu0 0
        %2086 = vmatprep.subr.bf16.mxu0 0
        %2087 = vmatpush1.bf16.xpose.msra.mxu0 0
        %2088 = vmatprep.subr.bf16.mxu0 0
        %2089 = vmatpush1.bf16.xpose.msra.mxu0 0
        %2090 = vmatprep.subr.bf16.mxu0 0
        %2091 = vmatpush1.bf16.xpose.msra.mxu0 0
        %2092 = vmatprep.subr.bf16.mxu0 0
        %2093 = vmatpush1.bf16.xpose.msra.mxu0 0
        %2094 = vmatprep.mubr.bf16.mxu0 0
        %2095 = vmatmul.mubr.bf16.gmra.mrb[0].mxu0 %v2033
        %v2096 = vpop.f32.mrb[0].mxu0
        %v2097 = vadd.f32 0.0, %v2096
        %v2098 = vpop.f32.mrb[0].mxu0
        %v2099 = vpop.f32.mrb[0].mxu0
        %v2100 = vadd.f32 0.0, %v2099
        %v2101 = vpop.f32.mrb[0].mxu0
        %2102 = vmatprep.mubr.bf16.mxu0 0
        %2103 = vmatmul.mubr.bf16.gmra.mrb[0].mxu0 %v2036
        %v2104 = vpop.f32.mrb[0].mxu0
        %v2105 = vadd.f32 0.0, %v2104
        %v2106 = vpop.f32.mrb[0].mxu0
        %v2107 = vpop.f32.mrb[0].mxu0
        %v2108 = vadd.f32 0.0, %v2107
        %v2109 = vpop.f32.mrb[0].mxu0
        %2110 = vmatprep.mubr.bf16.mxu0 0
        %2111 = vmatmul.mubr.bf16.gmra.mrb[0].mxu0 %v2039
        %v2112 = vpop.f32.mrb[0].mxu0
        %v2113 = vadd.f32 0.0, %v2112
        %v2114 = vpop.f32.mrb[0].mxu0
        %v2115 = vpop.f32.mrb[0].mxu0
        %v2116 = vadd.f32 0.0, %v2115
        %v2117 = vpop.f32.mrb[0].mxu0
        %2118 = vmatprep.mubr.bf16.mxu0 0
        %2119 = vmatmul.mubr.bf16.gmra.mrb[0].mxu0 %v2042
        %v2120 = vpop.f32.mrb[0].mxu0
        %v2121 = vadd.f32 0.0, %v2120
        %v2122 = vpop.f32.mrb[0].mxu0
        %v2123 = vpop.f32.mrb[0].mxu0
        %v2124 = vadd.f32 0.0, %v2123
        %v2125 = vpop.f32.mrb[0].mxu0
        %2126 = vmatprep.mubr.bf16.mxu0 0
        %2127 = vmatmul.mubr.bf16.gmra.mrb[0].mxu0 %v2045
        %v2128 = vpop.f32.mrb[0].mxu0
        %v2129 = vadd.f32 0.0, %v2128
        %v2130 = vpop.f32.mrb[0].mxu0
        %v2131 = vpop.f32.mrb[0].mxu0
        %v2132 = vpop.f32.mrb[0].mxu0
        %2133 = vdwg.mxu0
        %v2134 = vsel %vm1261, %v2097, -inf
        %2135 = vmax.xlane.f32.xlu0 %v2134
        %v2136 = vpop.xlane.xlu0 %2135
        %v2137 = vsel %vm1261, %v2100, -inf
        %2138 = vmax.xlane.f32.xlu0 %v2137
        %v2139 = vpop.xlane.xlu0 %2138
        %v2140 = vsel %vm1261, %v2105, -inf
        %2141 = vmax.xlane.f32.xlu0 %v2140
        %v2142 = vpop.xlane.xlu0 %2141
        %v2143 = vsel %vm1261, %v2108, -inf
        %2144 = vmax.xlane.f32.xlu0 %v2143
        %v2145 = vpop.xlane.xlu0 %2144
        %v2146 = vsel %vm1261, %v2113, -inf
        %2147 = vmax.xlane.f32.xlu0 %v2146
        %v2148 = vpop.xlane.xlu0 %2147
        %v2149 = vsel %vm1261, %v2116, -inf
        %2150 = vmax.xlane.f32.xlu0 %v2149
        %v2151 = vpop.xlane.xlu0 %2150
        %v2152 = vsel %vm1261, %v2121, -inf
        %2153 = vmax.xlane.f32.xlu0 %v2152
        %v2154 = vpop.xlane.xlu0 %2153
        %v2155 = vsel %vm1261, %v2124, -inf
        %2156 = vmax.xlane.f32.xlu0 %v2155
        %v2157 = vpop.xlane.xlu0 %2156
        %v2158 = vsel %vm1286, %v2129, -inf
        %2159 = vmax.xlane.f32.xlu0 %v2158
        %v2160 = vpop.xlane.xlu0 %2159
        %v2161 = vsub.f32 %v2097, %v2136
        %v2162 = vsub.f32 %v2100, %v2139
        %v2163 = vsub.f32 %v2105, %v2142
        %v2164 = vsub.f32 %v2108, %v2145
        %v2165 = vsub.f32 %v2113, %v2148
        %v2166 = vsub.f32 %v2116, %v2151
        %v2167 = vsub.f32 %v2121, %v2154
        %v2168 = vsub.f32 %v2124, %v2157
        %v2169 = vsub.f32 %v2129, %v2160
        %v2170 = vmul.f32 %v2161, 1.442695
        %v2171 = vpow.pop %v2170
        %v2172 = vmul.f32 %v2162, 1.442695
        %v2173 = vpow.pop %v2172
        %v2174 = vmul.f32 %v2163, 1.442695
        %v2175 = vpow.pop %v2174
        %v2176 = vmul.f32 %v2164, 1.442695
        %v2177 = vpow.pop %v2176
        %v2178 = vmul.f32 %v2165, 1.442695
        %v2179 = vpow.pop %v2178
        %v2180 = vmul.f32 %v2166, 1.442695
        %v2181 = vpow.pop %v2180
        %v2182 = vmul.f32 %v2167, 1.442695
        %v2183 = vpow.pop %v2182
        %v2184 = vmul.f32 %v2168, 1.442695
        %v2185 = vpow.pop %v2184
        %v2186 = vmul.f32 %v2169, 1.442695
        %v2187 = vpow.pop %v2186
        %v2188 = vsel %vm1261, %v2171, 0.0
        %2189 = vadd.xlane.f32.xlu0 %v2188
        %v2190 = vpop.xlane.xlu0 %2189
        %v2191 = vsel %vm1261, %v2173, 0.0
        %2192 = vadd.xlane.f32.xlu0 %v2191
        %v2193 = vpop.xlane.xlu0 %2192
        %v2194 = vsel %vm1261, %v2175, 0.0
        %2195 = vadd.xlane.f32.xlu0 %v2194
        %v2196 = vpop.xlane.xlu0 %2195
        %v2197 = vsel %vm1261, %v2177, 0.0
        %2198 = vadd.xlane.f32.xlu0 %v2197
        %v2199 = vpop.xlane.xlu0 %2198
        %v2200 = vsel %vm1261, %v2179, 0.0
        %2201 = vadd.xlane.f32.xlu0 %v2200
        %v2202 = vpop.xlane.xlu0 %2201
        %v2203 = vsel %vm1261, %v2181, 0.0
        %2204 = vadd.xlane.f32.xlu0 %v2203
        %v2205 = vpop.xlane.xlu0 %2204
        %v2206 = vsel %vm1261, %v2183, 0.0
        %2207 = vadd.xlane.f32.xlu0 %v2206
        %v2208 = vpop.xlane.xlu0 %2207
        %v2209 = vsel %vm1261, %v2185, 0.0
        %2210 = vadd.xlane.f32.xlu0 %v2209
        %v2211 = vpop.xlane.xlu0 %2210
        %v2212 = vsel %vm1286, %v2187, 0.0
        %2213 = vadd.xlane.f32.xlu0 %v2212
        %v2214 = vpop.xlane.xlu0 %2213
        %v2215 = vrcp.pop %v2190
        %v2216 = vrcp.pop %v2193
        %v2217 = vrcp.pop %v2196
        %v2218 = vrcp.pop %v2199
        %v2219 = vrcp.pop %v2202
        %v2220 = vrcp.pop %v2205
        %v2221 = vrcp.pop %v2208
        %v2222 = vrcp.pop %v2211
        %v2223 = vrcp.pop %v2214
        %v2224 = vmul.f32 %v2171, %v2215
        %v2225 = vmul.f32 %v2173, %v2216
        %v2226 = vmul.f32 %v2175, %v2217
        %v2227 = vmul.f32 %v2177, %v2218
        %v2228 = vmul.f32 %v2179, %v2219
        %v2229 = vmul.f32 %v2181, %v2220
        %v2230 = vmul.f32 %v2183, %v2221
        %v2231 = vmul.f32 %v2185, %v2222
        %v2232 = vmul.f32 %v2187, %v2223
        %v2233 = vpack.c.bf16 %v2225, %v2224
        %v2234 = vpack.c.bf16 %v2227, %v2226
        %v2235 = vpack.c.bf16 %v2229, %v2228
        %v2236 = vpack.c.bf16 %v2231, %v2230
        %v2237 = vpack.c.bf16 %v2232, %v2232
        %2238 = vrot.lane.b32.xlu0 %v1153, 64
        %v2239 = vpop.permute.xlu0 %2238
        %2240 = vrot.lane.b32.xlu0 %v1154, 64
        %v2241 = vpop.permute.xlu0 %2240
        %2242 = vrot.lane.b32.xlu0 %v1155, 64
        %v2243 = vpop.permute.xlu0 %2242
        %2244 = vrot.lane.b32.xlu0 %v1156, 64
        %v2245 = vpop.permute.xlu0 %2244
        %2246 = vrot.lane.b32.xlu0 %v1157, 64
        %v2247 = vpop.permute.xlu0 %2246
        %v2253 = vsel %vm1261, %v2233, 0
        %v2256 = vsel %vm1261, %v2234, 0
        %v2259 = vsel %vm1261, %v2235, 0
        %v2262 = vsel %vm1261, %v2236, 0
        %v2265 = vsel %vm1261, %v2237, 0
        %v2268 = vand.u32 %v2247, %v1383
        %2270 = vmatprep.subr.bf16.mxu0 0
        %2271 = vmatpush1.bf16.msra.mxu0 %v2239
        %2272 = vmatprep.subr.bf16.mxu0 0
        %2273 = vmatpush1.bf16.msra.mxu0 %v2241
        %2274 = vmatprep.subr.bf16.mxu0 0
        %2275 = vmatpush1.bf16.msra.mxu0 %v2243
        %2276 = vmatprep.subr.bf16.mxu0 0
        %2277 = vmatpush1.bf16.msra.mxu0 %v2245
        %2278 = vmatprep.subr.bf16.mxu0 0
        %2279 = vmatpush1.bf16.msra.mxu0 %v2268
        %2280 = vmatprep.subr.bf16.mxu0 0
        %2281 = vmatpush1.bf16.msra.mxu0 0
        %2282 = vmatprep.subr.bf16.mxu0 0
        %2283 = vmatpush1.bf16.msra.mxu0 0
        %2284 = vmatprep.subr.bf16.mxu0 0
        %2285 = vmatpush1.bf16.msra.mxu0 0
        %2286 = vmatprep.subr.bf16.mxu0 0
        %2287 = vmatpush1.bf16.msra.mxu0 0
        %2288 = vmatprep.subr.bf16.mxu0 0
        %2289 = vmatpush1.bf16.msra.mxu0 0
        %2290 = vmatprep.subr.bf16.mxu0 0
        %2291 = vmatpush1.bf16.msra.mxu0 0
        %2292 = vmatprep.subr.bf16.mxu0 0
        %2293 = vmatpush1.bf16.msra.mxu0 0
        %2294 = vmatprep.subr.bf16.mxu0 0
        %2295 = vmatpush1.bf16.msra.mxu0 0
        %2296 = vmatprep.subr.bf16.mxu0 0
        %2297 = vmatpush1.bf16.msra.mxu0 0
        %2298 = vmatprep.subr.bf16.mxu0 0
        %2299 = vmatpush1.bf16.msra.mxu0 0
        %2300 = vmatprep.subr.bf16.mxu0 0
        %2301 = vmatpush1.bf16.msra.mxu0 0
        %2302 = vmatprep.mubr.bf16.mxu0 0
        %2303 = vmatmul.mubr.bf16.gmra.mrb[0].mxu0 %v2253
        %v2304 = vpop.f32.mrb[0].mxu0
        %v2305 = vadd.f32 0.0, %v2304
        %v2306 = vpop.f32.mrb[0].mxu0
        %v2307 = vpop.f32.mrb[0].mxu0
        %v2308 = vadd.f32 0.0, %v2307
        %v2309 = vpop.f32.mrb[0].mxu0
        %2310 = vmatprep.mubr.bf16.mxu0 0
        %2311 = vmatmul.mubr.bf16.gmra.mrb[0].mxu0 %v2256
        %v2312 = vpop.f32.mrb[0].mxu0
        %v2313 = vadd.f32 0.0, %v2312
        %v2314 = vpop.f32.mrb[0].mxu0
        %v2315 = vpop.f32.mrb[0].mxu0
        %v2316 = vadd.f32 0.0, %v2315
        %v2317 = vpop.f32.mrb[0].mxu0
        %2318 = vmatprep.mubr.bf16.mxu0 0
        %2319 = vmatmul.mubr.bf16.gmra.mrb[0].mxu0 %v2259
        %v2320 = vpop.f32.mrb[0].mxu0
        %v2321 = vadd.f32 0.0, %v2320
        %v2322 = vpop.f32.mrb[0].mxu0
        %v2323 = vpop.f32.mrb[0].mxu0
        %v2324 = vadd.f32 0.0, %v2323
        %v2325 = vpop.f32.mrb[0].mxu0
        %2326 = vmatprep.mubr.bf16.mxu0 0
        %2327 = vmatmul.mubr.bf16.gmra.mrb[0].mxu0 %v2262
        %v2328 = vpop.f32.mrb[0].mxu0
        %v2329 = vadd.f32 0.0, %v2328
        %v2330 = vpop.f32.mrb[0].mxu0
        %v2331 = vpop.f32.mrb[0].mxu0
        %v2332 = vadd.f32 0.0, %v2331
        %v2333 = vpop.f32.mrb[0].mxu0
        %2334 = vmatprep.mubr.bf16.mxu0 0
        %2335 = vmatmul.mubr.bf16.gmra.mrb[0].mxu0 %v2265
        %v2336 = vpop.f32.mrb[0].mxu0
        %v2337 = vadd.f32 0.0, %v2336
        %v2338 = vpop.f32.mrb[0].mxu0
        %v2339 = vpop.f32.mrb[0].mxu0
        %v2340 = vpop.f32.mrb[0].mxu0
        %2341 = vdwg.mxu0
        %v2342 = vpack.c.bf16 %v2308, %v2305
        %v2343 = vpack.c.bf16 %v2316, %v2313
        %v2344 = vpack.c.bf16 %v2324, %v2321
        %v2345 = vpack.c.bf16 %v2332, %v2329
        %v2346 = vpack.c.bf16 %v2337, %v2337
        %v2351 = vunpack.c.l.b16 %v1135
        %v2352 = vunpack.c.l.b16 %v1136
        %v2353 = vunpack.c.l.b16 %v1137
        %v2354 = vunpack.c.l.b16 %v1138
        %v2355 = vpack.c.b16 %v2352, %v2351
        %v2356 = vpack.c.b16 %v2354, %v2353
        %v2360 = vsel %vm1158, %v2342, 0
        %v2363 = vsel %vm1158, %v2343, 0
        %v2366 = vsel %vm1158, %v2344, 0
        %v2369 = vsel %vm1158, %v2345, 0
        %v2372 = vsel %vm1158, %v2346, 0
        %2374 = vmatprep.subr.bf16.mxu0 0
        %2375 = vmatpush1.bf16.msra.mxu0 %v2355
        %2376 = vmatprep.subr.bf16.mxu0 0
        %2377 = vmatpush1.bf16.msra.mxu0 %v2356
        %2378 = vmatprep.subr.bf16.mxu0 0
        %2379 = vmatpush1.bf16.msra.mxu0 0
        %2380 = vmatprep.subr.bf16.mxu0 0
        %2381 = vmatpush1.bf16.msra.mxu0 0
        %2382 = vmatprep.subr.bf16.mxu0 0
        %2383 = vmatpush1.bf16.msra.mxu0 0
        %2384 = vmatprep.subr.bf16.mxu0 0
        %2385 = vmatpush1.bf16.msra.mxu0 0
        %2386 = vmatprep.subr.bf16.mxu0 0
        %2387 = vmatpush1.bf16.msra.mxu0 0
        %2388 = vmatprep.subr.bf16.mxu0 0
        %2389 = vmatpush1.bf16.msra.mxu0 0
        %2390 = vmatprep.subr.bf16.mxu0 0
        %2391 = vmatpush1.bf16.msra.mxu0 0
        %2392 = vmatprep.subr.bf16.mxu0 0
        %2393 = vmatpush1.bf16.msra.mxu0 0
        %2394 = vmatprep.subr.bf16.mxu0 0
        %2395 = vmatpush1.bf16.msra.mxu0 0
        %2396 = vmatprep.subr.bf16.mxu0 0
        %2397 = vmatpush1.bf16.msra.mxu0 0
        %2398 = vmatprep.subr.bf16.mxu0 0
        %2399 = vmatpush1.bf16.msra.mxu0 0
        %2400 = vmatprep.subr.bf16.mxu0 0
        %2401 = vmatpush1.bf16.msra.mxu0 0
        %2402 = vmatprep.subr.bf16.mxu0 0
        %2403 = vmatpush1.bf16.msra.mxu0 0
        %2404 = vmatprep.subr.bf16.mxu0 0
        %2405 = vmatpush1.bf16.msra.mxu0 0
        %2406 = vmatprep.mubr.bf16.mxu0 0
        %2407 = vmatmul.mubr.bf16.gmra.mrb[0].mxu0 %v2360
        %v2408 = vpop.f32.mrb[0].mxu0
        %v2409 = vadd.f32 0.0, %v2408
        %v2410 = vpop.f32.mrb[0].mxu0
        %v2411 = vpop.f32.mrb[0].mxu0
        %v2412 = vadd.f32 0.0, %v2411
        %v2413 = vpop.f32.mrb[0].mxu0
        %2414 = vmatprep.mubr.bf16.mxu0 0
        %2415 = vmatmul.mubr.bf16.gmra.mrb[0].mxu0 %v2363
        %v2416 = vpop.f32.mrb[0].mxu0
        %v2417 = vadd.f32 0.0, %v2416
        %v2418 = vpop.f32.mrb[0].mxu0
        %v2419 = vpop.f32.mrb[0].mxu0
        %v2420 = vadd.f32 0.0, %v2419
        %v2421 = vpop.f32.mrb[0].mxu0
        %2422 = vmatprep.mubr.bf16.mxu0 0
        %2423 = vmatmul.mubr.bf16.gmra.mrb[0].mxu0 %v2366
        %v2424 = vpop.f32.mrb[0].mxu0
        %v2425 = vadd.f32 0.0, %v2424
        %v2426 = vpop.f32.mrb[0].mxu0
        %v2427 = vpop.f32.mrb[0].mxu0
        %v2428 = vadd.f32 0.0, %v2427
        %v2429 = vpop.f32.mrb[0].mxu0
        %2430 = vmatprep.mubr.bf16.mxu0 0
        %2431 = vmatmul.mubr.bf16.gmra.mrb[0].mxu0 %v2369
        %v2432 = vpop.f32.mrb[0].mxu0
        %v2433 = vadd.f32 0.0, %v2432
        %v2434 = vpop.f32.mrb[0].mxu0
        %v2435 = vpop.f32.mrb[0].mxu0
        %v2436 = vadd.f32 0.0, %v2435
        %v2437 = vpop.f32.mrb[0].mxu0
        %2438 = vmatprep.mubr.bf16.mxu0 0
        %2439 = vmatmul.mubr.bf16.gmra.mrb[0].mxu0 %v2372
        %v2440 = vpop.f32.mrb[0].mxu0
        %v2441 = vadd.f32 0.0, %v2440
        %v2442 = vpop.f32.mrb[0].mxu0
        %v2443 = vpop.f32.mrb[0].mxu0
        %v2444 = vpop.f32.mrb[0].mxu0
        %2445 = vdwg.mxu0
        %v2446 = vadd.f32 %v1975, %v2409
        %v2447 = vadd.f32 %v1978, %v2412
        %v2448 = vadd.f32 %v1983, %v2417
        %v2449 = vadd.f32 %v1986, %v2420
        %v2450 = vadd.f32 %v1991, %v2425
        %v2451 = vadd.f32 %v1994, %v2428
        %v2452 = vadd.f32 %v1999, %v2433
        %v2453 = vadd.f32 %v2002, %v2436
        %v2454 = vadd.f32 %v2007, %v2441
        %2455 = vrot.lane.b32.xlu0 %v1143, 32
        %v2456 = vpop.permute.xlu0 %2455
        %2457 = vrot.lane.b32.xlu0 %v1144, 32
        %v2458 = vpop.permute.xlu0 %2457
        %2459 = vrot.lane.b32.xlu0 %v1145, 32
        %v2460 = vpop.permute.xlu0 %2459
        %2461 = vrot.lane.b32.xlu0 %v1146, 32
        %v2462 = vpop.permute.xlu0 %2461
        %2463 = vrot.lane.b32.xlu0 %v1147, 32
        %v2464 = vpop.permute.xlu0 %2463
        %2465 = vrot.lane.b32.xlu0 %v1148, 32
        %v2466 = vpop.permute.xlu0 %2465
        %2467 = vrot.lane.b32.xlu0 %v1149, 32
        %v2468 = vpop.permute.xlu0 %2467
        %2469 = vrot.lane.b32.xlu0 %v1150, 32
        %v2470 = vpop.permute.xlu0 %2469
        %2471 = vrot.lane.b32.xlu0 %v1151, 32
        %v2472 = vpop.permute.xlu0 %2471
        %2473 = vrot.lane.b32.xlu0 %v1152, 32
        %v2474 = vpop.permute.xlu0 %2473
        %v2476 = vsel %vm1158, %v2456, 0
        %v2479 = vsel %vm1158, %v2458, 0
        %v2482 = vsel %vm1158, %v2460, 0
        %v2485 = vsel %vm1158, %v2462, 0
        %v2488 = vsel %vm1158, %v2464, 0
        %v2491 = vsel %vm1158, %v2466, 0
        %v2494 = vsel %vm1158, %v2468, 0
        %v2497 = vsel %vm1158, %v2470, 0
        %v2500 = vsel %vm1158, %v2472, 0
        %v2503 = vsel %vm1158, %v2474, 0
        %2505 = vmatprep.subr.bf16.mxu0 0
        %2506 = vmatpush1.bf16.xpose.msra.mxu0 %v2491
        %2507 = vmatprep.subr.bf16.mxu0 0
        %2508 = vmatpush1.bf16.xpose.msra.mxu0 %v2494
        %2509 = vmatprep.subr.bf16.mxu0 0
        %2510 = vmatpush1.bf16.xpose.msra.mxu0 %v2497
        %2511 = vmatprep.subr.bf16.mxu0 0
        %2512 = vmatpush1.bf16.xpose.msra.mxu0 %v2500
        %2513 = vmatprep.subr.bf16.mxu0 0
        %2514 = vmatpush1.bf16.xpose.msra.mxu0 %v2503
        %2515 = vmatprep.subr.bf16.mxu0 0
        %2516 = vmatpush1.bf16.xpose.msra.mxu0 0
        %2517 = vmatprep.subr.bf16.mxu0 0
        %2518 = vmatpush1.bf16.xpose.msra.mxu0 0
        %2519 = vmatprep.subr.bf16.mxu0 0
        %2520 = vmatpush1.bf16.xpose.msra.mxu0 0
        %2521 = vmatprep.subr.bf16.mxu0 0
        %2522 = vmatpush1.bf16.xpose.msra.mxu0 0
        %2523 = vmatprep.subr.bf16.mxu0 0
        %2524 = vmatpush1.bf16.xpose.msra.mxu0 0
        %2525 = vmatprep.subr.bf16.mxu0 0
        %2526 = vmatpush1.bf16.xpose.msra.mxu0 0
        %2527 = vmatprep.subr.bf16.mxu0 0
        %2528 = vmatpush1.bf16.xpose.msra.mxu0 0
        %2529 = vmatprep.subr.bf16.mxu0 0
        %2530 = vmatpush1.bf16.xpose.msra.mxu0 0
        %2531 = vmatprep.subr.bf16.mxu0 0
        %2532 = vmatpush1.bf16.xpose.msra.mxu0 0
        %2533 = vmatprep.subr.bf16.mxu0 0
        %2534 = vmatpush1.bf16.xpose.msra.mxu0 0
        %2535 = vmatprep.subr.bf16.mxu0 0
        %2536 = vmatpush1.bf16.xpose.msra.mxu0 0
        %2537 = vmatprep.mubr.bf16.mxu0 0
        %2538 = vmatmul.mubr.bf16.gmra.mrb[0].mxu0 %v2476
        %v2539 = vpop.f32.mrb[0].mxu0
        %v2540 = vadd.f32 0.0, %v2539
        %v2541 = vpop.f32.mrb[0].mxu0
        %v2542 = vpop.f32.mrb[0].mxu0
        %v2543 = vadd.f32 0.0, %v2542
        %v2544 = vpop.f32.mrb[0].mxu0
        %2545 = vmatprep.mubr.bf16.mxu0 0
        %2546 = vmatmul.mubr.bf16.gmra.mrb[0].mxu0 %v2479
        %v2547 = vpop.f32.mrb[0].mxu0
        %v2548 = vadd.f32 0.0, %v2547
        %v2549 = vpop.f32.mrb[0].mxu0
        %v2550 = vpop.f32.mrb[0].mxu0
        %v2551 = vadd.f32 0.0, %v2550
        %v2552 = vpop.f32.mrb[0].mxu0
        %2553 = vmatprep.mubr.bf16.mxu0 0
        %2554 = vmatmul.mubr.bf16.gmra.mrb[0].mxu0 %v2482
        %v2555 = vpop.f32.mrb[0].mxu0
        %v2556 = vadd.f32 0.0, %v2555
        %v2557 = vpop.f32.mrb[0].mxu0
        %v2558 = vpop.f32.mrb[0].mxu0
        %v2559 = vadd.f32 0.0, %v2558
        %v2560 = vpop.f32.mrb[0].mxu0
        %2561 = vmatprep.mubr.bf16.mxu0 0
        %2562 = vmatmul.mubr.bf16.gmra.mrb[0].mxu0 %v2485
        %v2563 = vpop.f32.mrb[0].mxu0
        %v2564 = vadd.f32 0.0, %v2563
        %v2565 = vpop.f32.mrb[0].mxu0
        %v2566 = vpop.f32.mrb[0].mxu0
        %v2567 = vadd.f32 0.0, %v2566
        %v2568 = vpop.f32.mrb[0].mxu0
        %2569 = vmatprep.mubr.bf16.mxu0 0
        %2570 = vmatmul.mubr.bf16.gmra.mrb[0].mxu0 %v2488
        %v2571 = vpop.f32.mrb[0].mxu0
        %v2572 = vadd.f32 0.0, %v2571
        %v2573 = vpop.f32.mrb[0].mxu0
        %v2574 = vpop.f32.mrb[0].mxu0
        %v2575 = vpop.f32.mrb[0].mxu0
        %2576 = vdwg.mxu0
        %v2577 = vsel %vm1261, %v2540, -inf
        %2578 = vmax.xlane.f32.xlu0 %v2577
        %v2579 = vpop.xlane.xlu0 %2578
        %v2580 = vsel %vm1261, %v2543, -inf
        %2581 = vmax.xlane.f32.xlu0 %v2580
        %v2582 = vpop.xlane.xlu0 %2581
        %v2583 = vsel %vm1261, %v2548, -inf
        %2584 = vmax.xlane.f32.xlu0 %v2583
        %v2585 = vpop.xlane.xlu0 %2584
        %v2586 = vsel %vm1261, %v2551, -inf
        %2587 = vmax.xlane.f32.xlu0 %v2586
        %v2588 = vpop.xlane.xlu0 %2587
        %v2589 = vsel %vm1261, %v2556, -inf
        %2590 = vmax.xlane.f32.xlu0 %v2589
        %v2591 = vpop.xlane.xlu0 %2590
        %v2592 = vsel %vm1261, %v2559, -inf
        %2593 = vmax.xlane.f32.xlu0 %v2592
        %v2594 = vpop.xlane.xlu0 %2593
        %v2595 = vsel %vm1261, %v2564, -inf
        %2596 = vmax.xlane.f32.xlu0 %v2595
        %v2597 = vpop.xlane.xlu0 %2596
        %v2598 = vsel %vm1261, %v2567, -inf
        %2599 = vmax.xlane.f32.xlu0 %v2598
        %v2600 = vpop.xlane.xlu0 %2599
        %v2601 = vsel %vm1286, %v2572, -inf
        %2602 = vmax.xlane.f32.xlu0 %v2601
        %v2603 = vpop.xlane.xlu0 %2602
        %v2604 = vsub.f32 %v2540, %v2579
        %v2605 = vsub.f32 %v2543, %v2582
        %v2606 = vsub.f32 %v2548, %v2585
        %v2607 = vsub.f32 %v2551, %v2588
        %v2608 = vsub.f32 %v2556, %v2591
        %v2609 = vsub.f32 %v2559, %v2594
        %v2610 = vsub.f32 %v2564, %v2597
        %v2611 = vsub.f32 %v2567, %v2600
        %v2612 = vsub.f32 %v2572, %v2603
        %v2613 = vmul.f32 %v2604, 1.442695
        %v2614 = vpow.pop %v2613
        %v2615 = vmul.f32 %v2605, 1.442695
        %v2616 = vpow.pop %v2615
        %v2617 = vmul.f32 %v2606, 1.442695
        %v2618 = vpow.pop %v2617
        %v2619 = vmul.f32 %v2607, 1.442695
        %v2620 = vpow.pop %v2619
        %v2621 = vmul.f32 %v2608, 1.442695
        %v2622 = vpow.pop %v2621
        %v2623 = vmul.f32 %v2609, 1.442695
        %v2624 = vpow.pop %v2623
        %v2625 = vmul.f32 %v2610, 1.442695
        %v2626 = vpow.pop %v2625
        %v2627 = vmul.f32 %v2611, 1.442695
        %v2628 = vpow.pop %v2627
        %v2629 = vmul.f32 %v2612, 1.442695
        %v2630 = vpow.pop %v2629
        %v2631 = vsel %vm1261, %v2614, 0.0
        %2632 = vadd.xlane.f32.xlu0 %v2631
        %v2633 = vpop.xlane.xlu0 %2632
        %v2634 = vsel %vm1261, %v2616, 0.0
        %2635 = vadd.xlane.f32.xlu0 %v2634
        %v2636 = vpop.xlane.xlu0 %2635
        %v2637 = vsel %vm1261, %v2618, 0.0
        %2638 = vadd.xlane.f32.xlu0 %v2637
        %v2639 = vpop.xlane.xlu0 %2638
        %v2640 = vsel %vm1261, %v2620, 0.0
        %2641 = vadd.xlane.f32.xlu0 %v2640
        %v2642 = vpop.xlane.xlu0 %2641
        %v2643 = vsel %vm1261, %v2622, 0.0
        %2644 = vadd.xlane.f32.xlu0 %v2643
        %v2645 = vpop.xlane.xlu0 %2644
        %v2646 = vsel %vm1261, %v2624, 0.0
        %2647 = vadd.xlane.f32.xlu0 %v2646
        %v2648 = vpop.xlane.xlu0 %2647
        %v2649 = vsel %vm1261, %v2626, 0.0
        %2650 = vadd.xlane.f32.xlu0 %v2649
        %v2651 = vpop.xlane.xlu0 %2650
        %v2652 = vsel %vm1261, %v2628, 0.0
        %2653 = vadd.xlane.f32.xlu0 %v2652
        %v2654 = vpop.xlane.xlu0 %2653
        %v2655 = vsel %vm1286, %v2630, 0.0
        %2656 = vadd.xlane.f32.xlu0 %v2655
        %v2657 = vpop.xlane.xlu0 %2656
        %v2658 = vrcp.pop %v2633
        %v2659 = vrcp.pop %v2636
        %v2660 = vrcp.pop %v2639
        %v2661 = vrcp.pop %v2642
        %v2662 = vrcp.pop %v2645
        %v2663 = vrcp.pop %v2648
        %v2664 = vrcp.pop %v2651
        %v2665 = vrcp.pop %v2654
        %v2666 = vrcp.pop %v2657
        %v2667 = vmul.f32 %v2614, %v2658
        %v2668 = vmul.f32 %v2616, %v2659
        %v2669 = vmul.f32 %v2618, %v2660
        %v2670 = vmul.f32 %v2620, %v2661
        %v2671 = vmul.f32 %v2622, %v2662
        %v2672 = vmul.f32 %v2624, %v2663
        %v2673 = vmul.f32 %v2626, %v2664
        %v2674 = vmul.f32 %v2628, %v2665
        %v2675 = vmul.f32 %v2630, %v2666
        %v2676 = vpack.c.bf16 %v2668, %v2667
        %v2677 = vpack.c.bf16 %v2670, %v2669
        %v2678 = vpack.c.bf16 %v2672, %v2671
        %v2679 = vpack.c.bf16 %v2674, %v2673
        %v2680 = vpack.c.bf16 %v2675, %v2675
        %2681 = vrot.lane.b32.xlu0 %v1153, 32
        %v2682 = vpop.permute.xlu0 %2681
        %2683 = vrot.lane.b32.xlu0 %v1154, 32
        %v2684 = vpop.permute.xlu0 %2683
        %2685 = vrot.lane.b32.xlu0 %v1155, 32
        %v2686 = vpop.permute.xlu0 %2685
        %2687 = vrot.lane.b32.xlu0 %v1156, 32
        %v2688 = vpop.permute.xlu0 %2687
        %2689 = vrot.lane.b32.xlu0 %v1157, 32
        %v2690 = vpop.permute.xlu0 %2689
        %v2696 = vsel %vm1261, %v2676, 0
        %v2699 = vsel %vm1261, %v2677, 0
        %v2702 = vsel %vm1261, %v2678, 0
        %v2705 = vsel %vm1261, %v2679, 0
        %v2708 = vsel %vm1261, %v2680, 0
        %v2711 = vand.u32 %v2690, %v1383
        %2713 = vmatprep.subr.bf16.mxu0 0
        %2714 = vmatpush1.bf16.msra.mxu0 %v2682
        %2715 = vmatprep.subr.bf16.mxu0 0
        %2716 = vmatpush1.bf16.msra.mxu0 %v2684
        %2717 = vmatprep.subr.bf16.mxu0 0
        %2718 = vmatpush1.bf16.msra.mxu0 %v2686
        %2719 = vmatprep.subr.bf16.mxu0 0
        %2720 = vmatpush1.bf16.msra.mxu0 %v2688
        %2721 = vmatprep.subr.bf16.mxu0 0
        %2722 = vmatpush1.bf16.msra.mxu0 %v2711
        %2723 = vmatprep.subr.bf16.mxu0 0
        %2724 = vmatpush1.bf16.msra.mxu0 0
        %2725 = vmatprep.subr.bf16.mxu0 0
        %2726 = vmatpush1.bf16.msra.mxu0 0
        %2727 = vmatprep.subr.bf16.mxu0 0
        %2728 = vmatpush1.bf16.msra.mxu0 0
        %2729 = vmatprep.subr.bf16.mxu0 0
        %2730 = vmatpush1.bf16.msra.mxu0 0
        %2731 = vmatprep.subr.bf16.mxu0 0
        %2732 = vmatpush1.bf16.msra.mxu0 0
        %2733 = vmatprep.subr.bf16.mxu0 0
        %2734 = vmatpush1.bf16.msra.mxu0 0
        %2735 = vmatprep.subr.bf16.mxu0 0
        %2736 = vmatpush1.bf16.msra.mxu0 0
        %2737 = vmatprep.subr.bf16.mxu0 0
        %2738 = vmatpush1.bf16.msra.mxu0 0
        %2739 = vmatprep.subr.bf16.mxu0 0
        %2740 = vmatpush1.bf16.msra.mxu0 0
        %2741 = vmatprep.subr.bf16.mxu0 0
        %2742 = vmatpush1.bf16.msra.mxu0 0
        %2743 = vmatprep.subr.bf16.mxu0 0
        %2744 = vmatpush1.bf16.msra.mxu0 0
        %2745 = vmatprep.mubr.bf16.mxu0 0
        %2746 = vmatmul.mubr.bf16.gmra.mrb[0].mxu0 %v2696
        %v2747 = vpop.f32.mrb[0].mxu0
        %v2748 = vadd.f32 0.0, %v2747
        %v2749 = vpop.f32.mrb[0].mxu0
        %v2750 = vpop.f32.mrb[0].mxu0
        %v2751 = vadd.f32 0.0, %v2750
        %v2752 = vpop.f32.mrb[0].mxu0
        %2753 = vmatprep.mubr.bf16.mxu0 0
        %2754 = vmatmul.mubr.bf16.gmra.mrb[0].mxu0 %v2699
        %v2755 = vpop.f32.mrb[0].mxu0
        %v2756 = vadd.f32 0.0, %v2755
        %v2757 = vpop.f32.mrb[0].mxu0
        %v2758 = vpop.f32.mrb[0].mxu0
        %v2759 = vadd.f32 0.0, %v2758
        %v2760 = vpop.f32.mrb[0].mxu0
        %2761 = vmatprep.mubr.bf16.mxu0 0
        %2762 = vmatmul.mubr.bf16.gmra.mrb[0].mxu0 %v2702
        %v2763 = vpop.f32.mrb[0].mxu0
        %v2764 = vadd.f32 0.0, %v2763
        %v2765 = vpop.f32.mrb[0].mxu0
        %v2766 = vpop.f32.mrb[0].mxu0
        %v2767 = vadd.f32 0.0, %v2766
        %v2768 = vpop.f32.mrb[0].mxu0
        %2769 = vmatprep.mubr.bf16.mxu0 0
        %2770 = vmatmul.mubr.bf16.gmra.mrb[0].mxu0 %v2705
        %v2771 = vpop.f32.mrb[0].mxu0
        %v2772 = vadd.f32 0.0, %v2771
        %v2773 = vpop.f32.mrb[0].mxu0
        %v2774 = vpop.f32.mrb[0].mxu0
        %v2775 = vadd.f32 0.0, %v2774
        %v2776 = vpop.f32.mrb[0].mxu0
        %2777 = vmatprep.mubr.bf16.mxu0 0
        %2778 = vmatmul.mubr.bf16.gmra.mrb[0].mxu0 %v2708
        %v2779 = vpop.f32.mrb[0].mxu0
        %v2780 = vadd.f32 0.0, %v2779
        %v2781 = vpop.f32.mrb[0].mxu0
        %v2782 = vpop.f32.mrb[0].mxu0
        %v2783 = vpop.f32.mrb[0].mxu0
        %2784 = vdwg.mxu0
        %v2785 = vpack.c.bf16 %v2751, %v2748
        %v2786 = vpack.c.bf16 %v2759, %v2756
        %v2787 = vpack.c.bf16 %v2767, %v2764
        %v2788 = vpack.c.bf16 %v2775, %v2772
        %v2789 = vpack.c.bf16 %v2780, %v2780
        %v2794 = vunpack.c.l.b16 %v1139
        %v2795 = vunpack.c.l.b16 %v1140
        %v2796 = vunpack.c.l.b16 %v1141
        %v2797 = vunpack.c.l.b16 %v1142
        %v2798 = vpack.c.b16 %v2795, %v2794
        %v2799 = vpack.c.b16 %v2797, %v2796
        %v2803 = vsel %vm1158, %v2785, 0
        %v2806 = vsel %vm1158, %v2786, 0
        %v2809 = vsel %vm1158, %v2787, 0
        %v2812 = vsel %vm1158, %v2788, 0
        %v2815 = vsel %vm1158, %v2789, 0
        %2817 = vmatprep.subr.bf16.mxu0 0
        %2818 = vmatpush1.bf16.msra.mxu0 %v2798
        %2819 = vmatprep.subr.bf16.mxu0 0
        %2820 = vmatpush1.bf16.msra.mxu0 %v2799
        %2821 = vmatprep.subr.bf16.mxu0 0
        %2822 = vmatpush1.bf16.msra.mxu0 0
        %2823 = vmatprep.subr.bf16.mxu0 0
        %2824 = vmatpush1.bf16.msra.mxu0 0
        %2825 = vmatprep.subr.bf16.mxu0 0
        %2826 = vmatpush1.bf16.msra.mxu0 0
        %2827 = vmatprep.subr.bf16.mxu0 0
        %2828 = vmatpush1.bf16.msra.mxu0 0
        %2829 = vmatprep.subr.bf16.mxu0 0
        %2830 = vmatpush1.bf16.msra.mxu0 0
        %2831 = vmatprep.subr.bf16.mxu0 0
        %2832 = vmatpush1.bf16.msra.mxu0 0
        %2833 = vmatprep.subr.bf16.mxu0 0
        %2834 = vmatpush1.bf16.msra.mxu0 0
        %2835 = vmatprep.subr.bf16.mxu0 0
        %2836 = vmatpush1.bf16.msra.mxu0 0
        %2837 = vmatprep.subr.bf16.mxu0 0
        %2838 = vmatpush1.bf16.msra.mxu0 0
        %2839 = vmatprep.subr.bf16.mxu0 0
        %2840 = vmatpush1.bf16.msra.mxu0 0
        %2841 = vmatprep.subr.bf16.mxu0 0
        %2842 = vmatpush1.bf16.msra.mxu0 0
        %2843 = vmatprep.subr.bf16.mxu0 0
        %2844 = vmatpush1.bf16.msra.mxu0 0
        %2845 = vmatprep.subr.bf16.mxu0 0
        %2846 = vmatpush1.bf16.msra.mxu0 0
        %2847 = vmatprep.subr.bf16.mxu0 0
        %2848 = vmatpush1.bf16.msra.mxu0 0
        %2849 = vmatprep.mubr.bf16.mxu0 0
        %2850 = vmatmul.mubr.bf16.gmra.mrb[0].mxu0 %v2803
        %v2851 = vpop.f32.mrb[0].mxu0
        %v2852 = vadd.f32 0.0, %v2851
        %v2853 = vpop.f32.mrb[0].mxu0
        %v2854 = vpop.f32.mrb[0].mxu0
        %v2855 = vadd.f32 0.0, %v2854
        %v2856 = vpop.f32.mrb[0].mxu0
        %2857 = vmatprep.mubr.bf16.mxu0 0
        %2858 = vmatmul.mubr.bf16.gmra.mrb[0].mxu0 %v2806
        %v2859 = vpop.f32.mrb[0].mxu0
        %v2860 = vadd.f32 0.0, %v2859
        %v2861 = vpop.f32.mrb[0].mxu0
        %v2862 = vpop.f32.mrb[0].mxu0
        %v2863 = vadd.f32 0.0, %v2862
        %v2864 = vpop.f32.mrb[0].mxu0
        %2865 = vmatprep.mubr.bf16.mxu0 0
        %2866 = vmatmul.mubr.bf16.gmra.mrb[0].mxu0 %v2809
        %v2867 = vpop.f32.mrb[0].mxu0
        %v2868 = vadd.f32 0.0, %v2867
        %v2869 = vpop.f32.mrb[0].mxu0
        %v2870 = vpop.f32.mrb[0].mxu0
        %v2871 = vadd.f32 0.0, %v2870
        %v2872 = vpop.f32.mrb[0].mxu0
        %2873 = vmatprep.mubr.bf16.mxu0 0
        %2874 = vmatmul.mubr.bf16.gmra.mrb[0].mxu0 %v2812
        %v2875 = vpop.f32.mrb[0].mxu0
        %v2876 = vadd.f32 0.0, %v2875
        %v2877 = vpop.f32.mrb[0].mxu0
        %v2878 = vpop.f32.mrb[0].mxu0
        %v2879 = vadd.f32 0.0, %v2878
        %v2880 = vpop.f32.mrb[0].mxu0
        %2881 = vmatprep.mubr.bf16.mxu0 0
        %2882 = vmatmul.mubr.bf16.gmra.mrb[0].mxu0 %v2815
        %v2883 = vpop.f32.mrb[0].mxu0
        %v2884 = vadd.f32 0.0, %v2883
        %v2885 = vpop.f32.mrb[0].mxu0
        %v2886 = vpop.f32.mrb[0].mxu0
        %v2887 = vpop.f32.mrb[0].mxu0
        %2888 = vdwg.mxu0
        %v2889 = vadd.f32 %v2446, %v2852
        %v2890 = vadd.f32 %v2447, %v2855
        %v2891 = vadd.f32 %v2448, %v2860
        %v2892 = vadd.f32 %v2449, %v2863
        %v2893 = vadd.f32 %v2450, %v2868
        %v2894 = vadd.f32 %v2451, %v2871
        %v2895 = vadd.f32 %v2452, %v2876
        %v2896 = vadd.f32 %v2453, %v2879
        %v2897 = vadd.f32 %v2454, %v2884
        %v2898 = vld [vmem:[%s6] sm:$0x1]
        %v2899 = vunpack.c.l.bf16 %v2898
        %v2900 = vlaneseq
        %v2901 = vshrl.u32 %v2900, 7
        %v2902 = vsub.s32 0, %v2901
        %v2903 = vrot.slane %v2899, %v2902
        %v2904 = vadd.f32 %v2889, %v2903
        %v2905 = vadd.f32 %v2890, %v2903
        %v2906 = vadd.f32 %v2891, %v2903
        %v2907 = vadd.f32 %v2892, %v2903
        %v2908 = vadd.f32 %v2893, %v2903
        %v2909 = vadd.f32 %v2894, %v2903
        %v2910 = vadd.f32 %v2895, %v2903
        %v2911 = vadd.f32 %v2896, %v2903
        %v2912 = vadd.f32 %v2897, %v2903
        %v2913 = vpack.c.bf16 %v2905, %v2904
        %v2914 = vpack.c.bf16 %v2907, %v2906
        %v2915 = vpack.c.bf16 %v2909, %v2908
        %v2916 = vpack.c.bf16 %v2911, %v2910
        %v2917 = vpack.c.bf16 %v2912, %v2912
        %v2923 = vunpack.c.l.b16 %v2913
        %v2924 = vunpack.c.h.b16 %v2913
        %v2925 = vunpack.c.l.b16 %v2914
        %v2926 = vunpack.c.h.b16 %v2914
        %v2927 = vunpack.c.l.b16 %v2915
        %v2928 = vunpack.c.h.b16 %v2915
        %v2929 = vunpack.c.l.b16 %v2916
        %v2930 = vunpack.c.h.b16 %v2916
        %v2931 = vunpack.c.l.b16 %v2917
        %v2932 = vpack.c.b16 %v2923, %v2923
        %v2933 = vpack.c.b16 %v2924, %v2924
        %v2934 = vpack.c.b16 %v2925, %v2925
        %v2935 = vpack.c.b16 %v2926, %v2926
        %v2936 = vpack.c.b16 %v2927, %v2927
        %v2937 = vpack.c.b16 %v2928, %v2928
        %v2938 = vpack.c.b16 %v2929, %v2929
        %v2939 = vpack.c.b16 %v2930, %v2930
        %v2940 = vpack.c.b16 %v2931, %v2931
        %2950 = vst [vmem:[%s607] sm:$0xf] %v2932
        %2951 = vst [vmem:[%s607 + $0x4] sm:$0xf] %v2933
        %2952 = vst [vmem:[%s607 + $0x8] sm:$0xf] %v2934
        %2953 = vst [vmem:[%s607 + $0xc] sm:$0xf] %v2935
        %2954 = vst [vmem:[%s607 + $0x10] sm:$0xf] %v2936
        %2955 = vst [vmem:[%s607 + $0x14] sm:$0xf] %v2937
        %2956 = vst [vmem:[%s607 + $0x18] sm:$0xf] %v2938
        %2957 = vst [vmem:[%s607 + $0x1c] sm:$0xf] %v2939
        %vm2958 = vcmask 1040384
        %vm2959 = vsmask.f32 256
        %vm2960 = vmand %vm2958, %vm2959
        %v2961 = vld [vmem:[%s607 + $0x20] sm:$0x1]
        %v2962 = vsel %vm2960, %v2940, %v2961
        %2963 = vst [vmem:[%s607 + $0x20] sm:$0x1] %v2962
        %v2964 = vld [vmem:[%s7] sm:$0x1]
        %v2965 = vunpack.c.l.bf16 %v2964
        %v2966 = vlaneseq
        %v2967 = vshrl.u32 %v2966, 7
        %v2968 = vsub.s32 0, %v2967
        %v2969 = vrot.slane %v2965, %v2968
        %v2970 = vmul.f32 %v2969, %v2904
        %v2971 = vmul.f32 %v2969, %v2905
        %v2972 = vmul.f32 %v2969, %v2906
        %v2973 = vmul.f32 %v2969, %v2907
        %v2974 = vmul.f32 %v2969, %v2908
        %v2975 = vmul.f32 %v2969, %v2909
        %v2976 = vmul.f32 %v2969, %v2910
        %v2977 = vmul.f32 %v2969, %v2911
        %v2978 = vmul.f32 %v2969, %v2912
        %v2979 = vadd.f32 %v628, %v2970
        %v2980 = vadd.f32 %v629, %v2971
        %v2981 = vadd.f32 %v630, %v2972
        %v2982 = vadd.f32 %v631, %v2973
        %v2983 = vadd.f32 %v632, %v2974
        %v2984 = vadd.f32 %v633, %v2975
        %v2985 = vadd.f32 %v634, %v2976
        %v2986 = vadd.f32 %v635, %v2977
        %v2987 = vadd.f32 %v636, %v2978
        %v2988 = vld [vmem:[%s8] sm:$0x1]
        %v2989 = vunpack.c.l.bf16 %v2988
        %v2990 = vld [vmem:[%s9] sm:$0x1]
        %v2991 = vunpack.c.l.bf16 %v2990
        %2992 = vadd.xlane.f32.xlu0 %v2979
        %v2993 = vpop.xlane.xlu0 %2992
        %2994 = vadd.xlane.f32.xlu0 %v2980
        %v2995 = vpop.xlane.xlu0 %2994
        %2996 = vadd.xlane.f32.xlu0 %v2981
        %v2997 = vpop.xlane.xlu0 %2996
        %2998 = vadd.xlane.f32.xlu0 %v2982
        %v2999 = vpop.xlane.xlu0 %2998
        %3000 = vadd.xlane.f32.xlu0 %v2983
        %v3001 = vpop.xlane.xlu0 %3000
        %3002 = vadd.xlane.f32.xlu0 %v2984
        %v3003 = vpop.xlane.xlu0 %3002
        %3004 = vadd.xlane.f32.xlu0 %v2985
        %v3005 = vpop.xlane.xlu0 %3004
        %3006 = vadd.xlane.f32.xlu0 %v2986
        %v3007 = vpop.xlane.xlu0 %3006
        %v3008 = vsel %vm657, %v2987, 0.0
        %3009 = vadd.xlane.f32.xlu0 %v3008
        %v3010 = vpop.xlane.xlu0 %3009
        %v3011 = vmul.f32 %v2993, %v661
        %v3012 = vmul.f32 %v2995, %v661
        %v3013 = vmul.f32 %v2997, %v661
        %v3014 = vmul.f32 %v2999, %v661
        %v3015 = vmul.f32 %v3001, %v661
        %v3016 = vmul.f32 %v3003, %v661
        %v3017 = vmul.f32 %v3005, %v661
        %v3018 = vmul.f32 %v3007, %v661
        %v3019 = vmul.f32 %v3010, %v661
        %v3020 = vsub.f32 %v2979, %v3011
        %v3021 = vsub.f32 %v2980, %v3012
        %v3022 = vsub.f32 %v2981, %v3013
        %v3023 = vsub.f32 %v2982, %v3014
        %v3024 = vsub.f32 %v2983, %v3015
        %v3025 = vsub.f32 %v2984, %v3016
        %v3026 = vsub.f32 %v2985, %v3017
        %v3027 = vsub.f32 %v2986, %v3018
        %v3028 = vsub.f32 %v2987, %v3019
        %v3029 = vmul.f32 %v3020, %v3020
        %v3030 = vmul.f32 %v3021, %v3021
        %v3031 = vmul.f32 %v3022, %v3022
        %v3032 = vmul.f32 %v3023, %v3023
        %v3033 = vmul.f32 %v3024, %v3024
        %v3034 = vmul.f32 %v3025, %v3025
        %v3035 = vmul.f32 %v3026, %v3026
        %v3036 = vmul.f32 %v3027, %v3027
        %v3037 = vmul.f32 %v3028, %v3028
        %3038 = vadd.xlane.f32.xlu0 %v3029
        %v3039 = vpop.xlane.xlu0 %3038
        %3040 = vadd.xlane.f32.xlu0 %v3030
        %v3041 = vpop.xlane.xlu0 %3040
        %3042 = vadd.xlane.f32.xlu0 %v3031
        %v3043 = vpop.xlane.xlu0 %3042
        %3044 = vadd.xlane.f32.xlu0 %v3032
        %v3045 = vpop.xlane.xlu0 %3044
        %3046 = vadd.xlane.f32.xlu0 %v3033
        %v3047 = vpop.xlane.xlu0 %3046
        %3048 = vadd.xlane.f32.xlu0 %v3034
        %v3049 = vpop.xlane.xlu0 %3048
        %3050 = vadd.xlane.f32.xlu0 %v3035
        %v3051 = vpop.xlane.xlu0 %3050
        %3052 = vadd.xlane.f32.xlu0 %v3036
        %v3053 = vpop.xlane.xlu0 %3052
        %v3054 = vsel %vm657, %v3037, 0.0
        %3055 = vadd.xlane.f32.xlu0 %v3054
        %v3056 = vpop.xlane.xlu0 %3055
        %v3057 = vmul.f32 %v3039, %v661
        %v3058 = vmul.f32 %v3041, %v661
        %v3059 = vmul.f32 %v3043, %v661
        %v3060 = vmul.f32 %v3045, %v661
        %v3061 = vmul.f32 %v3047, %v661
        %v3062 = vmul.f32 %v3049, %v661
        %v3063 = vmul.f32 %v3051, %v661
        %v3064 = vmul.f32 %v3053, %v661
        %v3065 = vmul.f32 %v3056, %v661
        %v3066 = vadd.f32 %v3057, 1e-05
        %v3067 = vadd.f32 %v3058, 1e-05
        %v3068 = vadd.f32 %v3059, 1e-05
        %v3069 = vadd.f32 %v3060, 1e-05
        %v3070 = vadd.f32 %v3061, 1e-05
        %v3071 = vadd.f32 %v3062, 1e-05
        %v3072 = vadd.f32 %v3063, 1e-05
        %v3073 = vadd.f32 %v3064, 1e-05
        %v3074 = vadd.f32 %v3065, 1e-05
        %v3075 = vrsqrt.pop %v3066
        %v3076 = vrsqrt.pop %v3067
        %v3077 = vrsqrt.pop %v3068
        %v3078 = vrsqrt.pop %v3069
        %v3079 = vrsqrt.pop %v3070
        %v3080 = vrsqrt.pop %v3071
        %v3081 = vrsqrt.pop %v3072
        %v3082 = vrsqrt.pop %v3073
        %v3083 = vrsqrt.pop %v3074
        %v3084 = vmul.f32 %v3020, %v3075
        %v3085 = vmul.f32 %v3021, %v3076
        %v3086 = vmul.f32 %v3022, %v3077
        %v3087 = vmul.f32 %v3023, %v3078
        %v3088 = vmul.f32 %v3024, %v3079
        %v3089 = vmul.f32 %v3025, %v3080
        %v3090 = vmul.f32 %v3026, %v3081
        %v3091 = vmul.f32 %v3027, %v3082
        %v3092 = vmul.f32 %v3028, %v3083
        %v3093 = vlaneseq
        %v3094 = vshrl.u32 %v3093, 7
        %v3095 = vsub.s32 0, %v3094
        %v3096 = vrot.slane %v2989, %v3095
        %v3097 = vmul.f32 %v3084, %v3096
        %v3098 = vmul.f32 %v3085, %v3096
        %v3099 = vmul.f32 %v3086, %v3096
        %v3100 = vmul.f32 %v3087, %v3096
        %v3101 = vmul.f32 %v3088, %v3096
        %v3102 = vmul.f32 %v3089, %v3096
        %v3103 = vmul.f32 %v3090, %v3096
        %v3104 = vmul.f32 %v3091, %v3096
        %v3105 = vmul.f32 %v3092, %v3096
        %v3106 = vlaneseq
        %v3107 = vshrl.u32 %v3106, 7
        %v3108 = vsub.s32 0, %v3107
        %v3109 = vrot.slane %v2991, %v3108
        %v3110 = vadd.f32 %v3097, %v3109
        %v3111 = vadd.f32 %v3098, %v3109
        %v3112 = vadd.f32 %v3099, %v3109
        %v3113 = vadd.f32 %v3100, %v3109
        %v3114 = vadd.f32 %v3101, %v3109
        %v3115 = vadd.f32 %v3102, %v3109
        %v3116 = vadd.f32 %v3103, %v3109
        %v3117 = vadd.f32 %v3104, %v3109
        %v3118 = vadd.f32 %v3105, %v3109
        %v3119 = vpack.c.bf16 %v3111, %v3110
        %v3120 = vpack.c.bf16 %v3113, %v3112
        %v3121 = vpack.c.bf16 %v3115, %v3114
        %v3122 = vpack.c.bf16 %v3117, %v3116
        %v3123 = vpack.c.bf16 %v3118, %v3118
        %v3124 = vld [vmem:[#allocation4] sm:$0xff]
        %v3125 = vld [vmem:[#allocation4 + $0x8] sm:$0xff]
        %v3126 = vld [vmem:[#allocation4 + $0x10] sm:$0xff]
        %v3127 = vld [vmem:[#allocation4 + $0x18] sm:$0xff]
        %v3128 = vld [vmem:[#allocation4 + $0x20] sm:$0xff]
        %v3129 = vld [vmem:[#allocation4 + $0x28] sm:$0xff]
        %v3130 = vld [vmem:[#allocation4 + $0x30] sm:$0xff]
        %v3131 = vld [vmem:[#allocation4 + $0x38] sm:$0xff]
        %v3132 = vld [vmem:[#allocation4 + $0x40] sm:$0xff]
        %v3133 = vld [vmem:[#allocation4 + $0x48] sm:$0xff]
        %v3134 = vld [vmem:[#allocation4 + $0x50] sm:$0xff]
        %v3135 = vld [vmem:[#allocation4 + $0x58] sm:$0xff]
        %v3136 = vld [vmem:[#allocation4 + $0x60] sm:$0xff]
        %v3137 = vld [vmem:[#allocation4 + $0x68] sm:$0xff]
        %v3138 = vld [vmem:[#allocation4 + $0x70] sm:$0xff]
        %v3139 = vld [vmem:[#allocation4 + $0x78] sm:$0xff]
        %v3140 = vld [vmem:[#allocation4 + $0x80] sm:$0xff]
        %v3141 = vld [vmem:[#allocation4 + $0x88] sm:$0xff]
        %v3142 = vld [vmem:[#allocation4 + $0x90] sm:$0xff]
        %v3143 = vld [vmem:[#allocation4 + $0x98] sm:$0xff]
        %v3144 = vld [vmem:[#allocation4 + $0xa0] sm:$0xff]
        %v3145 = vld [vmem:[#allocation4 + $0xa8] sm:$0xff]
        %v3146 = vld [vmem:[#allocation4 + $0xb0] sm:$0xff]
        %v3147 = vld [vmem:[#allocation4 + $0xb8] sm:$0xff]
        %v3148 = vld [vmem:[#allocation4 + $0xc0] sm:$0xff]
        %v3149 = vld [vmem:[#allocation4 + $0xc8] sm:$0xff]
        %v3150 = vld [vmem:[#allocation4 + $0xd0] sm:$0xff]
        %v3151 = vld [vmem:[#allocation4 + $0xd8] sm:$0xff]
        %v3152 = vld [vmem:[#allocation4 + $0xe0] sm:$0xff]
        %v3153 = vld [vmem:[#allocation4 + $0xe8] sm:$0xff]
        %v3154 = vld [vmem:[#allocation4 + $0xf0] sm:$0xff]
        %v3155 = vld [vmem:[#allocation4 + $0xf8] sm:$0xff]
        %v3156 = vld [vmem:[%s11] sm:$0xf]
        %v3157 = vunpack.c.l.bf16 %v3156
        %v3159 = vlaneseq
        %v3160 = vshrl.u32 %v3159, 7
        %v3161 = vsub.s32 0, %v3160
        %v3162 = vrot.slane %v3157, %v3161
        %v3163 = vlaneseq
        %v3164 = vshrl.u32 %v3163, 7
        %v3165 = vsub.s32 2, %v3164
        %v3166 = vrot.slane %v3157, %v3165
        %v3167 = vlaneseq
        %v3168 = vshrl.u32 %v3167, 7
        %v3169 = vsub.s32 4, %v3168
        %v3170 = vrot.slane %v3157, %v3169
        %v3171 = vlaneseq
        %v3172 = vshrl.u32 %v3171, 7
        %v3173 = vsub.s32 6, %v3172
        %v3174 = vrot.slane %v3157, %v3173
        %v3179 = vlaneseq
        %v3180 = vshrl.u32 %v3179, 7
        %v3181 = vsub.s32 0, %v3180
        %v3182 = vrot.slane %v3162, %v3181
        %v3183 = vlaneseq
        %v3184 = vshrl.u32 %v3183, 7
        %v3185 = vsub.s32 0, %v3184
        %v3186 = vrot.slane %v3166, %v3185
        %v3187 = vlaneseq
        %v3188 = vshrl.u32 %v3187, 7
        %v3189 = vsub.s32 0, %v3188
        %v3190 = vrot.slane %v3170, %v3189
        %v3191 = vlaneseq
        %v3192 = vshrl.u32 %v3191, 7
        %v3193 = vsub.s32 0, %v3192
        %v3194 = vrot.slane %v3174, %v3193
        %v3227 = vunpack.c.l.b16 %v3124
        %v3228 = vunpack.c.h.b16 %v3124
        %v3229 = vunpack.c.l.b16 %v3125
        %v3230 = vunpack.c.h.b16 %v3125
        %v3231 = vunpack.c.l.b16 %v3126
        %v3232 = vunpack.c.h.b16 %v3126
        %v3233 = vunpack.c.l.b16 %v3127
        %v3234 = vunpack.c.h.b16 %v3127
        %v3235 = vunpack.c.l.b16 %v3128
        %v3236 = vunpack.c.h.b16 %v3128
        %v3237 = vunpack.c.l.b16 %v3129
        %v3238 = vunpack.c.h.b16 %v3129
        %v3239 = vunpack.c.l.b16 %v3130
        %v3240 = vunpack.c.h.b16 %v3130
        %v3241 = vunpack.c.l.b16 %v3131
        %v3242 = vunpack.c.h.b16 %v3131
        %v3243 = vunpack.c.l.b16 %v3132
        %v3244 = vunpack.c.h.b16 %v3132
        %v3245 = vunpack.c.l.b16 %v3133
        %v3246 = vunpack.c.h.b16 %v3133
        %v3247 = vunpack.c.l.b16 %v3134
        %v3248 = vunpack.c.h.b16 %v3134
        %v3249 = vunpack.c.l.b16 %v3135
        %v3250 = vunpack.c.h.b16 %v3135
        %v3251 = vunpack.c.l.b16 %v3136
        %v3252 = vunpack.c.h.b16 %v3136
        %v3253 = vunpack.c.l.b16 %v3137
        %v3254 = vunpack.c.h.b16 %v3137
        %v3255 = vunpack.c.l.b16 %v3138
        %v3256 = vunpack.c.h.b16 %v3138
        %v3257 = vunpack.c.l.b16 %v3139
        %v3258 = vunpack.c.h.b16 %v3139
        %v3259 = vunpack.c.l.b16 %v3140
        %v3260 = vunpack.c.h.b16 %v3140
        %v3261 = vunpack.c.l.b16 %v3141
        %v3262 = vunpack.c.h.b16 %v3141
        %v3263 = vunpack.c.l.b16 %v3142
        %v3264 = vunpack.c.h.b16 %v3142
        %v3265 = vunpack.c.l.b16 %v3143
        %v3266 = vunpack.c.h.b16 %v3143
        %v3267 = vunpack.c.l.b16 %v3144
        %v3268 = vunpack.c.h.b16 %v3144
        %v3269 = vunpack.c.l.b16 %v3145
        %v3270 = vunpack.c.h.b16 %v3145
        %v3271 = vunpack.c.l.b16 %v3146
        %v3272 = vunpack.c.h.b16 %v3146
        %v3273 = vunpack.c.l.b16 %v3147
        %v3274 = vunpack.c.h.b16 %v3147
        %v3275 = vunpack.c.l.b16 %v3148
        %v3276 = vunpack.c.h.b16 %v3148
        %v3277 = vunpack.c.l.b16 %v3149
        %v3278 = vunpack.c.h.b16 %v3149
        %v3279 = vunpack.c.l.b16 %v3150
        %v3280 = vunpack.c.h.b16 %v3150
        %v3281 = vunpack.c.l.b16 %v3151
        %v3282 = vunpack.c.h.b16 %v3151
        %v3283 = vunpack.c.l.b16 %v3152
        %v3284 = vunpack.c.h.b16 %v3152
        %v3285 = vunpack.c.l.b16 %v3153
        %v3286 = vunpack.c.h.b16 %v3153
        %v3287 = vunpack.c.l.b16 %v3154
        %v3288 = vunpack.c.h.b16 %v3154
        %v3289 = vunpack.c.l.b16 %v3155
        %v3290 = vunpack.c.h.b16 %v3155
        %v3291 = vpack.c.b16 %v3231, %v3227
        %v3292 = vpack.c.b16 %v3232, %v3228
        %v3293 = vpack.c.b16 %v3233, %v3229
        %v3294 = vpack.c.b16 %v3234, %v3230
        %v3295 = vpack.c.b16 %v3239, %v3235
        %v3296 = vpack.c.b16 %v3240, %v3236
        %v3297 = vpack.c.b16 %v3241, %v3237
        %v3298 = vpack.c.b16 %v3242, %v3238
        %v3299 = vpack.c.b16 %v3247, %v3243
        %v3300 = vpack.c.b16 %v3248, %v3244
        %v3301 = vpack.c.b16 %v3249, %v3245
        %v3302 = vpack.c.b16 %v3250, %v3246
        %v3303 = vpack.c.b16 %v3255, %v3251
        %v3304 = vpack.c.b16 %v3256, %v3252
        %v3305 = vpack.c.b16 %v3257, %v3253
        %v3306 = vpack.c.b16 %v3258, %v3254
        %v3307 = vpack.c.b16 %v3263, %v3259
        %v3308 = vpack.c.b16 %v3264, %v3260
        %v3309 = vpack.c.b16 %v3265, %v3261
        %v3310 = vpack.c.b16 %v3266, %v3262
        %v3311 = vpack.c.b16 %v3271, %v3267
        %v3312 = vpack.c.b16 %v3272, %v3268
        %v3313 = vpack.c.b16 %v3273, %v3269
        %v3314 = vpack.c.b16 %v3274, %v3270
        %v3315 = vpack.c.b16 %v3279, %v3275
        %v3316 = vpack.c.b16 %v3280, %v3276
        %v3317 = vpack.c.b16 %v3281, %v3277
        %v3318 = vpack.c.b16 %v3282, %v3278
        %v3319 = vpack.c.b16 %v3287, %v3283
        %v3320 = vpack.c.b16 %v3288, %v3284
        %v3321 = vpack.c.b16 %v3289, %v3285
        %v3322 = vpack.c.b16 %v3290, %v3286
        %3355 = vmatprep.subr.bf16.mxu0 %v3292
        %3356 = vmatpush1.bf16.msra.mxu0 %v3291
        %3357 = vmatprep.subr.bf16.mxu0 %v3296
        %3358 = vmatpush1.bf16.msra.mxu0 %v3295
        %3359 = vmatprep.subr.bf16.mxu0 %v3300
        %3360 = vmatpush1.bf16.msra.mxu0 %v3299
        %3361 = vmatprep.subr.bf16.mxu0 %v3304
        %3362 = vmatpush1.bf16.msra.mxu0 %v3303
        %3363 = vmatprep.subr.bf16.mxu0 %v3308
        %3364 = vmatpush1.bf16.msra.mxu0 %v3307
        %3365 = vmatprep.subr.bf16.mxu0 %v3312
        %3366 = vmatpush1.bf16.msra.mxu0 %v3311
        %3367 = vmatprep.subr.bf16.mxu0 %v3316
        %3368 = vmatpush1.bf16.msra.mxu0 %v3315
        %3369 = vmatprep.subr.bf16.mxu0 %v3320
        %3370 = vmatpush1.bf16.msra.mxu0 %v3319
        %3371 = vmatprep.subr.bf16.mxu0 0
        %3372 = vmatpush1.bf16.msra.mxu0 0
        %3373 = vmatprep.subr.bf16.mxu0 0
        %3374 = vmatpush1.bf16.msra.mxu0 0
        %3375 = vmatprep.subr.bf16.mxu0 0
        %3376 = vmatpush1.bf16.msra.mxu0 0
        %3377 = vmatprep.subr.bf16.mxu0 0
        %3378 = vmatpush1.bf16.msra.mxu0 0
        %3379 = vmatprep.subr.bf16.mxu0 0
        %3380 = vmatpush1.bf16.msra.mxu0 0
        %3381 = vmatprep.subr.bf16.mxu0 0
        %3382 = vmatpush1.bf16.msra.mxu0 0
        %3383 = vmatprep.subr.bf16.mxu0 0
        %3384 = vmatpush1.bf16.msra.mxu0 0
        %3385 = vmatprep.subr.bf16.mxu0 0
        %3386 = vmatpush1.bf16.msra.mxu0 0
        %3387 = vmatprep.mubr.bf16.mxu0 0
        %3388 = vmatmul.mubr.bf16.gmra.mrb[0].mxu0 %v3119
        %v3389 = vpop.f32.mrb[0].mxu0
        %v3390 = vadd.f32 %v3182, %v3389
        %v3391 = vpop.f32.mrb[0].mxu0
        %v3392 = vadd.f32 %v3186, %v3391
        %v3393 = vpop.f32.mrb[0].mxu0
        %v3394 = vadd.f32 %v3182, %v3393
        %v3395 = vpop.f32.mrb[0].mxu0
        %v3396 = vadd.f32 %v3186, %v3395
        %3397 = vmatprep.mubr.bf16.mxu0 0
        %3398 = vmatmul.mubr.bf16.gmra.mrb[0].mxu0 %v3120
        %v3399 = vpop.f32.mrb[0].mxu0
        %v3400 = vadd.f32 %v3182, %v3399
        %v3401 = vpop.f32.mrb[0].mxu0
        %v3402 = vadd.f32 %v3186, %v3401
        %v3403 = vpop.f32.mrb[0].mxu0
        %v3404 = vadd.f32 %v3182, %v3403
        %v3405 = vpop.f32.mrb[0].mxu0
        %v3406 = vadd.f32 %v3186, %v3405
        %3407 = vmatprep.mubr.bf16.mxu0 0
        %3408 = vmatmul.mubr.bf16.gmra.mrb[0].mxu0 %v3121
        %v3409 = vpop.f32.mrb[0].mxu0
        %v3410 = vadd.f32 %v3182, %v3409
        %v3411 = vpop.f32.mrb[0].mxu0
        %v3412 = vadd.f32 %v3186, %v3411
        %v3413 = vpop.f32.mrb[0].mxu0
        %v3414 = vadd.f32 %v3182, %v3413
        %v3415 = vpop.f32.mrb[0].mxu0
        %v3416 = vadd.f32 %v3186, %v3415
        %3417 = vmatprep.mubr.bf16.mxu0 0
        %3418 = vmatmul.mubr.bf16.gmra.mrb[0].mxu0 %v3122
        %v3419 = vpop.f32.mrb[0].mxu0
        %v3420 = vadd.f32 %v3182, %v3419
        %v3421 = vpop.f32.mrb[0].mxu0
        %v3422 = vadd.f32 %v3186, %v3421
        %v3423 = vpop.f32.mrb[0].mxu0
        %v3424 = vadd.f32 %v3182, %v3423
        %v3425 = vpop.f32.mrb[0].mxu0
        %v3426 = vadd.f32 %v3186, %v3425
        %3427 = vmatprep.mubr.bf16.mxu0 0
        %3428 = vmatmul.mubr.bf16.gmra.mrb[0].mxu0 %v3123
        %v3429 = vpop.f32.mrb[0].mxu0
        %v3430 = vadd.f32 %v3182, %v3429
        %v3431 = vpop.f32.mrb[0].mxu0
        %v3432 = vadd.f32 %v3186, %v3431
        %v3433 = vpop.f32.mrb[0].mxu0
        %v3434 = vpop.f32.mrb[0].mxu0
        %3435 = vdwg.mxu0
        %3436 = vmatprep.subr.bf16.mxu0 %v3294
        %3437 = vmatpush1.bf16.msra.mxu0 %v3293
        %3438 = vmatprep.subr.bf16.mxu0 %v3298
        %3439 = vmatpush1.bf16.msra.mxu0 %v3297
        %3440 = vmatprep.subr.bf16.mxu0 %v3302
        %3441 = vmatpush1.bf16.msra.mxu0 %v3301
        %3442 = vmatprep.subr.bf16.mxu0 %v3306
        %3443 = vmatpush1.bf16.msra.mxu0 %v3305
        %3444 = vmatprep.subr.bf16.mxu0 %v3310
        %3445 = vmatpush1.bf16.msra.mxu0 %v3309
        %3446 = vmatprep.subr.bf16.mxu0 %v3314
        %3447 = vmatpush1.bf16.msra.mxu0 %v3313
        %3448 = vmatprep.subr.bf16.mxu0 %v3318
        %3449 = vmatpush1.bf16.msra.mxu0 %v3317
        %3450 = vmatprep.subr.bf16.mxu0 %v3322
        %3451 = vmatpush1.bf16.msra.mxu0 %v3321
        %3452 = vmatprep.subr.bf16.mxu0 0
        %3453 = vmatpush1.bf16.msra.mxu0 0
        %3454 = vmatprep.subr.bf16.mxu0 0
        %3455 = vmatpush1.bf16.msra.mxu0 0
        %3456 = vmatprep.subr.bf16.mxu0 0
        %3457 = vmatpush1.bf16.msra.mxu0 0
        %3458 = vmatprep.subr.bf16.mxu0 0
        %3459 = vmatpush1.bf16.msra.mxu0 0
        %3460 = vmatprep.subr.bf16.mxu0 0
        %3461 = vmatpush1.bf16.msra.mxu0 0
        %3462 = vmatprep.subr.bf16.mxu0 0
        %3463 = vmatpush1.bf16.msra.mxu0 0
        %3464 = vmatprep.subr.bf16.mxu0 0
        %3465 = vmatpush1.bf16.msra.mxu0 0
        %3466 = vmatprep.subr.bf16.mxu0 0
        %3467 = vmatpush1.bf16.msra.mxu0 0
        %3468 = vmatprep.mubr.bf16.mxu0 0
        %3469 = vmatmul.mubr.bf16.gmra.mrb[0].mxu0 %v3119
        %v3470 = vpop.f32.mrb[0].mxu0
        %v3471 = vadd.f32 %v3190, %v3470
        %v3472 = vpop.f32.mrb[0].mxu0
        %v3473 = vadd.f32 %v3194, %v3472
        %v3474 = vpop.f32.mrb[0].mxu0
        %v3475 = vadd.f32 %v3190, %v3474
        %v3476 = vpop.f32.mrb[0].mxu0
        %v3477 = vadd.f32 %v3194, %v3476
        %3478 = vmatprep.mubr.bf16.mxu0 0
        %3479 = vmatmul.mubr.bf16.gmra.mrb[0].mxu0 %v3120
        %v3480 = vpop.f32.mrb[0].mxu0
        %v3481 = vadd.f32 %v3190, %v3480
        %v3482 = vpop.f32.mrb[0].mxu0
        %v3483 = vadd.f32 %v3194, %v3482
        %v3484 = vpop.f32.mrb[0].mxu0
        %v3485 = vadd.f32 %v3190, %v3484
        %v3486 = vpop.f32.mrb[0].mxu0
        %v3487 = vadd.f32 %v3194, %v3486
        %3488 = vmatprep.mubr.bf16.mxu0 0
        %3489 = vmatmul.mubr.bf16.gmra.mrb[0].mxu0 %v3121
        %v3490 = vpop.f32.mrb[0].mxu0
        %v3491 = vadd.f32 %v3190, %v3490
        %v3492 = vpop.f32.mrb[0].mxu0
        %v3493 = vadd.f32 %v3194, %v3492
        %v3494 = vpop.f32.mrb[0].mxu0
        %v3495 = vadd.f32 %v3190, %v3494
        %v3496 = vpop.f32.mrb[0].mxu0
        %v3497 = vadd.f32 %v3194, %v3496
        %3498 = vmatprep.mubr.bf16.mxu0 0
        %3499 = vmatmul.mubr.bf16.gmra.mrb[0].mxu0 %v3122
        %v3500 = vpop.f32.mrb[0].mxu0
        %v3501 = vadd.f32 %v3190, %v3500
        %v3502 = vpop.f32.mrb[0].mxu0
        %v3503 = vadd.f32 %v3194, %v3502
        %v3504 = vpop.f32.mrb[0].mxu0
        %v3505 = vadd.f32 %v3190, %v3504
        %v3506 = vpop.f32.mrb[0].mxu0
        %v3507 = vadd.f32 %v3194, %v3506
        %3508 = vmatprep.mubr.bf16.mxu0 0
        %3509 = vmatmul.mubr.bf16.gmra.mrb[0].mxu0 %v3123
        %v3510 = vpop.f32.mrb[0].mxu0
        %v3511 = vadd.f32 %v3190, %v3510
        %v3512 = vpop.f32.mrb[0].mxu0
        %v3513 = vadd.f32 %v3194, %v3512
        %v3514 = vpop.f32.mrb[0].mxu0
        %v3515 = vpop.f32.mrb[0].mxu0
        %3516 = vdwg.mxu0
        %v3517 = vmul.f32 %v3390, %v3390
        %v3518 = vmul.f32 %v3392, %v3392
        %v3519 = vmul.f32 %v3471, %v3471
        %v3520 = vmul.f32 %v3473, %v3473
        %v3521 = vmul.f32 %v3394, %v3394
        %v3522 = vmul.f32 %v3396, %v3396
        %v3523 = vmul.f32 %v3475, %v3475
        %v3524 = vmul.f32 %v3477, %v3477
        %v3525 = vmul.f32 %v3400, %v3400
        %v3526 = vmul.f32 %v3402, %v3402
        %v3527 = vmul.f32 %v3481, %v3481
        %v3528 = vmul.f32 %v3483, %v3483
        %v3529 = vmul.f32 %v3404, %v3404
        %v3530 = vmul.f32 %v3406, %v3406
        %v3531 = vmul.f32 %v3485, %v3485
        %v3532 = vmul.f32 %v3487, %v3487
        %v3533 = vmul.f32 %v3410, %v3410
        %v3534 = vmul.f32 %v3412, %v3412
        %v3535 = vmul.f32 %v3491, %v3491
        %v3536 = vmul.f32 %v3493, %v3493
        %v3537 = vmul.f32 %v3414, %v3414
        %v3538 = vmul.f32 %v3416, %v3416
        %v3539 = vmul.f32 %v3495, %v3495
        %v3540 = vmul.f32 %v3497, %v3497
        %v3541 = vmul.f32 %v3420, %v3420
        %v3542 = vmul.f32 %v3422, %v3422
        %v3543 = vmul.f32 %v3501, %v3501
        %v3544 = vmul.f32 %v3503, %v3503
        %v3545 = vmul.f32 %v3424, %v3424
        %v3546 = vmul.f32 %v3426, %v3426
        %v3547 = vmul.f32 %v3505, %v3505
        %v3548 = vmul.f32 %v3507, %v3507
        %v3549 = vmul.f32 %v3430, %v3430
        %v3550 = vmul.f32 %v3432, %v3432
        %v3551 = vmul.f32 %v3511, %v3511
        %v3552 = vmul.f32 %v3513, %v3513
        %v3553 = vmul.f32 %v3390, %v3517
        %v3554 = vmul.f32 %v3392, %v3518
        %v3555 = vmul.f32 %v3471, %v3519
        %v3556 = vmul.f32 %v3473, %v3520
        %v3557 = vmul.f32 %v3394, %v3521
        %v3558 = vmul.f32 %v3396, %v3522
        %v3559 = vmul.f32 %v3475, %v3523
        %v3560 = vmul.f32 %v3477, %v3524
        %v3561 = vmul.f32 %v3400, %v3525
        %v3562 = vmul.f32 %v3402, %v3526
        %v3563 = vmul.f32 %v3481, %v3527
        %v3564 = vmul.f32 %v3483, %v3528
        %v3565 = vmul.f32 %v3404, %v3529
        %v3566 = vmul.f32 %v3406, %v3530
        %v3567 = vmul.f32 %v3485, %v3531
        %v3568 = vmul.f32 %v3487, %v3532
        %v3569 = vmul.f32 %v3410, %v3533
        %v3570 = vmul.f32 %v3412, %v3534
        %v3571 = vmul.f32 %v3491, %v3535
        %v3572 = vmul.f32 %v3493, %v3536
        %v3573 = vmul.f32 %v3414, %v3537
        %v3574 = vmul.f32 %v3416, %v3538
        %v3575 = vmul.f32 %v3495, %v3539
        %v3576 = vmul.f32 %v3497, %v3540
        %v3577 = vmul.f32 %v3420, %v3541
        %v3578 = vmul.f32 %v3422, %v3542
        %v3579 = vmul.f32 %v3501, %v3543
        %v3580 = vmul.f32 %v3503, %v3544
        %v3581 = vmul.f32 %v3424, %v3545
        %v3582 = vmul.f32 %v3426, %v3546
        %v3583 = vmul.f32 %v3505, %v3547
        %v3584 = vmul.f32 %v3507, %v3548
        %v3585 = vmul.f32 %v3430, %v3549
        %v3586 = vmul.f32 %v3432, %v3550
        %v3587 = vmul.f32 %v3511, %v3551
        %v3588 = vmul.f32 %v3513, %v3552
        %v3589 = vmul.f32 %v3553, 0.044715
        %v3590 = vmul.f32 %v3554, 0.044715
        %v3591 = vmul.f32 %v3555, 0.044715
        %v3592 = vmul.f32 %v3556, 0.044715
        %v3593 = vmul.f32 %v3557, 0.044715
        %v3594 = vmul.f32 %v3558, 0.044715
        %v3595 = vmul.f32 %v3559, 0.044715
        %v3596 = vmul.f32 %v3560, 0.044715
        %v3597 = vmul.f32 %v3561, 0.044715
        %v3598 = vmul.f32 %v3562, 0.044715
        %v3599 = vmul.f32 %v3563, 0.044715
        %v3600 = vmul.f32 %v3564, 0.044715
        %v3601 = vmul.f32 %v3565, 0.044715
        %v3602 = vmul.f32 %v3566, 0.044715
        %v3603 = vmul.f32 %v3567, 0.044715
        %v3604 = vmul.f32 %v3568, 0.044715
        %v3605 = vmul.f32 %v3569, 0.044715
        %v3606 = vmul.f32 %v3570, 0.044715
        %v3607 = vmul.f32 %v3571, 0.044715
        %v3608 = vmul.f32 %v3572, 0.044715
        %v3609 = vmul.f32 %v3573, 0.044715
        %v3610 = vmul.f32 %v3574, 0.044715
        %v3611 = vmul.f32 %v3575, 0.044715
        %v3612 = vmul.f32 %v3576, 0.044715
        %v3613 = vmul.f32 %v3577, 0.044715
        %v3614 = vmul.f32 %v3578, 0.044715
        %v3615 = vmul.f32 %v3579, 0.044715
        %v3616 = vmul.f32 %v3580, 0.044715
        %v3617 = vmul.f32 %v3581, 0.044715
        %v3618 = vmul.f32 %v3582, 0.044715
        %v3619 = vmul.f32 %v3583, 0.044715
        %v3620 = vmul.f32 %v3584, 0.044715
        %v3621 = vmul.f32 %v3585, 0.044715
        %v3622 = vmul.f32 %v3586, 0.044715
        %v3623 = vmul.f32 %v3587, 0.044715
        %v3624 = vmul.f32 %v3588, 0.044715
        %v3625 = vadd.f32 %v3390, %v3589
        %v3626 = vadd.f32 %v3392, %v3590
        %v3627 = vadd.f32 %v3471, %v3591
        %v3628 = vadd.f32 %v3473, %v3592
        %v3629 = vadd.f32 %v3394, %v3593
        %v3630 = vadd.f32 %v3396, %v3594
        %v3631 = vadd.f32 %v3475, %v3595
        %v3632 = vadd.f32 %v3477, %v3596
        %v3633 = vadd.f32 %v3400, %v3597
        %v3634 = vadd.f32 %v3402, %v3598
        %v3635 = vadd.f32 %v3481, %v3599
        %v3636 = vadd.f32 %v3483, %v3600
        %v3637 = vadd.f32 %v3404, %v3601
        %v3638 = vadd.f32 %v3406, %v3602
        %v3639 = vadd.f32 %v3485, %v3603
        %v3640 = vadd.f32 %v3487, %v3604
        %v3641 = vadd.f32 %v3410, %v3605
        %v3642 = vadd.f32 %v3412, %v3606
        %v3643 = vadd.f32 %v3491, %v3607
        %v3644 = vadd.f32 %v3493, %v3608
        %v3645 = vadd.f32 %v3414, %v3609
        %v3646 = vadd.f32 %v3416, %v3610
        %v3647 = vadd.f32 %v3495, %v3611
        %v3648 = vadd.f32 %v3497, %v3612
        %v3649 = vadd.f32 %v3420, %v3613
        %v3650 = vadd.f32 %v3422, %v3614
        %v3651 = vadd.f32 %v3501, %v3615
        %v3652 = vadd.f32 %v3503, %v3616
        %v3653 = vadd.f32 %v3424, %v3617
        %v3654 = vadd.f32 %v3426, %v3618
        %v3655 = vadd.f32 %v3505, %v3619
        %v3656 = vadd.f32 %v3507, %v3620
        %v3657 = vadd.f32 %v3430, %v3621
        %v3658 = vadd.f32 %v3432, %v3622
        %v3659 = vadd.f32 %v3511, %v3623
        %v3660 = vadd.f32 %v3513, %v3624
        %v3661 = vmul.f32 %v3625, 0.7978846
        %v3662 = vmul.f32 %v3626, 0.7978846
        %v3663 = vmul.f32 %v3627, 0.7978846
        %v3664 = vmul.f32 %v3628, 0.7978846
        %v3665 = vmul.f32 %v3629, 0.7978846
        %v3666 = vmul.f32 %v3630, 0.7978846
        %v3667 = vmul.f32 %v3631, 0.7978846
        %v3668 = vmul.f32 %v3632, 0.7978846
        %v3669 = vmul.f32 %v3633, 0.7978846
        %v3670 = vmul.f32 %v3634, 0.7978846
        %v3671 = vmul.f32 %v3635, 0.7978846
        %v3672 = vmul.f32 %v3636, 0.7978846
        %v3673 = vmul.f32 %v3637, 0.7978846
        %v3674 = vmul.f32 %v3638, 0.7978846
        %v3675 = vmul.f32 %v3639, 0.7978846
        %v3676 = vmul.f32 %v3640, 0.7978846
        %v3677 = vmul.f32 %v3641, 0.7978846
        %v3678 = vmul.f32 %v3642, 0.7978846
        %v3679 = vmul.f32 %v3643, 0.7978846
        %v3680 = vmul.f32 %v3644, 0.7978846
        %v3681 = vmul.f32 %v3645, 0.7978846
        %v3682 = vmul.f32 %v3646, 0.7978846
        %v3683 = vmul.f32 %v3647, 0.7978846
        %v3684 = vmul.f32 %v3648, 0.7978846
        %v3685 = vmul.f32 %v3649, 0.7978846
        %v3686 = vmul.f32 %v3650, 0.7978846
        %v3687 = vmul.f32 %v3651, 0.7978846
        %v3688 = vmul.f32 %v3652, 0.7978846
        %v3689 = vmul.f32 %v3653, 0.7978846
        %v3690 = vmul.f32 %v3654, 0.7978846
        %v3691 = vmul.f32 %v3655, 0.7978846
        %v3692 = vmul.f32 %v3656, 0.7978846
        %v3693 = vmul.f32 %v3657, 0.7978846
        %v3694 = vmul.f32 %v3658, 0.7978846
        %v3695 = vmul.f32 %v3659, 0.7978846
        %v3696 = vmul.f32 %v3660, 0.7978846
        %v3697 = vtanh.pop %v3661
        %v3698 = vtanh.pop %v3662
        %v3699 = vtanh.pop %v3663
        %v3700 = vtanh.pop %v3664
        %v3701 = vtanh.pop %v3665
        %v3702 = vtanh.pop %v3666
        %v3703 = vtanh.pop %v3667
        %v3704 = vtanh.pop %v3668
        %v3705 = vtanh.pop %v3669
        %v3706 = vtanh.pop %v3670
        %v3707 = vtanh.pop %v3671
        %v3708 = vtanh.pop %v3672
        %v3709 = vtanh.pop %v3673
        %v3710 = vtanh.pop %v3674
        %v3711 = vtanh.pop %v3675
        %v3712 = vtanh.pop %v3676
        %v3713 = vtanh.pop %v3677
        %v3714 = vtanh.pop %v3678
        %v3715 = vtanh.pop %v3679
        %v3716 = vtanh.pop %v3680
        %v3717 = vtanh.pop %v3681
        %v3718 = vtanh.pop %v3682
        %v3719 = vtanh.pop %v3683
        %v3720 = vtanh.pop %v3684
        %v3721 = vtanh.pop %v3685
        %v3722 = vtanh.pop %v3686
        %v3723 = vtanh.pop %v3687
        %v3724 = vtanh.pop %v3688
        %v3725 = vtanh.pop %v3689
        %v3726 = vtanh.pop %v3690
        %v3727 = vtanh.pop %v3691
        %v3728 = vtanh.pop %v3692
        %v3729 = vtanh.pop %v3693
        %v3730 = vtanh.pop %v3694
        %v3731 = vtanh.pop %v3695
        %v3732 = vtanh.pop %v3696
        %v3733 = vadd.f32 %v3697, 1.0
        %v3734 = vadd.f32 %v3698, 1.0
        %v3735 = vadd.f32 %v3699, 1.0
        %v3736 = vadd.f32 %v3700, 1.0
        %v3737 = vadd.f32 %v3701, 1.0
        %v3738 = vadd.f32 %v3702, 1.0
        %v3739 = vadd.f32 %v3703, 1.0
        %v3740 = vadd.f32 %v3704, 1.0
        %v3741 = vadd.f32 %v3705, 1.0
        %v3742 = vadd.f32 %v3706, 1.0
        %v3743 = vadd.f32 %v3707, 1.0
        %v3744 = vadd.f32 %v3708, 1.0
        %v3745 = vadd.f32 %v3709, 1.0
        %v3746 = vadd.f32 %v3710, 1.0
        %v3747 = vadd.f32 %v3711, 1.0
        %v3748 = vadd.f32 %v3712, 1.0
        %v3749 = vadd.f32 %v3713, 1.0
        %v3750 = vadd.f32 %v3714, 1.0
        %v3751 = vadd.f32 %v3715, 1.0
        %v3752 = vadd.f32 %v3716, 1.0
        %v3753 = vadd.f32 %v3717, 1.0
        %v3754 = vadd.f32 %v3718, 1.0
        %v3755 = vadd.f32 %v3719, 1.0
        %v3756 = vadd.f32 %v3720, 1.0
        %v3757 = vadd.f32 %v3721, 1.0
        %v3758 = vadd.f32 %v3722, 1.0
        %v3759 = vadd.f32 %v3723, 1.0
        %v3760 = vadd.f32 %v3724, 1.0
        %v3761 = vadd.f32 %v3725, 1.0
        %v3762 = vadd.f32 %v3726, 1.0
        %v3763 = vadd.f32 %v3727, 1.0
        %v3764 = vadd.f32 %v3728, 1.0
        %v3765 = vadd.f32 %v3729, 1.0
        %v3766 = vadd.f32 %v3730, 1.0
        %v3767 = vadd.f32 %v3731, 1.0
        %v3768 = vadd.f32 %v3732, 1.0
        %v3769 = vmul.f32 %v3733, 0.5
        %v3770 = vmul.f32 %v3734, 0.5
        %v3771 = vmul.f32 %v3735, 0.5
        %v3772 = vmul.f32 %v3736, 0.5
        %v3773 = vmul.f32 %v3737, 0.5
        %v3774 = vmul.f32 %v3738, 0.5
        %v3775 = vmul.f32 %v3739, 0.5
        %v3776 = vmul.f32 %v3740, 0.5
        %v3777 = vmul.f32 %v3741, 0.5
        %v3778 = vmul.f32 %v3742, 0.5
        %v3779 = vmul.f32 %v3743, 0.5
        %v3780 = vmul.f32 %v3744, 0.5
        %v3781 = vmul.f32 %v3745, 0.5
        %v3782 = vmul.f32 %v3746, 0.5
        %v3783 = vmul.f32 %v3747, 0.5
        %v3784 = vmul.f32 %v3748, 0.5
        %v3785 = vmul.f32 %v3749, 0.5
        %v3786 = vmul.f32 %v3750, 0.5
        %v3787 = vmul.f32 %v3751, 0.5
        %v3788 = vmul.f32 %v3752, 0.5
        %v3789 = vmul.f32 %v3753, 0.5
        %v3790 = vmul.f32 %v3754, 0.5
        %v3791 = vmul.f32 %v3755, 0.5
        %v3792 = vmul.f32 %v3756, 0.5
        %v3793 = vmul.f32 %v3757, 0.5
        %v3794 = vmul.f32 %v3758, 0.5
        %v3795 = vmul.f32 %v3759, 0.5
        %v3796 = vmul.f32 %v3760, 0.5
        %v3797 = vmul.f32 %v3761, 0.5
        %v3798 = vmul.f32 %v3762, 0.5
        %v3799 = vmul.f32 %v3763, 0.5
        %v3800 = vmul.f32 %v3764, 0.5
        %v3801 = vmul.f32 %v3765, 0.5
        %v3802 = vmul.f32 %v3766, 0.5
        %v3803 = vmul.f32 %v3767, 0.5
        %v3804 = vmul.f32 %v3768, 0.5
        %v3805 = vmul.f32 %v3390, %v3769
        %v3806 = vmul.f32 %v3392, %v3770
        %v3807 = vmul.f32 %v3471, %v3771
        %v3808 = vmul.f32 %v3473, %v3772
        %v3809 = vmul.f32 %v3394, %v3773
        %v3810 = vmul.f32 %v3396, %v3774
        %v3811 = vmul.f32 %v3475, %v3775
        %v3812 = vmul.f32 %v3477, %v3776
        %v3813 = vmul.f32 %v3400, %v3777
        %v3814 = vmul.f32 %v3402, %v3778
        %v3815 = vmul.f32 %v3481, %v3779
        %v3816 = vmul.f32 %v3483, %v3780
        %v3817 = vmul.f32 %v3404, %v3781
        %v3818 = vmul.f32 %v3406, %v3782
        %v3819 = vmul.f32 %v3485, %v3783
        %v3820 = vmul.f32 %v3487, %v3784
        %v3821 = vmul.f32 %v3410, %v3785
        %v3822 = vmul.f32 %v3412, %v3786
        %v3823 = vmul.f32 %v3491, %v3787
        %v3824 = vmul.f32 %v3493, %v3788
        %v3825 = vmul.f32 %v3414, %v3789
        %v3826 = vmul.f32 %v3416, %v3790
        %v3827 = vmul.f32 %v3495, %v3791
        %v3828 = vmul.f32 %v3497, %v3792
        %v3829 = vmul.f32 %v3420, %v3793
        %v3830 = vmul.f32 %v3422, %v3794
        %v3831 = vmul.f32 %v3501, %v3795
        %v3832 = vmul.f32 %v3503, %v3796
        %v3833 = vmul.f32 %v3424, %v3797
        %v3834 = vmul.f32 %v3426, %v3798
        %v3835 = vmul.f32 %v3505, %v3799
        %v3836 = vmul.f32 %v3507, %v3800
        %v3837 = vmul.f32 %v3430, %v3801
        %v3838 = vmul.f32 %v3432, %v3802
        %v3839 = vmul.f32 %v3511, %v3803
        %v3840 = vmul.f32 %v3513, %v3804
        %v3841 = vpack.c.bf16 %v3809, %v3805
        %v3842 = vpack.c.bf16 %v3810, %v3806
        %v3843 = vpack.c.bf16 %v3811, %v3807
        %v3844 = vpack.c.bf16 %v3812, %v3808
        %v3845 = vpack.c.bf16 %v3817, %v3813
        %v3846 = vpack.c.bf16 %v3818, %v3814
        %v3847 = vpack.c.bf16 %v3819, %v3815
        %v3848 = vpack.c.bf16 %v3820, %v3816
        %v3849 = vpack.c.bf16 %v3825, %v3821
        %v3850 = vpack.c.bf16 %v3826, %v3822
        %v3851 = vpack.c.bf16 %v3827, %v3823
        %v3852 = vpack.c.bf16 %v3828, %v3824
        %v3853 = vpack.c.bf16 %v3833, %v3829
        %v3854 = vpack.c.bf16 %v3834, %v3830
        %v3855 = vpack.c.bf16 %v3835, %v3831
        %v3856 = vpack.c.bf16 %v3836, %v3832
        %v3857 = vpack.c.bf16 %v3837, %v3837
        %v3858 = vpack.c.bf16 %v3838, %v3838
        %v3859 = vpack.c.bf16 %v3839, %v3839
        %v3860 = vpack.c.bf16 %v3840, %v3840
        %v3861 = vld [vmem:[#allocation6] sm:$0xf]
        %v3862 = vld [vmem:[#allocation6 + $0x4] sm:$0xf]
        %v3863 = vld [vmem:[#allocation6 + $0x8] sm:$0xf]
        %v3864 = vld [vmem:[#allocation6 + $0xc] sm:$0xf]
        %v3865 = vld [vmem:[#allocation6 + $0x10] sm:$0xf]
        %v3866 = vld [vmem:[#allocation6 + $0x14] sm:$0xf]
        %v3867 = vld [vmem:[#allocation6 + $0x18] sm:$0xf]
        %v3868 = vld [vmem:[#allocation6 + $0x1c] sm:$0xf]
        %v3869 = vld [vmem:[#allocation6 + $0x20] sm:$0xf]
        %v3870 = vld [vmem:[#allocation6 + $0x24] sm:$0xf]
        %v3871 = vld [vmem:[#allocation6 + $0x28] sm:$0xf]
        %v3872 = vld [vmem:[#allocation6 + $0x2c] sm:$0xf]
        %v3873 = vld [vmem:[#allocation6 + $0x30] sm:$0xf]
        %v3874 = vld [vmem:[#allocation6 + $0x34] sm:$0xf]
        %v3875 = vld [vmem:[#allocation6 + $0x38] sm:$0xf]
        %v3876 = vld [vmem:[#allocation6 + $0x3c] sm:$0xf]
        %v3877 = vld [vmem:[#allocation6 + $0x40] sm:$0xf]
        %v3878 = vld [vmem:[#allocation6 + $0x44] sm:$0xf]
        %v3879 = vld [vmem:[#allocation6 + $0x48] sm:$0xf]
        %v3880 = vld [vmem:[#allocation6 + $0x4c] sm:$0xf]
        %v3881 = vld [vmem:[#allocation6 + $0x50] sm:$0xf]
        %v3882 = vld [vmem:[#allocation6 + $0x54] sm:$0xf]
        %v3883 = vld [vmem:[#allocation6 + $0x58] sm:$0xf]
        %v3884 = vld [vmem:[#allocation6 + $0x5c] sm:$0xf]
        %v3885 = vld [vmem:[#allocation6 + $0x60] sm:$0xf]
        %v3886 = vld [vmem:[#allocation6 + $0x64] sm:$0xf]
        %v3887 = vld [vmem:[#allocation6 + $0x68] sm:$0xf]
        %v3888 = vld [vmem:[#allocation6 + $0x6c] sm:$0xf]
        %v3889 = vld [vmem:[#allocation6 + $0x70] sm:$0xf]
        %v3890 = vld [vmem:[#allocation6 + $0x74] sm:$0xf]
        %v3891 = vld [vmem:[#allocation6 + $0x78] sm:$0xf]
        %v3892 = vld [vmem:[#allocation6 + $0x7c] sm:$0xf]
        %v3893 = vld [vmem:[#allocation6 + $0x80] sm:$0xf]
        %v3894 = vld [vmem:[#allocation6 + $0x84] sm:$0xf]
        %v3895 = vld [vmem:[#allocation6 + $0x88] sm:$0xf]
        %v3896 = vld [vmem:[#allocation6 + $0x8c] sm:$0xf]
        %v3897 = vld [vmem:[#allocation6 + $0x90] sm:$0xf]
        %v3898 = vld [vmem:[#allocation6 + $0x94] sm:$0xf]
        %v3899 = vld [vmem:[#allocation6 + $0x98] sm:$0xf]
        %v3900 = vld [vmem:[#allocation6 + $0x9c] sm:$0xf]
        %v3901 = vld [vmem:[#allocation6 + $0xa0] sm:$0xf]
        %v3902 = vld [vmem:[#allocation6 + $0xa4] sm:$0xf]
        %v3903 = vld [vmem:[#allocation6 + $0xa8] sm:$0xf]
        %v3904 = vld [vmem:[#allocation6 + $0xac] sm:$0xf]
        %v3905 = vld [vmem:[#allocation6 + $0xb0] sm:$0xf]
        %v3906 = vld [vmem:[#allocation6 + $0xb4] sm:$0xf]
        %v3907 = vld [vmem:[#allocation6 + $0xb8] sm:$0xf]
        %v3908 = vld [vmem:[#allocation6 + $0xbc] sm:$0xf]
        %v3909 = vld [vmem:[#allocation6 + $0xc0] sm:$0xf]
        %v3910 = vld [vmem:[#allocation6 + $0xc4] sm:$0xf]
        %v3911 = vld [vmem:[#allocation6 + $0xc8] sm:$0xf]
        %v3912 = vld [vmem:[#allocation6 + $0xcc] sm:$0xf]
        %v3913 = vld [vmem:[#allocation6 + $0xd0] sm:$0xf]
        %v3914 = vld [vmem:[#allocation6 + $0xd4] sm:$0xf]
        %v3915 = vld [vmem:[#allocation6 + $0xd8] sm:$0xf]
        %v3916 = vld [vmem:[#allocation6 + $0xdc] sm:$0xf]
        %v3917 = vld [vmem:[#allocation6 + $0xe0] sm:$0xf]
        %v3918 = vld [vmem:[#allocation6 + $0xe4] sm:$0xf]
        %v3919 = vld [vmem:[#allocation6 + $0xe8] sm:$0xf]
        %v3920 = vld [vmem:[#allocation6 + $0xec] sm:$0xf]
        %v3921 = vld [vmem:[#allocation6 + $0xf0] sm:$0xf]
        %v3922 = vld [vmem:[#allocation6 + $0xf4] sm:$0xf]
        %v3923 = vld [vmem:[#allocation6 + $0xf8] sm:$0xf]
        %v3924 = vld [vmem:[#allocation6 + $0xfc] sm:$0xf]
        %v3925 = vld [vmem:[%s13] sm:$0x1]
        %v3926 = vunpack.c.l.bf16 %v3925
        %v3927 = vlaneseq
        %v3928 = vshrl.u32 %v3927, 7
        %v3929 = vsub.s32 0, %v3928
        %v3930 = vrot.slane %v3926, %v3929
        %v3995 = vunpack.c.l.b16 %v3861
        %v3996 = vunpack.c.l.b16 %v3862
        %v3997 = vunpack.c.l.b16 %v3863
        %v3998 = vunpack.c.l.b16 %v3864
        %v3999 = vunpack.c.l.b16 %v3865
        %v4000 = vunpack.c.l.b16 %v3866
        %v4001 = vunpack.c.l.b16 %v3867
        %v4002 = vunpack.c.l.b16 %v3868
        %v4003 = vunpack.c.l.b16 %v3869
        %v4004 = vunpack.c.l.b16 %v3870
        %v4005 = vunpack.c.l.b16 %v3871
        %v4006 = vunpack.c.l.b16 %v3872
        %v4007 = vunpack.c.l.b16 %v3873
        %v4008 = vunpack.c.l.b16 %v3874
        %v4009 = vunpack.c.l.b16 %v3875
        %v4010 = vunpack.c.l.b16 %v3876
        %v4011 = vunpack.c.l.b16 %v3877
        %v4012 = vunpack.c.l.b16 %v3878
        %v4013 = vunpack.c.l.b16 %v3879
        %v4014 = vunpack.c.l.b16 %v3880
        %v4015 = vunpack.c.l.b16 %v3881
        %v4016 = vunpack.c.l.b16 %v3882
        %v4017 = vunpack.c.l.b16 %v3883
        %v4018 = vunpack.c.l.b16 %v3884
        %v4019 = vunpack.c.l.b16 %v3885
        %v4020 = vunpack.c.l.b16 %v3886
        %v4021 = vunpack.c.l.b16 %v3887
        %v4022 = vunpack.c.l.b16 %v3888
        %v4023 = vunpack.c.l.b16 %v3889
        %v4024 = vunpack.c.l.b16 %v3890
        %v4025 = vunpack.c.l.b16 %v3891
        %v4026 = vunpack.c.l.b16 %v3892
        %v4027 = vunpack.c.l.b16 %v3893
        %v4028 = vunpack.c.l.b16 %v3894
        %v4029 = vunpack.c.l.b16 %v3895
        %v4030 = vunpack.c.l.b16 %v3896
        %v4031 = vunpack.c.l.b16 %v3897
        %v4032 = vunpack.c.l.b16 %v3898
        %v4033 = vunpack.c.l.b16 %v3899
        %v4034 = vunpack.c.l.b16 %v3900
        %v4035 = vunpack.c.l.b16 %v3901
        %v4036 = vunpack.c.l.b16 %v3902
        %v4037 = vunpack.c.l.b16 %v3903
        %v4038 = vunpack.c.l.b16 %v3904
        %v4039 = vunpack.c.l.b16 %v3905
        %v4040 = vunpack.c.l.b16 %v3906
        %v4041 = vunpack.c.l.b16 %v3907
        %v4042 = vunpack.c.l.b16 %v3908
        %v4043 = vunpack.c.l.b16 %v3909
        %v4044 = vunpack.c.l.b16 %v3910
        %v4045 = vunpack.c.l.b16 %v3911
        %v4046 = vunpack.c.l.b16 %v3912
        %v4047 = vunpack.c.l.b16 %v3913
        %v4048 = vunpack.c.l.b16 %v3914
        %v4049 = vunpack.c.l.b16 %v3915
        %v4050 = vunpack.c.l.b16 %v3916
        %v4051 = vunpack.c.l.b16 %v3917
        %v4052 = vunpack.c.l.b16 %v3918
        %v4053 = vunpack.c.l.b16 %v3919
        %v4054 = vunpack.c.l.b16 %v3920
        %v4055 = vunpack.c.l.b16 %v3921
        %v4056 = vunpack.c.l.b16 %v3922
        %v4057 = vunpack.c.l.b16 %v3923
        %v4058 = vunpack.c.l.b16 %v3924
        %v4059 = vpack.c.b16 %v3996, %v3995
        %v4060 = vpack.c.b16 %v3998, %v3997
        %v4061 = vpack.c.b16 %v4000, %v3999
        %v4062 = vpack.c.b16 %v4002, %v4001
        %v4063 = vpack.c.b16 %v4004, %v4003
        %v4064 = vpack.c.b16 %v4006, %v4005
        %v4065 = vpack.c.b16 %v4008, %v4007
        %v4066 = vpack.c.b16 %v4010, %v4009
        %v4067 = vpack.c.b16 %v4012, %v4011
        %v4068 = vpack.c.b16 %v4014, %v4013
        %v4069 = vpack.c.b16 %v4016, %v4015
        %v4070 = vpack.c.b16 %v4018, %v4017
        %v4071 = vpack.c.b16 %v4020, %v4019
        %v4072 = vpack.c.b16 %v4022, %v4021
        %v4073 = vpack.c.b16 %v4024, %v4023
        %v4074 = vpack.c.b16 %v4026, %v4025
        %v4075 = vpack.c.b16 %v4028, %v4027
        %v4076 = vpack.c.b16 %v4030, %v4029
        %v4077 = vpack.c.b16 %v4032, %v4031
        %v4078 = vpack.c.b16 %v4034, %v4033
        %v4079 = vpack.c.b16 %v4036, %v4035
        %v4080 = vpack.c.b16 %v4038, %v4037
        %v4081 = vpack.c.b16 %v4040, %v4039
        %v4082 = vpack.c.b16 %v4042, %v4041
        %v4083 = vpack.c.b16 %v4044, %v4043
        %v4084 = vpack.c.b16 %v4046, %v4045
        %v4085 = vpack.c.b16 %v4048, %v4047
        %v4086 = vpack.c.b16 %v4050, %v4049
        %v4087 = vpack.c.b16 %v4052, %v4051
        %v4088 = vpack.c.b16 %v4054, %v4053
        %v4089 = vpack.c.b16 %v4056, %v4055
        %v4090 = vpack.c.b16 %v4058, %v4057
        %4123 = vmatprep.subr.bf16.mxu0 0
        %4124 = vmatpush1.bf16.msra.mxu0 %v4059
        %4125 = vmatprep.subr.bf16.mxu0 0
        %4126 = vmatpush1.bf16.msra.mxu0 %v4060
        %4127 = vmatprep.subr.bf16.mxu0 0
        %4128 = vmatpush1.bf16.msra.mxu0 %v4061
        %4129 = vmatprep.subr.bf16.mxu0 0
        %4130 = vmatpush1.bf16.msra.mxu0 %v4062
        %4131 = vmatprep.subr.bf16.mxu0 0
        %4132 = vmatpush1.bf16.msra.mxu0 %v4063
        %4133 = vmatprep.subr.bf16.mxu0 0
        %4134 = vmatpush1.bf16.msra.mxu0 %v4064
        %4135 = vmatprep.subr.bf16.mxu0 0
        %4136 = vmatpush1.bf16.msra.mxu0 %v4065
        %4137 = vmatprep.subr.bf16.mxu0 0
        %4138 = vmatpush1.bf16.msra.mxu0 %v4066
        %4139 = vmatprep.subr.bf16.mxu0 0
        %4140 = vmatpush1.bf16.msra.mxu0 %v4067
        %4141 = vmatprep.subr.bf16.mxu0 0
        %4142 = vmatpush1.bf16.msra.mxu0 %v4068
        %4143 = vmatprep.subr.bf16.mxu0 0
        %4144 = vmatpush1.bf16.msra.mxu0 %v4069
        %4145 = vmatprep.subr.bf16.mxu0 0
        %4146 = vmatpush1.bf16.msra.mxu0 %v4070
        %4147 = vmatprep.subr.bf16.mxu0 0
        %4148 = vmatpush1.bf16.msra.mxu0 %v4071
        %4149 = vmatprep.subr.bf16.mxu0 0
        %4150 = vmatpush1.bf16.msra.mxu0 %v4072
        %4151 = vmatprep.subr.bf16.mxu0 0
        %4152 = vmatpush1.bf16.msra.mxu0 %v4073
        %4153 = vmatprep.subr.bf16.mxu0 0
        %4154 = vmatpush1.bf16.msra.mxu0 %v4074
        %4155 = vmatprep.mubr.bf16.mxu0 %v3842
        %4156 = vmatmul.mubr.bf16.gmra.mrb[0].mxu0 %v3841
        %v4157 = vpop.f32.mrb[0].mxu0
        %v4158 = vadd.f32 %v3930, %v4157
        %v4159 = vpop.f32.mrb[0].mxu0
        %v4160 = vpop.f32.mrb[0].mxu0
        %v4161 = vadd.f32 %v3930, %v4160
        %v4162 = vpop.f32.mrb[0].mxu0
        %4163 = vmatprep.mubr.bf16.mxu0 %v3846
        %4164 = vmatmul.mubr.bf16.gmra.mrb[0].mxu0 %v3845
        %v4165 = vpop.f32.mrb[0].mxu0
        %v4166 = vadd.f32 %v3930, %v4165
        %v4167 = vpop.f32.mrb[0].mxu0
        %v4168 = vpop.f32.mrb[0].mxu0
        %v4169 = vadd.f32 %v3930, %v4168
        %v4170 = vpop.f32.mrb[0].mxu0
        %4171 = vmatprep.mubr.bf16.mxu0 %v3850
        %4172 = vmatmul.mubr.bf16.gmra.mrb[0].mxu0 %v3849
        %v4173 = vpop.f32.mrb[0].mxu0
        %v4174 = vadd.f32 %v3930, %v4173
        %v4175 = vpop.f32.mrb[0].mxu0
        %v4176 = vpop.f32.mrb[0].mxu0
        %v4177 = vadd.f32 %v3930, %v4176
        %v4178 = vpop.f32.mrb[0].mxu0
        %4179 = vmatprep.mubr.bf16.mxu0 %v3854
        %4180 = vmatmul.mubr.bf16.gmra.mrb[0].mxu0 %v3853
        %v4181 = vpop.f32.mrb[0].mxu0
        %v4182 = vadd.f32 %v3930, %v4181
        %v4183 = vpop.f32.mrb[0].mxu0
        %v4184 = vpop.f32.mrb[0].mxu0
        %v4185 = vadd.f32 %v3930, %v4184
        %v4186 = vpop.f32.mrb[0].mxu0
        %4187 = vmatprep.mubr.bf16.mxu0 %v3858
        %4188 = vmatmul.mubr.bf16.gmra.mrb[0].mxu0 %v3857
        %v4189 = vpop.f32.mrb[0].mxu0
        %v4190 = vadd.f32 %v3930, %v4189
        %v4191 = vpop.f32.mrb[0].mxu0
        %v4192 = vpop.f32.mrb[0].mxu0
        %v4193 = vpop.f32.mrb[0].mxu0
        %4194 = vdwg.mxu0
        %4195 = vmatprep.subr.bf16.mxu0 0
        %4196 = vmatpush1.bf16.msra.mxu0 %v4075
        %4197 = vmatprep.subr.bf16.mxu0 0
        %4198 = vmatpush1.bf16.msra.mxu0 %v4076
        %4199 = vmatprep.subr.bf16.mxu0 0
        %4200 = vmatpush1.bf16.msra.mxu0 %v4077
        %4201 = vmatprep.subr.bf16.mxu0 0
        %4202 = vmatpush1.bf16.msra.mxu0 %v4078
        %4203 = vmatprep.subr.bf16.mxu0 0
        %4204 = vmatpush1.bf16.msra.mxu0 %v4079
        %4205 = vmatprep.subr.bf16.mxu0 0
        %4206 = vmatpush1.bf16.msra.mxu0 %v4080
        %4207 = vmatprep.subr.bf16.mxu0 0
        %4208 = vmatpush1.bf16.msra.mxu0 %v4081
        %4209 = vmatprep.subr.bf16.mxu0 0
        %4210 = vmatpush1.bf16.msra.mxu0 %v4082
        %4211 = vmatprep.subr.bf16.mxu0 0
        %4212 = vmatpush1.bf16.msra.mxu0 %v4083
        %4213 = vmatprep.subr.bf16.mxu0 0
        %4214 = vmatpush1.bf16.msra.mxu0 %v4084
        %4215 = vmatprep.subr.bf16.mxu0 0
        %4216 = vmatpush1.bf16.msra.mxu0 %v4085
        %4217 = vmatprep.subr.bf16.mxu0 0
        %4218 = vmatpush1.bf16.msra.mxu0 %v4086
        %4219 = vmatprep.subr.bf16.mxu0 0
        %4220 = vmatpush1.bf16.msra.mxu0 %v4087
        %4221 = vmatprep.subr.bf16.mxu0 0
        %4222 = vmatpush1.bf16.msra.mxu0 %v4088
        %4223 = vmatprep.subr.bf16.mxu0 0
        %4224 = vmatpush1.bf16.msra.mxu0 %v4089
        %4225 = vmatprep.subr.bf16.mxu0 0
        %4226 = vmatpush1.bf16.msra.mxu0 %v4090
        %4227 = vmatprep.mubr.bf16.mxu0 %v3844
        %4228 = vmatmul.mubr.bf16.gmra.mrb[0].mxu0 %v3843
        %v4229 = vpop.f32.mrb[0].mxu0
        %v4230 = vadd.f32 %v4158, %v4229
        %v4231 = vpop.f32.mrb[0].mxu0
        %v4232 = vpop.f32.mrb[0].mxu0
        %v4233 = vadd.f32 %v4161, %v4232
        %v4234 = vpop.f32.mrb[0].mxu0
        %4235 = vmatprep.mubr.bf16.mxu0 %v3848
        %4236 = vmatmul.mubr.bf16.gmra.mrb[0].mxu0 %v3847
        %v4237 = vpop.f32.mrb[0].mxu0
        %v4238 = vadd.f32 %v4166, %v4237
        %v4239 = vpop.f32.mrb[0].mxu0
        %v4240 = vpop.f32.mrb[0].mxu0
        %v4241 = vadd.f32 %v4169, %v4240
        %v4242 = vpop.f32.mrb[0].mxu0
        %4243 = vmatprep.mubr.bf16.mxu0 %v3852
        %4244 = vmatmul.mubr.bf16.gmra.mrb[0].mxu0 %v3851
        %v4245 = vpop.f32.mrb[0].mxu0
        %v4246 = vadd.f32 %v4174, %v4245
        %v4247 = vpop.f32.mrb[0].mxu0
        %v4248 = vpop.f32.mrb[0].mxu0
        %v4249 = vadd.f32 %v4177, %v4248
        %v4250 = vpop.f32.mrb[0].mxu0
        %4251 = vmatprep.mubr.bf16.mxu0 %v3856
        %4252 = vmatmul.mubr.bf16.gmra.mrb[0].mxu0 %v3855
        %v4253 = vpop.f32.mrb[0].mxu0
        %v4254 = vadd.f32 %v4182, %v4253
        %v4255 = vpop.f32.mrb[0].mxu0
        %v4256 = vpop.f32.mrb[0].mxu0
        %v4257 = vadd.f32 %v4185, %v4256
        %v4258 = vpop.f32.mrb[0].mxu0
        %4259 = vmatprep.mubr.bf16.mxu0 %v3860
        %4260 = vmatmul.mubr.bf16.gmra.mrb[0].mxu0 %v3859
        %v4261 = vpop.f32.mrb[0].mxu0
        %v4262 = vadd.f32 %v4190, %v4261
        %v4263 = vpop.f32.mrb[0].mxu0
        %v4264 = vpop.f32.mrb[0].mxu0
        %v4265 = vpop.f32.mrb[0].mxu0
        %4266 = vdwg.mxu0
        %v4267 = vpack.c.bf16 %v4233, %v4230
        %v4268 = vpack.c.bf16 %v4241, %v4238
        %v4269 = vpack.c.bf16 %v4249, %v4246
        %v4270 = vpack.c.bf16 %v4257, %v4254
        %v4271 = vpack.c.bf16 %v4262, %v4262
        %v4277 = vunpack.c.l.b16 %v4267
        %v4278 = vunpack.c.h.b16 %v4267
        %v4279 = vunpack.c.l.b16 %v4268
        %v4280 = vunpack.c.h.b16 %v4268
        %v4281 = vunpack.c.l.b16 %v4269
        %v4282 = vunpack.c.h.b16 %v4269
        %v4283 = vunpack.c.l.b16 %v4270
        %v4284 = vunpack.c.h.b16 %v4270
        %v4285 = vunpack.c.l.b16 %v4271
        %v4286 = vpack.c.b16 %v4277, %v4277
        %v4287 = vpack.c.b16 %v4278, %v4278
        %v4288 = vpack.c.b16 %v4279, %v4279
        %v4289 = vpack.c.b16 %v4280, %v4280
        %v4290 = vpack.c.b16 %v4281, %v4281
        %v4291 = vpack.c.b16 %v4282, %v4282
        %v4292 = vpack.c.b16 %v4283, %v4283
        %v4293 = vpack.c.b16 %v4284, %v4284
        %v4294 = vpack.c.b16 %v4285, %v4285
        %4304 = vst [vmem:[%s612] sm:$0xf] %v4286
        %4305 = vst [vmem:[%s612 + $0x4] sm:$0xf] %v4287
        %4306 = vst [vmem:[%s612 + $0x8] sm:$0xf] %v4288
        %4307 = vst [vmem:[%s612 + $0xc] sm:$0xf] %v4289
        %4308 = vst [vmem:[%s612 + $0x10] sm:$0xf] %v4290
        %4309 = vst [vmem:[%s612 + $0x14] sm:$0xf] %v4291
        %4310 = vst [vmem:[%s612 + $0x18] sm:$0xf] %v4292
        %4311 = vst [vmem:[%s612 + $0x1c] sm:$0xf] %v4293
        %v4312 = vld [vmem:[%s612 + $0x20] sm:$0x1]
        %v4313 = vsel %vm2960, %v4294, %v4312
        %4314 = vst [vmem:[%s612 + $0x20] sm:$0x1] %v4313
        %v4315 = vld [vmem:[%s14] sm:$0x1]
        %v4316 = vunpack.c.l.bf16 %v4315
        %v4317 = vlaneseq
        %v4318 = vshrl.u32 %v4317, 7
        %v4319 = vsub.s32 0, %v4318
        %v4320 = vrot.slane %v4316, %v4319
        %v4321 = vmul.f32 %v4320, %v4230
        %v4322 = vmul.f32 %v4320, %v4233
        %v4323 = vmul.f32 %v4320, %v4238
        %v4324 = vmul.f32 %v4320, %v4241
        %v4325 = vmul.f32 %v4320, %v4246
        %v4326 = vmul.f32 %v4320, %v4249
        %v4327 = vmul.f32 %v4320, %v4254
        %v4328 = vmul.f32 %v4320, %v4257
        %v4329 = vmul.f32 %v4320, %v4262
        %v4330 = vadd.f32 %v2979, %v4321
        %v4331 = vadd.f32 %v2980, %v4322
        %v4332 = vadd.f32 %v2981, %v4323
        %v4333 = vadd.f32 %v2982, %v4324
        %v4334 = vadd.f32 %v2983, %v4325
        %v4335 = vadd.f32 %v2984, %v4326
        %v4336 = vadd.f32 %v2985, %v4327
        %v4337 = vadd.f32 %v2986, %v4328
        %v4338 = vadd.f32 %v2987, %v4329
        %v4339 = vpack.c.bf16 %v4331, %v4330
        %v4340 = vpack.c.bf16 %v4333, %v4332
        %v4341 = vpack.c.bf16 %v4335, %v4334
        %v4342 = vpack.c.bf16 %v4337, %v4336
        %v4343 = vpack.c.bf16 %v4338, %v4338
        %v4349 = vunpack.c.l.b16 %v4339
        %v4350 = vunpack.c.h.b16 %v4339
        %v4351 = vunpack.c.l.b16 %v4340
        %v4352 = vunpack.c.h.b16 %v4340
        %v4353 = vunpack.c.l.b16 %v4341
        %v4354 = vunpack.c.h.b16 %v4341
        %v4355 = vunpack.c.l.b16 %v4342
        %v4356 = vunpack.c.h.b16 %v4342
        %v4357 = vunpack.c.l.b16 %v4343
        %v4358 = vpack.c.b16 %v4349, %v4349
        %v4359 = vpack.c.b16 %v4350, %v4350
        %v4360 = vpack.c.b16 %v4351, %v4351
        %v4361 = vpack.c.b16 %v4352, %v4352
        %v4362 = vpack.c.b16 %v4353, %v4353
        %v4363 = vpack.c.b16 %v4354, %v4354
        %v4364 = vpack.c.b16 %v4355, %v4355
        %v4365 = vpack.c.b16 %v4356, %v4356
        %v4366 = vpack.c.b16 %v4357, %v4357
        %4376 = vst [vmem:[%s617] sm:$0xf] %v4358
        %4377 = vst [vmem:[%s617 + $0x4] sm:$0xf] %v4359
        %4378 = vst [vmem:[%s617 + $0x8] sm:$0xf] %v4360
        %4379 = vst [vmem:[%s617 + $0xc] sm:$0xf] %v4361
        %4380 = vst [vmem:[%s617 + $0x10] sm:$0xf] %v4362
        %4381 = vst [vmem:[%s617 + $0x14] sm:$0xf] %v4363
        %4382 = vst [vmem:[%s617 + $0x18] sm:$0xf] %v4364
        %4383 = vst [vmem:[%s617 + $0x1c] sm:$0xf] %v4365
        %v4384 = vld [vmem:[%s617 + $0x20] sm:$0x1]
        %v4385 = vsel %vm2960, %v4366, %v4384
        %4386 = vst [vmem:[%s617 + $0x20] sm:$0x1] %v4385
        %p4387 = scmp.lt.s32.totalorder %s31, 1
        %s4388 = scalar_select %p4387, %s31, 1
        %s4389 = smul.addr %s4388, 9
        %s4390 = smul.addr %s4389, 4
        %s4391 = scalar_lea.vmem %s15, %s4390
        %p4392 = scmp.lt.s32.totalorder %s31, 1
        %s4393 = scalar_select %p4392, %s31, 1
        %s4394 = smul.addr %s4393, 9
        %s4395 = smul.addr %s4394, 4
        %s4396 = scalar_lea.vmem %s16, %s4395
        %p4397 = scmp.lt.s32.totalorder %s31, 1
        %s4398 = scalar_select %p4397, %s31, 1
        %s4399 = smul.addr %s4398, 9
        %s4400 = smul.addr %s4399, 4
        %s4401 = scalar_lea.vmem %s17, %s4400
        // Predicated region
        $region93: #{tpu_custom_call.1} parent=79 // pred_check
          %p4402 = pneg %p369
        $region94: #{tpu_custom_call.1} parent=79 // pred_check_branch
          %4404 = sbr.rel (%p4402) target = $region96
        $region95: #{tpu_custom_call.1} parent=79 // pred_region
          _
        $region96: #{tpu_custom_call.1} parent=79 // pred_fallthru
          _
        // Predicated region
        $region97: #{tpu_custom_call.1} parent=79 // pred_check
          %p4405 = pneg %p395
        $region98: #{tpu_custom_call.1} parent=79 // pred_check_branch
          %4407 = sbr.rel (%p4405) target = $region100
        $region99: #{tpu_custom_call.1} parent=79 // pred_region
          _
        $region100: #{tpu_custom_call.1} parent=79 // pred_fallthru
          _
        // Predicated region
        $region101: #{tpu_custom_call.1} parent=79 // pred_check
          %p4408 = pneg %p421
        $region102: #{tpu_custom_call.1} parent=79 // pred_check_branch
          %4410 = sbr.rel (%p4408) target = $region104
        $region103: #{tpu_custom_call.1} parent=79 // pred_region
          _
        $region104: #{tpu_custom_call.1} parent=79 // pred_fallthru
          _
      $region80: #{tpu_custom_call.1} parent=5 // pred_fallthru
        _
      %p4411 = scmp.le.s32.totalorder 2, %s26
      // Predicated region
      $region105: #{tpu_custom_call.1} parent=5 // pred_check
        %p4412 = pneg %p4411
      $region106: #{tpu_custom_call.1} parent=5 // pred_check_branch
        %4414 = sbr.rel (%p4412) target = $region108
      $region107: #{tpu_custom_call.1} parent=5 // pred_region
        %s4415 = ssub.s32 %s26, 2
        // Predicated region
        $region109: #{tpu_custom_call.1} parent=107 // pred_check
          %p4416 = pneg %p375
        $region110: #{tpu_custom_call.1} parent=107 // pred_check_branch
          %4418 = sbr.rel (%p4416) target = $region112
        $region111: #{tpu_custom_call.1} parent=107 // pred_region
          %p4419 = scmp.lt.s32.totalorder %s32, 1
          %s4420 = scalar_select %p4419, %s32, 1
          %s4421 = smul.addr %s4420, 9
          %s4422 = smul.addr %s4421, 4
          %s4423 = scalar_lea.vmem %s15, %s4422
        $region112: #{tpu_custom_call.1} parent=107 // pred_fallthru
          _
        // Predicated region
        $region113: #{tpu_custom_call.1} parent=107 // pred_check
          %p4424 = pneg %p401
        $region114: #{tpu_custom_call.1} parent=107 // pred_check_branch
          %4426 = sbr.rel (%p4424) target = $region116
        $region115: #{tpu_custom_call.1} parent=107 // pred_region
          %p4427 = scmp.lt.s32.totalorder %s32, 1
          %s4428 = scalar_select %p4427, %s32, 1
          %s4429 = smul.addr %s4428, 9
          %s4430 = smul.addr %s4429, 4
          %s4431 = scalar_lea.vmem %s16, %s4430
        $region116: #{tpu_custom_call.1} parent=107 // pred_fallthru
          _
        // Predicated region
        $region117: #{tpu_custom_call.1} parent=107 // pred_check
          %p4432 = pneg %p427
        $region118: #{tpu_custom_call.1} parent=107 // pred_check_branch
          %4434 = sbr.rel (%p4432) target = $region120
        $region119: #{tpu_custom_call.1} parent=107 // pred_region
          %p4435 = scmp.lt.s32.totalorder %s32, 1
          %s4436 = scalar_select %p4435, %s32, 1
          %s4437 = smul.addr %s4436, 9
          %s4438 = smul.addr %s4437, 4
          %s4439 = scalar_lea.vmem %s17, %s4438
        $region120: #{tpu_custom_call.1} parent=107 // pred_fallthru
          _
      $region108: #{tpu_custom_call.1} parent=5 // pred_fallthru
        _
    $region6: #{tpu_custom_call.1} parent=1 // loop_footer
      %s30 = sadd.s32 1, %s26
    $region7: #{tpu_custom_call.1} parent=1 // loop_footer_branch
      %25 = sbr.rel target = $region3
    $region8: #{tpu_custom_call.1} parent=1 // loop_exit
      _
    %4440 = vsyncpa [#allocation3], 1
    %s4441 = scalar_lea.sflag [#allocation3], 1
    %4442 = vsyncpa %s4441, 1
    %4443 = vsyncpa [#allocation5], 1

</llo_original>
